<compile_context>
chip_gen: v7x
topology: tpu7x:2x2x1
jax: 0.10.0
libtpu: 0.0.40
codegen_flags: <defaults>
</compile_context>

<pallas_src>
import jax
import jax.numpy as jnp
from jax.experimental import pallas as pl
from jax.experimental.pallas import tpu as pltpu

IN_FEATURES = 13
_LANES = 128
_FLAT = IN_FEATURES * _LANES  # 1664


def _linear_sigmoid_kernel(x_ref, w_ref, b_ref, o_ref):
    # x_ref: [tr, 1664]  VMEM — tr*128 batch rows, row-major, lane-dense
    # w_ref: [1664, 128] VMEM — expanded weight, w_ref[13*j + f, j] = w[f]
    # b_ref: [1]         SMEM — bias scalar
    # o_ref: [tr, 128]   VMEM — lane-dense output slab, o[r, j] = y[128*r + j]
    acc = jnp.dot(
        x_ref[...],
        w_ref[...],
        preferred_element_type=jnp.float32,
        precision=jax.lax.Precision.HIGHEST,
    )
    o_ref[...] = jax.nn.sigmoid(acc + b_ref[0])


def net_forward_pallas(x, weight, bias, *, tile_rows=512):
    """Pallas forward pass of Net.

    Args:
      x:      [N, 13] float32
      weight: [1, 13] float32 (PyTorch nn.Linear layout: [out, in])
      bias:   [1]     float32
      tile_rows: flat rows (of 128 batch elements each) per grid step.
    Returns:
      [N, 1] float32
    """
    n, in_f = x.shape
    assert in_f == IN_FEATURES
    x = x.astype(jnp.float32)

    # Round the batch up to a multiple of 128 so the contiguous row-major
    # [N, 13] buffer can be reinterpreted as [G, 13*128] with a free reshape.
    # Aligned batches are zero-copy; only unaligned batches pay the pad.
    n_pad = pl.cdiv(n, _LANES) * _LANES
    if n_pad != n:
        x = jnp.pad(x, ((0, n_pad - n), (0, 0)))
    g = n_pad // _LANES
    x_flat = x.reshape(g, _FLAT)

    # Sanitize the tile: multiple of 8 sublanes, capped so the double-buffered
    # VMEM footprint stays under v5e's 16 MiB default scoped limit.
    tr = max(8, min(int(tile_rows), 512))
    tr = (tr // 8) * 8
    if tr >= g:
        tr = g  # full-dim block is always legal, even if g % 8 != 0
    grid = (pl.cdiv(g, tr),)  # last block may be partial; Pallas masks it.

    # Expanded weight: W[13*j + f, j] = w[f] (zeros elsewhere). Multiplying the
    # flat x view by W performs the per-batch-element 13-feature dot product
    # and lands the 128 results of each flat row on dense lanes.
    w_vec = weight.reshape(IN_FEATURES).astype(jnp.float32)
    eye = jnp.eye(_LANES, dtype=jnp.float32)
    w_mat = (eye[:, None, :] * w_vec[None, :, None]).reshape(_FLAT, _LANES)
    b_vec = bias.reshape(1).astype(jnp.float32)

    out = pl.pallas_call(
        _linear_sigmoid_kernel,
        out_shape=jax.ShapeDtypeStruct((g, _LANES), jnp.float32),
        grid_spec=pltpu.PrefetchScalarGridSpec(
            num_scalar_prefetch=0,
            grid=grid,
            in_specs=[
                pl.BlockSpec((tr, _FLAT), lambda i: (i, 0)),
                pl.BlockSpec((_FLAT, _LANES), lambda i: (0, 0)),  # resident W
                pl.BlockSpec(memory_space=pltpu.MemorySpace.SMEM),
            ],
            out_specs=pl.BlockSpec((tr, _LANES), lambda i: (i, 0)),
        ),
        compiler_params=pltpu.CompilerParams(
            dimension_semantics=("parallel",),
        ),
        cost_estimate=pl.CostEstimate(
            flops=2 * g * _FLAT * _LANES,
            transcendentals=n_pad,
            bytes_accessed=(g * _FLAT + g * _LANES + _FLAT * _LANES + 1) * 4,
        ),
    )(x_flat, w_mat, b_vec)

    # [G, 128] -> [n_pad, 1] is a free contiguous reshape; slice off padding.
    return out.reshape(n_pad, 1)[:n]


def net_forward(x, weight, bias, *, min_pallas_batch=1024, tile_rows=512):
    """Dispatcher: tiny batches skip the Pallas launch (overhead-dominated)."""
    if x.shape[0] < min_pallas_batch:
        return jax.nn.sigmoid(
            jnp.dot(x, weight.T, precision=jax.lax.Precision.HIGHEST) + bias)
    return net_forward_pallas(x, weight, bias, tile_rows=tile_rows)


def reference_forward(x, weight, bias):
    logits = jnp.dot(x, weight.T, precision=jax.lax.Precision.HIGHEST) + bias
    return jax.nn.sigmoid(logits)


if __name__ == "__main__":
    key = jax.random.PRNGKey(0)
    kx1, kx2, kx3, kw, kb = jax.random.split(key, 5)

    # Deterministic init mimicking nn.Linear defaults (uniform +/- 1/sqrt(13)).
    bound = 1.0 / jnp.sqrt(jnp.float32(IN_FEATURES))
    weight = jax.random.uniform(kw, (1, IN_FEATURES), jnp.float32, -bound, bound)
    bias = jax.random.uniform(kb, (1,), jnp.float32, -bound, bound)

    # Case 1: tiny module-like batch (unaligned, pad path, single grid step).
    x1 = jax.random.normal(kx1, (8, IN_FEATURES), dtype=jnp.float32)
    o1 = jax.block_until_ready(net_forward_pallas(x1, weight, bias))
    r1 = reference_forward(x1, weight, bias)
    assert o1.shape == (8, 1)
    assert jnp.allclose(o1, r1, atol=1e-5, rtol=1e-5)

    # Case 2: aligned batch (zero-copy reshape), multi-step grid with a
    # partial last block (g = 9 flat rows, tile = 8 -> grid of 2).
    x2 = jax.random.normal(kx2, (9 * 128, IN_FEATURES), dtype=jnp.float32)
    o2 = jax.block_until_ready(net_forward_pallas(x2, weight, bias, tile_rows=8))
    r2 = reference_forward(x2, weight, bias)
    assert o2.shape == (9 * 128, 1)
    assert jnp.allclose(o2, r2, atol=1e-5, rtol=1e-5)

    # Case 3: unaligned, non-multiple-of-128 batch through the Pallas path.
    x3 = jax.random.normal(kx3, (300, IN_FEATURES), dtype=jnp.float32)
    o3 = jax.block_until_ready(net_forward_pallas(x3, weight, bias))
    r3 = reference_forward(x3, weight, bias)
    assert o3.shape == (300, 1)
    assert jnp.allclose(o3, r3, atol=1e-5, rtol=1e-5)

    # Dispatcher sanity check (small batch takes the fused XLA path).
    o4 = jax.block_until_ready(net_forward(x1, weight, bias))
    assert jnp.allclose(o4, r1, atol=1e-5, rtol=1e-5)

    print("KERNEL_OK")
</pallas_src>

<mosaic_0001>
module attributes {stable_mosaic.version = 11 : i64} {
  func.func @_linear_sigmoid_kernel(%arg0: i32, %arg1: memref<1x1664xf32, #tpu.memory_space<vmem>>, %arg2: memref<1664x128xf32, #tpu.memory_space<vmem>>, %arg3: memref<1xf32, #tpu.memory_space<smem>>, %arg4: memref<1x128xf32, #tpu.memory_space<vmem>>) attributes {dimension_semantics = [#tpu.dimension_semantics<parallel>], iteration_bounds = array<i64: 1>, scalar_prefetch = 0 : i64, scratch_operands = 0 : i64, tpu.core_type = #tpu.core_type<tc>, window_params = [{transform_indices = @transform_0, window_bounds = array<i64: 1, 1664>}, {pipeline_mode = #tpu.pipeline_mode<synchronous>, transform_indices = @transform_1, window_bounds = array<i64: 1664, 128>}, {transform_indices = @transform_2, window_bounds = array<i64: 1>}, {transform_indices = @transform_3, window_bounds = array<i64: 1, 128>}]} {
    %c0 = arith.constant 0 : index
    %c0_0 = arith.constant 0 : index
    %0 = vector.load %arg1[%c0, %c0_0] : memref<1x1664xf32, #tpu.memory_space<vmem>>, vector<1x1664xf32>
    %c0_1 = arith.constant 0 : index
    %c0_2 = arith.constant 0 : index
    %1 = vector.load %arg2[%c0_1, %c0_2] : memref<1664x128xf32, #tpu.memory_space<vmem>>, vector<1664x128xf32>
    %cst = arith.constant dense<0.000000e+00> : vector<1x128xf32>
    %2 = tpu.matmul %0, %1, %cst {dimension_numbers = #tpu.dot_dimension_numbers<[1], [0], [0], [1], [0, 0, 1, 1], [], []>, precision = #tpu.contract_precision<fp32>} : vector<1x1664xf32>, vector<1664x128xf32>, vector<1x128xf32> -> vector<1x128xf32>
    %c0_3 = arith.constant 0 : index
    %3 = memref.load %arg3[%c0_3] : memref<1xf32, #tpu.memory_space<smem>>
    %4 = vector.broadcast %3 : f32 to vector<1x128xf32>
    %5 = arith.addf %2, %4 : vector<1x128xf32>
    %6 = arith.negf %5 : vector<1x128xf32>
    %7 = math.exp %6 : vector<1x128xf32>
    %cst_4 = arith.constant 1.000000e+00 : f32
    %8 = vector.broadcast %cst_4 : f32 to vector<1x128xf32>
    %9 = arith.addf %8, %7 : vector<1x128xf32>
    %10 = arith.divf %8, %9 : vector<1x128xf32>
    %c0_5 = arith.constant 0 : index
    %c0_6 = arith.constant 0 : index
    %11 = vector.load %arg4[%c0_5, %c0_6] : memref<1x128xf32, #tpu.memory_space<vmem>>, vector<1x128xf32>
    tpu.vector_store %arg4[%c0_5, %c0_6], %10 {strides = array<i32>} : memref<1x128xf32, #tpu.memory_space<vmem>>, vector<1x128xf32>,
    return
  }
  func.func @transform_0(%arg0: i32) -> (i32, i32) {
    %c0_i32 = arith.constant 0 : i32
    %c0_i32_0 = arith.constant 0 : i32
    return %arg0, %c0_i32 : i32, i32
  }
  func.func @transform_1(%arg0: i32) -> (i32, i32) {
    %c0_i32 = arith.constant 0 : i32
    %c0_i32_0 = arith.constant 0 : i32
    %c0_i32_1 = arith.constant 0 : i32
    return %c0_i32, %c0_i32_0 : i32, i32
  }
  func.func @transform_2(%arg0: i32) -> i32 {
    %c0_i32 = arith.constant 0 : i32
    %c0_i32_0 = arith.constant 0 : i32
    return %c0_i32 : i32
  }
  func.func @transform_3(%arg0: i32) -> (i32, i32) {
    %c0_i32 = arith.constant 0 : i32
    %c0_i32_0 = arith.constant 0 : i32
    return %arg0, %c0_i32 : i32, i32
  }
}

</mosaic_0001>

<llo_original>
// kernel: tpu_custom_call.1
$region0: #{tpu_custom_call.1}
  #allocation0 [shape = 'u32[]', space=smem, size = 0x4, offset = 0x4, fixed_abs, tag = 'smem constant byte address 0x4 - core index']
  #allocation1 [shape = 'u32[144,128]{1,0:T(1,128)}', space=vmem, size = 0x12000, scoped, tag = 'internal scratch']
  #allocation2 [shape = 'f32[1]{0:T(128)S(6)}', space=smem, size = 0x200, scoped, tag = 'scoped memory for tpu_custom_call.1']
  %s0 = inlined_call_operand.hbm [shape: f32[1,1664], index: 0, kind: input, shape index: {}]
  %s1 = inlined_call_operand.hbm [shape: f32[1664,128], index: 1, kind: input, shape index: {}]
  %s2 = inlined_call_operand.<no memory space> [shape: f32[1], index: 2, kind: input, shape index: {}]
  %s3 = inlined_call_operand.hbm [shape: f32[1,128], index: 3, kind: output, shape index: {}]
  %s4 = sld [smem:[#allocation0]]
  $region30: #{tpu_custom_call.1} parent=0
    _
  %s6 = ssub.s32 1, %s4
  %s7 = scalar_select 0, %s6, %s4
  %8 = sst [smem:[#allocation2]] %s2
  $region1: #{tpu_custom_call.1} parent=0
    #allocation3 [shape = 'u8[6656]{0}', space=vmem, size = 0x1c00, scoped, tag = 'input window, operand 0, single buffered']
    #allocation4 [shape = 's32[1]{0}', space=sflag, size = 0x4, scoped, tag = 'scoped memory for tpu_custom_call.1']
    #allocation5 [shape = 's32[1]{0}', space=sflag, size = 0x4, scoped, tag = 'scoped memory for tpu_custom_call.1']
    #allocation6 [shape = 'u8[851968]{0}', space=vmem, size = 0xd0000, scoped, tag = 'input window, operand 1, single buffered']
    #allocation7 [shape = 's32[1]{0}', space=sflag, size = 0x4, scoped, tag = 'scoped memory for tpu_custom_call.1']
    #allocation8 [shape = 'u8[512]{0}', space=vmem, size = 0x400, scoped, tag = 'output window, operand 0, single buffered']
    %9 = vsyncpa [#allocation4], 0
    %10 = vsyncpa [#allocation7], 0
    %11 = vsyncpa [#allocation5], 0
    // Predicated region
    $region2: #{tpu_custom_call.1} parent=1 // pred_check
      _
    $region3: #{tpu_custom_call.1} parent=1 // pred_check_branch
      %13 = sbr.rel (0) target = $region5
    $region4: #{tpu_custom_call.1} parent=1 // pred_region
      %s15 = ssub.s32 208, 208
      %16 = vsyncadd [#allocation4], %s15
      %s18 = sshll.u32 [#allocation3], 4
      %s19 = int_to_ptr.vmem [resolvable:$true] %s18
      %21 = dma.hbm_to_vmem [thread:$0]  %s0, 208, %s19, [#allocation4]
    $region5: #{tpu_custom_call.1} parent=1 // pred_fallthru
      _
    // Predicated region
    $region6: #{tpu_custom_call.1} parent=1 // pred_check
      _
    $region7: #{tpu_custom_call.1} parent=1 // pred_check_branch
      %23 = sbr.rel (0) target = $region9
    $region8: #{tpu_custom_call.1} parent=1 // pred_region
      %s25 = ssub.s32 26624, 26624
      %26 = vsyncadd [#allocation7], %s25
      %s27 = sshll.u32 [#allocation6], 4
      %s28 = int_to_ptr.vmem [resolvable:$true] %s27
      %33 = dma.hbm_to_vmem [thread:$0]  %s1, 26624, %s28, [#allocation7], 128, 128, 8
    $region9: #{tpu_custom_call.1} parent=1 // pred_fallthru
      _
    // Predicated region
    $region10: #{tpu_custom_call.1} parent=1 // pred_check
      _
    $region11: #{tpu_custom_call.1} parent=1 // pred_check_branch
      %35 = sbr.rel (0) target = $region13
    $region12: #{tpu_custom_call.1} parent=1 // pred_region
      _
    $region13: #{tpu_custom_call.1} parent=1 // pred_fallthru
      _
    // Predicated region
    $region14: #{tpu_custom_call.1} parent=1 // pred_check
      _
    $region15: #{tpu_custom_call.1} parent=1 // pred_check_branch
      %37 = sbr.rel (0) target = $region17
    $region16: #{tpu_custom_call.1} parent=1 // pred_region
      %38 = dma.done [#allocation4], 208
    $region17: #{tpu_custom_call.1} parent=1 // pred_fallthru
      _
    // Predicated region
    $region18: #{tpu_custom_call.1} parent=1 // pred_check
      _
    $region19: #{tpu_custom_call.1} parent=1 // pred_check_branch
      %40 = sbr.rel (0) target = $region21
    $region20: #{tpu_custom_call.1} parent=1 // pred_region
      %41 = dma.done [#allocation7], 26624
    $region21: #{tpu_custom_call.1} parent=1 // pred_fallthru
      _
    %v42 = vld [vmem:[#allocation3] sm:$0xff]
    %v43 = vld [vmem:[#allocation3 + $0x8] sm:$0x1f]
    %v44 = vld [vmem:[#allocation6] sm:$0xff]
    %v45 = vld [vmem:[#allocation6 + $0x8] sm:$0xff]
    %v46 = vld [vmem:[#allocation6 + $0x10] sm:$0xff]
    %v47 = vld [vmem:[#allocation6 + $0x18] sm:$0xff]
    %v48 = vld [vmem:[#allocation6 + $0x20] sm:$0xff]
    %v49 = vld [vmem:[#allocation6 + $0x28] sm:$0xff]
    %v50 = vld [vmem:[#allocation6 + $0x30] sm:$0xff]
    %v51 = vld [vmem:[#allocation6 + $0x38] sm:$0xff]
    %v52 = vld [vmem:[#allocation6 + $0x40] sm:$0xff]
    %v53 = vld [vmem:[#allocation6 + $0x48] sm:$0xff]
    %v54 = vld [vmem:[#allocation6 + $0x50] sm:$0xff]
    %v55 = vld [vmem:[#allocation6 + $0x58] sm:$0xff]
    %v56 = vld [vmem:[#allocation6 + $0x60] sm:$0xff]
    %v57 = vld [vmem:[#allocation6 + $0x68] sm:$0xff]
    %v58 = vld [vmem:[#allocation6 + $0x70] sm:$0xff]
    %v59 = vld [vmem:[#allocation6 + $0x78] sm:$0xff]
    %v60 = vld [vmem:[#allocation6 + $0x80] sm:$0xff]
    %v61 = vld [vmem:[#allocation6 + $0x88] sm:$0xff]
    %v62 = vld [vmem:[#allocation6 + $0x90] sm:$0xff]
    %v63 = vld [vmem:[#allocation6 + $0x98] sm:$0xff]
    %v64 = vld [vmem:[#allocation6 + $0xa0] sm:$0xff]
    %v65 = vld [vmem:[#allocation6 + $0xa8] sm:$0xff]
    %v66 = vld [vmem:[#allocation6 + $0xb0] sm:$0xff]
    %v67 = vld [vmem:[#allocation6 + $0xb8] sm:$0xff]
    %v68 = vld [vmem:[#allocation6 + $0xc0] sm:$0xff]
    %v69 = vld [vmem:[#allocation6 + $0xc8] sm:$0xff]
    %v70 = vld [vmem:[#allocation6 + $0xd0] sm:$0xff]
    %v71 = vld [vmem:[#allocation6 + $0xd8] sm:$0xff]
    %v72 = vld [vmem:[#allocation6 + $0xe0] sm:$0xff]
    %v73 = vld [vmem:[#allocation6 + $0xe8] sm:$0xff]
    %v74 = vld [vmem:[#allocation6 + $0xf0] sm:$0xff]
    %v75 = vld [vmem:[#allocation6 + $0xf8] sm:$0xff]
    %v76 = vld [vmem:[#allocation6 + $0x100] sm:$0xff]
    %v77 = vld [vmem:[#allocation6 + $0x108] sm:$0xff]
    %v78 = vld [vmem:[#allocation6 + $0x110] sm:$0xff]
    %v79 = vld [vmem:[#allocation6 + $0x118] sm:$0xff]
    %v80 = vld [vmem:[#allocation6 + $0x120] sm:$0xff]
    %v81 = vld [vmem:[#allocation6 + $0x128] sm:$0xff]
    %v82 = vld [vmem:[#allocation6 + $0x130] sm:$0xff]
    %v83 = vld [vmem:[#allocation6 + $0x138] sm:$0xff]
    %v84 = vld [vmem:[#allocation6 + $0x140] sm:$0xff]
    %v85 = vld [vmem:[#allocation6 + $0x148] sm:$0xff]
    %v86 = vld [vmem:[#allocation6 + $0x150] sm:$0xff]
    %v87 = vld [vmem:[#allocation6 + $0x158] sm:$0xff]
    %v88 = vld [vmem:[#allocation6 + $0x160] sm:$0xff]
    %v89 = vld [vmem:[#allocation6 + $0x168] sm:$0xff]
    %v90 = vld [vmem:[#allocation6 + $0x170] sm:$0xff]
    %v91 = vld [vmem:[#allocation6 + $0x178] sm:$0xff]
    %v92 = vld [vmem:[#allocation6 + $0x180] sm:$0xff]
    %v93 = vld [vmem:[#allocation6 + $0x188] sm:$0xff]
    %v94 = vld [vmem:[#allocation6 + $0x190] sm:$0xff]
    %v95 = vld [vmem:[#allocation6 + $0x198] sm:$0xff]
    %v96 = vld [vmem:[#allocation6 + $0x1a0] sm:$0xff]
    %v97 = vld [vmem:[#allocation6 + $0x1a8] sm:$0xff]
    %v98 = vld [vmem:[#allocation6 + $0x1b0] sm:$0xff]
    %v99 = vld [vmem:[#allocation6 + $0x1b8] sm:$0xff]
    %v100 = vld [vmem:[#allocation6 + $0x1c0] sm:$0xff]
    %v101 = vld [vmem:[#allocation6 + $0x1c8] sm:$0xff]
    %v102 = vld [vmem:[#allocation6 + $0x1d0] sm:$0xff]
    %v103 = vld [vmem:[#allocation6 + $0x1d8] sm:$0xff]
    %v104 = vld [vmem:[#allocation6 + $0x1e0] sm:$0xff]
    %v105 = vld [vmem:[#allocation6 + $0x1e8] sm:$0xff]
    %v106 = vld [vmem:[#allocation6 + $0x1f0] sm:$0xff]
    %v107 = vld [vmem:[#allocation6 + $0x1f8] sm:$0xff]
    %v108 = vld [vmem:[#allocation6 + $0x200] sm:$0xff]
    %v109 = vld [vmem:[#allocation6 + $0x208] sm:$0xff]
    %v110 = vld [vmem:[#allocation6 + $0x210] sm:$0xff]
    %v111 = vld [vmem:[#allocation6 + $0x218] sm:$0xff]
    %v112 = vld [vmem:[#allocation6 + $0x220] sm:$0xff]
    %v113 = vld [vmem:[#allocation6 + $0x228] sm:$0xff]
    %v114 = vld [vmem:[#allocation6 + $0x230] sm:$0xff]
    %v115 = vld [vmem:[#allocation6 + $0x238] sm:$0xff]
    %v116 = vld [vmem:[#allocation6 + $0x240] sm:$0xff]
    %v117 = vld [vmem:[#allocation6 + $0x248] sm:$0xff]
    %v118 = vld [vmem:[#allocation6 + $0x250] sm:$0xff]
    %v119 = vld [vmem:[#allocation6 + $0x258] sm:$0xff]
    %v120 = vld [vmem:[#allocation6 + $0x260] sm:$0xff]
    %v121 = vld [vmem:[#allocation6 + $0x268] sm:$0xff]
    %v122 = vld [vmem:[#allocation6 + $0x270] sm:$0xff]
    %v123 = vld [vmem:[#allocation6 + $0x278] sm:$0xff]
    %v124 = vld [vmem:[#allocation6 + $0x280] sm:$0xff]
    %v125 = vld [vmem:[#allocation6 + $0x288] sm:$0xff]
    %v126 = vld [vmem:[#allocation6 + $0x290] sm:$0xff]
    %v127 = vld [vmem:[#allocation6 + $0x298] sm:$0xff]
    %v128 = vld [vmem:[#allocation6 + $0x2a0] sm:$0xff]
    %v129 = vld [vmem:[#allocation6 + $0x2a8] sm:$0xff]
    %v130 = vld [vmem:[#allocation6 + $0x2b0] sm:$0xff]
    %v131 = vld [vmem:[#allocation6 + $0x2b8] sm:$0xff]
    %v132 = vld [vmem:[#allocation6 + $0x2c0] sm:$0xff]
    %v133 = vld [vmem:[#allocation6 + $0x2c8] sm:$0xff]
    %v134 = vld [vmem:[#allocation6 + $0x2d0] sm:$0xff]
    %v135 = vld [vmem:[#allocation6 + $0x2d8] sm:$0xff]
    %v136 = vld [vmem:[#allocation6 + $0x2e0] sm:$0xff]
    %v137 = vld [vmem:[#allocation6 + $0x2e8] sm:$0xff]
    %v138 = vld [vmem:[#allocation6 + $0x2f0] sm:$0xff]
    %v139 = vld [vmem:[#allocation6 + $0x2f8] sm:$0xff]
    %v140 = vld [vmem:[#allocation6 + $0x300] sm:$0xff]
    %v141 = vld [vmem:[#allocation6 + $0x308] sm:$0xff]
    %v142 = vld [vmem:[#allocation6 + $0x310] sm:$0xff]
    %v143 = vld [vmem:[#allocation6 + $0x318] sm:$0xff]
    %v144 = vld [vmem:[#allocation6 + $0x320] sm:$0xff]
    %v145 = vld [vmem:[#allocation6 + $0x328] sm:$0xff]
    %v146 = vld [vmem:[#allocation6 + $0x330] sm:$0xff]
    %v147 = vld [vmem:[#allocation6 + $0x338] sm:$0xff]
    %v148 = vld [vmem:[#allocation6 + $0x340] sm:$0xff]
    %v149 = vld [vmem:[#allocation6 + $0x348] sm:$0xff]
    %v150 = vld [vmem:[#allocation6 + $0x350] sm:$0xff]
    %v151 = vld [vmem:[#allocation6 + $0x358] sm:$0xff]
    %v152 = vld [vmem:[#allocation6 + $0x360] sm:$0xff]
    %v153 = vld [vmem:[#allocation6 + $0x368] sm:$0xff]
    %v154 = vld [vmem:[#allocation6 + $0x370] sm:$0xff]
    %v155 = vld [vmem:[#allocation6 + $0x378] sm:$0xff]
    %v156 = vld [vmem:[#allocation6 + $0x380] sm:$0xff]
    %v157 = vld [vmem:[#allocation6 + $0x388] sm:$0xff]
    %v158 = vld [vmem:[#allocation6 + $0x390] sm:$0xff]
    %v159 = vld [vmem:[#allocation6 + $0x398] sm:$0xff]
    %v160 = vld [vmem:[#allocation6 + $0x3a0] sm:$0xff]
    %v161 = vld [vmem:[#allocation6 + $0x3a8] sm:$0xff]
    %v162 = vld [vmem:[#allocation6 + $0x3b0] sm:$0xff]
    %v163 = vld [vmem:[#allocation6 + $0x3b8] sm:$0xff]
    %v164 = vld [vmem:[#allocation6 + $0x3c0] sm:$0xff]
    %v165 = vld [vmem:[#allocation6 + $0x3c8] sm:$0xff]
    %v166 = vld [vmem:[#allocation6 + $0x3d0] sm:$0xff]
    %v167 = vld [vmem:[#allocation6 + $0x3d8] sm:$0xff]
    %v168 = vld [vmem:[#allocation6 + $0x3e0] sm:$0xff]
    %v169 = vld [vmem:[#allocation6 + $0x3e8] sm:$0xff]
    %v170 = vld [vmem:[#allocation6 + $0x3f0] sm:$0xff]
    %v171 = vld [vmem:[#allocation6 + $0x3f8] sm:$0xff]
    %v172 = vld [vmem:[#allocation6 + $0x400] sm:$0xff]
    %v173 = vld [vmem:[#allocation6 + $0x408] sm:$0xff]
    %v174 = vld [vmem:[#allocation6 + $0x410] sm:$0xff]
    %v175 = vld [vmem:[#allocation6 + $0x418] sm:$0xff]
    %v176 = vld [vmem:[#allocation6 + $0x420] sm:$0xff]
    %v177 = vld [vmem:[#allocation6 + $0x428] sm:$0xff]
    %v178 = vld [vmem:[#allocation6 + $0x430] sm:$0xff]
    %v179 = vld [vmem:[#allocation6 + $0x438] sm:$0xff]
    %v180 = vld [vmem:[#allocation6 + $0x440] sm:$0xff]
    %v181 = vld [vmem:[#allocation6 + $0x448] sm:$0xff]
    %v182 = vld [vmem:[#allocation6 + $0x450] sm:$0xff]
    %v183 = vld [vmem:[#allocation6 + $0x458] sm:$0xff]
    %v184 = vld [vmem:[#allocation6 + $0x460] sm:$0xff]
    %v185 = vld [vmem:[#allocation6 + $0x468] sm:$0xff]
    %v186 = vld [vmem:[#allocation6 + $0x470] sm:$0xff]
    %v187 = vld [vmem:[#allocation6 + $0x478] sm:$0xff]
    %v188 = vld [vmem:[#allocation6 + $0x480] sm:$0xff]
    %v189 = vld [vmem:[#allocation6 + $0x488] sm:$0xff]
    %v190 = vld [vmem:[#allocation6 + $0x490] sm:$0xff]
    %v191 = vld [vmem:[#allocation6 + $0x498] sm:$0xff]
    %v192 = vld [vmem:[#allocation6 + $0x4a0] sm:$0xff]
    %v193 = vld [vmem:[#allocation6 + $0x4a8] sm:$0xff]
    %v194 = vld [vmem:[#allocation6 + $0x4b0] sm:$0xff]
    %v195 = vld [vmem:[#allocation6 + $0x4b8] sm:$0xff]
    %v196 = vld [vmem:[#allocation6 + $0x4c0] sm:$0xff]
    %v197 = vld [vmem:[#allocation6 + $0x4c8] sm:$0xff]
    %v198 = vld [vmem:[#allocation6 + $0x4d0] sm:$0xff]
    %v199 = vld [vmem:[#allocation6 + $0x4d8] sm:$0xff]
    %v200 = vld [vmem:[#allocation6 + $0x4e0] sm:$0xff]
    %v201 = vld [vmem:[#allocation6 + $0x4e8] sm:$0xff]
    %v202 = vld [vmem:[#allocation6 + $0x4f0] sm:$0xff]
    %v203 = vld [vmem:[#allocation6 + $0x4f8] sm:$0xff]
    %v204 = vld [vmem:[#allocation6 + $0x500] sm:$0xff]
    %v205 = vld [vmem:[#allocation6 + $0x508] sm:$0xff]
    %v206 = vld [vmem:[#allocation6 + $0x510] sm:$0xff]
    %v207 = vld [vmem:[#allocation6 + $0x518] sm:$0xff]
    %v208 = vld [vmem:[#allocation6 + $0x520] sm:$0xff]
    %v209 = vld [vmem:[#allocation6 + $0x528] sm:$0xff]
    %v210 = vld [vmem:[#allocation6 + $0x530] sm:$0xff]
    %v211 = vld [vmem:[#allocation6 + $0x538] sm:$0xff]
    %v212 = vld [vmem:[#allocation6 + $0x540] sm:$0xff]
    %v213 = vld [vmem:[#allocation6 + $0x548] sm:$0xff]
    %v214 = vld [vmem:[#allocation6 + $0x550] sm:$0xff]
    %v215 = vld [vmem:[#allocation6 + $0x558] sm:$0xff]
    %v216 = vld [vmem:[#allocation6 + $0x560] sm:$0xff]
    %v217 = vld [vmem:[#allocation6 + $0x568] sm:$0xff]
    %v218 = vld [vmem:[#allocation6 + $0x570] sm:$0xff]
    %v219 = vld [vmem:[#allocation6 + $0x578] sm:$0xff]
    %v220 = vld [vmem:[#allocation6 + $0x580] sm:$0xff]
    %v221 = vld [vmem:[#allocation6 + $0x588] sm:$0xff]
    %v222 = vld [vmem:[#allocation6 + $0x590] sm:$0xff]
    %v223 = vld [vmem:[#allocation6 + $0x598] sm:$0xff]
    %v224 = vld [vmem:[#allocation6 + $0x5a0] sm:$0xff]
    %v225 = vld [vmem:[#allocation6 + $0x5a8] sm:$0xff]
    %v226 = vld [vmem:[#allocation6 + $0x5b0] sm:$0xff]
    %v227 = vld [vmem:[#allocation6 + $0x5b8] sm:$0xff]
    %v228 = vld [vmem:[#allocation6 + $0x5c0] sm:$0xff]
    %v229 = vld [vmem:[#allocation6 + $0x5c8] sm:$0xff]
    %v230 = vld [vmem:[#allocation6 + $0x5d0] sm:$0xff]
    %v231 = vld [vmem:[#allocation6 + $0x5d8] sm:$0xff]
    %v232 = vld [vmem:[#allocation6 + $0x5e0] sm:$0xff]
    %v233 = vld [vmem:[#allocation6 + $0x5e8] sm:$0xff]
    %v234 = vld [vmem:[#allocation6 + $0x5f0] sm:$0xff]
    %v235 = vld [vmem:[#allocation6 + $0x5f8] sm:$0xff]
    %v236 = vld [vmem:[#allocation6 + $0x600] sm:$0xff]
    %v237 = vld [vmem:[#allocation6 + $0x608] sm:$0xff]
    %v238 = vld [vmem:[#allocation6 + $0x610] sm:$0xff]
    %v239 = vld [vmem:[#allocation6 + $0x618] sm:$0xff]
    %v240 = vld [vmem:[#allocation6 + $0x620] sm:$0xff]
    %v241 = vld [vmem:[#allocation6 + $0x628] sm:$0xff]
    %v242 = vld [vmem:[#allocation6 + $0x630] sm:$0xff]
    %v243 = vld [vmem:[#allocation6 + $0x638] sm:$0xff]
    %v244 = vld [vmem:[#allocation6 + $0x640] sm:$0xff]
    %v245 = vld [vmem:[#allocation6 + $0x648] sm:$0xff]
    %v246 = vld [vmem:[#allocation6 + $0x650] sm:$0xff]
    %v247 = vld [vmem:[#allocation6 + $0x658] sm:$0xff]
    %v248 = vld [vmem:[#allocation6 + $0x660] sm:$0xff]
    %v249 = vld [vmem:[#allocation6 + $0x668] sm:$0xff]
    %v250 = vld [vmem:[#allocation6 + $0x670] sm:$0xff]
    %v251 = vld [vmem:[#allocation6 + $0x678] sm:$0xff]
    %s252 = sld [smem:[#allocation2]]
    %v253 = vstv %s252
    %v256 = vlaneseq
    %v257 = vshrl.u32 %v256, 7
    %v258 = vsub.s32 0, %v257
    %v259 = vrot.slane %v42, %v258
    %v260 = vlaneseq
    %v261 = vshrl.u32 %v260, 7
    %v262 = vsub.s32 1, %v261
    %v263 = vrot.slane %v42, %v262
    %v264 = vlaneseq
    %v265 = vshrl.u32 %v264, 7
    %v266 = vsub.s32 2, %v265
    %v267 = vrot.slane %v42, %v266
    %v268 = vlaneseq
    %v269 = vshrl.u32 %v268, 7
    %v270 = vsub.s32 3, %v269
    %v271 = vrot.slane %v42, %v270
    %v272 = vlaneseq
    %v273 = vshrl.u32 %v272, 7
    %v274 = vsub.s32 4, %v273
    %v275 = vrot.slane %v42, %v274
    %v276 = vlaneseq
    %v277 = vshrl.u32 %v276, 7
    %v278 = vsub.s32 5, %v277
    %v279 = vrot.slane %v42, %v278
    %v280 = vlaneseq
    %v281 = vshrl.u32 %v280, 7
    %v282 = vsub.s32 6, %v281
    %v283 = vrot.slane %v42, %v282
    %v284 = vlaneseq
    %v285 = vshrl.u32 %v284, 7
    %v286 = vsub.s32 7, %v285
    %v287 = vrot.slane %v42, %v286
    %v288 = vlaneseq
    %v289 = vshrl.u32 %v288, 7
    %v290 = vsub.s32 0, %v289
    %v291 = vrot.slane %v43, %v290
    %v292 = vlaneseq
    %v293 = vshrl.u32 %v292, 7
    %v294 = vsub.s32 1, %v293
    %v295 = vrot.slane %v43, %v294
    %v296 = vlaneseq
    %v297 = vshrl.u32 %v296, 7
    %v298 = vsub.s32 2, %v297
    %v299 = vrot.slane %v43, %v298
    %v300 = vlaneseq
    %v301 = vshrl.u32 %v300, 7
    %v302 = vsub.s32 3, %v301
    %v303 = vrot.slane %v43, %v302
    %v304 = vlaneseq
    %v305 = vshrl.u32 %v304, 7
    %v306 = vsub.s32 4, %v305
    %v307 = vrot.slane %v43, %v306
    %321 = vmatprep.subr.mxu0 0.0
    %v322 = vand.u32 %v44, 4294901760
    %323 = vmatpush1.msra.mxu0 %v322
    %324 = vmatprep.subr.mxu0 0.0
    %v325 = vand.u32 %v45, 4294901760
    %326 = vmatpush1.msra.mxu0 %v325
    %327 = vmatprep.subr.mxu0 0.0
    %v328 = vand.u32 %v46, 4294901760
    %329 = vmatpush1.msra.mxu0 %v328
    %330 = vmatprep.subr.mxu0 0.0
    %v331 = vand.u32 %v47, 4294901760
    %332 = vmatpush1.msra.mxu0 %v331
    %333 = vmatprep.subr.mxu0 0.0
    %v334 = vand.u32 %v48, 4294901760
    %335 = vmatpush1.msra.mxu0 %v334
    %336 = vmatprep.subr.mxu0 0.0
    %v337 = vand.u32 %v49, 4294901760
    %338 = vmatpush1.msra.mxu0 %v337
    %339 = vmatprep.subr.mxu0 0.0
    %v340 = vand.u32 %v50, 4294901760
    %341 = vmatpush1.msra.mxu0 %v340
    %342 = vmatprep.subr.mxu0 0.0
    %v343 = vand.u32 %v51, 4294901760
    %344 = vmatpush1.msra.mxu0 %v343
    %345 = vmatprep.subr.mxu0 0.0
    %v346 = vand.u32 %v52, 4294901760
    %347 = vmatpush1.msra.mxu0 %v346
    %348 = vmatprep.subr.mxu0 0.0
    %v349 = vand.u32 %v53, 4294901760
    %350 = vmatpush1.msra.mxu0 %v349
    %351 = vmatprep.subr.mxu0 0.0
    %v352 = vand.u32 %v54, 4294901760
    %353 = vmatpush1.msra.mxu0 %v352
    %354 = vmatprep.subr.mxu0 0.0
    %v355 = vand.u32 %v55, 4294901760
    %356 = vmatpush1.msra.mxu0 %v355
    %357 = vmatprep.subr.mxu0 0.0
    %v358 = vand.u32 %v56, 4294901760
    %359 = vmatpush1.msra.mxu0 %v358
    %360 = vmatprep.subr.mxu0 0.0
    %v361 = vand.u32 %v57, 4294901760
    %362 = vmatpush1.msra.mxu0 %v361
    %363 = vmatprep.subr.mxu0 0.0
    %v364 = vand.u32 %v58, 4294901760
    %365 = vmatpush1.msra.mxu0 %v364
    %366 = vmatprep.subr.mxu0 0.0
    %v367 = vand.u32 %v59, 4294901760
    %368 = vmatpush1.msra.mxu0 %v367
    %369 = vmatprep.subr.mxu0 0.0
    %v370 = vand.u32 %v60, 4294901760
    %371 = vmatpush1.msra.mxu0 %v370
    %372 = vmatprep.subr.mxu0 0.0
    %v373 = vand.u32 %v61, 4294901760
    %374 = vmatpush1.msra.mxu0 %v373
    %375 = vmatprep.subr.mxu0 0.0
    %v376 = vand.u32 %v62, 4294901760
    %377 = vmatpush1.msra.mxu0 %v376
    %378 = vmatprep.subr.mxu0 0.0
    %v379 = vand.u32 %v63, 4294901760
    %380 = vmatpush1.msra.mxu0 %v379
    %381 = vmatprep.subr.mxu0 0.0
    %v382 = vand.u32 %v64, 4294901760
    %383 = vmatpush1.msra.mxu0 %v382
    %384 = vmatprep.subr.mxu0 0.0
    %v385 = vand.u32 %v65, 4294901760
    %386 = vmatpush1.msra.mxu0 %v385
    %387 = vmatprep.subr.mxu0 0.0
    %v388 = vand.u32 %v66, 4294901760
    %389 = vmatpush1.msra.mxu0 %v388
    %390 = vmatprep.subr.mxu0 0.0
    %v391 = vand.u32 %v67, 4294901760
    %392 = vmatpush1.msra.mxu0 %v391
    %393 = vmatprep.subr.mxu0 0.0
    %v394 = vand.u32 %v68, 4294901760
    %395 = vmatpush1.msra.mxu0 %v394
    %396 = vmatprep.subr.mxu0 0.0
    %v397 = vand.u32 %v69, 4294901760
    %398 = vmatpush1.msra.mxu0 %v397
    %399 = vmatprep.subr.mxu0 0.0
    %v400 = vand.u32 %v70, 4294901760
    %401 = vmatpush1.msra.mxu0 %v400
    %402 = vmatprep.subr.mxu0 0.0
    %v403 = vand.u32 %v71, 4294901760
    %404 = vmatpush1.msra.mxu0 %v403
    %405 = vmatprep.subr.mxu0 0.0
    %v406 = vand.u32 %v72, 4294901760
    %407 = vmatpush1.msra.mxu0 %v406
    %408 = vmatprep.subr.mxu0 0.0
    %v409 = vand.u32 %v73, 4294901760
    %410 = vmatpush1.msra.mxu0 %v409
    %411 = vmatprep.subr.mxu0 0.0
    %v412 = vand.u32 %v74, 4294901760
    %413 = vmatpush1.msra.mxu0 %v412
    %414 = vmatprep.subr.mxu0 0.0
    %v415 = vand.u32 %v75, 4294901760
    %416 = vmatpush1.msra.mxu0 %v415
    %v417 = vand.u32 %v263, 4294901760
    %v418 = vsub.f32 %v263, %v417
    %v419 = vand.u32 %v418, 4294901760
    %v420 = vsub.f32 %v418, %v419
    %v421 = vand.u32 %v420, 4294901760
    %422 = vmatprep.mubr.f32.mxu0 %v421
    %v423 = vand.u32 %v259, 4294901760
    %v424 = vsub.f32 %v259, %v423
    %v425 = vand.u32 %v424, 4294901760
    %v426 = vsub.f32 %v424, %v425
    %v427 = vand.u32 %v426, 4294901760
    %428 = vmatmul.mubr.f32.gmra.mrb[0].mxu0 %v427
    %v429 = vpop.f32.mrb[0].mxu0
    %v430 = vadd.f32 %v253, %v429
    %v431 = vpop.f32.mrb[0].mxu0
    %432 = vdwg.mxu0
    %433 = vmatprep.subr.mxu0 0.0
    %v434 = vand.u32 %v44, 4294901760
    %v435 = vsub.f32 %v44, %v434
    %v436 = vand.u32 %v435, 4294901760
    %v437 = vsub.f32 %v435, %v436
    %v438 = vand.u32 %v437, 4294901760
    %439 = vmatpush1.msra.mxu0 %v438
    %440 = vmatprep.subr.mxu0 0.0
    %v441 = vand.u32 %v45, 4294901760
    %v442 = vsub.f32 %v45, %v441
    %v443 = vand.u32 %v442, 4294901760
    %v444 = vsub.f32 %v442, %v443
    %v445 = vand.u32 %v444, 4294901760
    %446 = vmatpush1.msra.mxu0 %v445
    %447 = vmatprep.subr.mxu0 0.0
    %v448 = vand.u32 %v46, 4294901760
    %v449 = vsub.f32 %v46, %v448
    %v450 = vand.u32 %v449, 4294901760
    %v451 = vsub.f32 %v449, %v450
    %v452 = vand.u32 %v451, 4294901760
    %453 = vmatpush1.msra.mxu0 %v452
    %454 = vmatprep.subr.mxu0 0.0
    %v455 = vand.u32 %v47, 4294901760
    %v456 = vsub.f32 %v47, %v455
    %v457 = vand.u32 %v456, 4294901760
    %v458 = vsub.f32 %v456, %v457
    %v459 = vand.u32 %v458, 4294901760
    %460 = vmatpush1.msra.mxu0 %v459
    %461 = vmatprep.subr.mxu0 0.0
    %v462 = vand.u32 %v48, 4294901760
    %v463 = vsub.f32 %v48, %v462
    %v464 = vand.u32 %v463, 4294901760
    %v465 = vsub.f32 %v463, %v464
    %v466 = vand.u32 %v465, 4294901760
    %467 = vmatpush1.msra.mxu0 %v466
    %468 = vmatprep.subr.mxu0 0.0
    %v469 = vand.u32 %v49, 4294901760
    %v470 = vsub.f32 %v49, %v469
    %v471 = vand.u32 %v470, 4294901760
    %v472 = vsub.f32 %v470, %v471
    %v473 = vand.u32 %v472, 4294901760
    %474 = vmatpush1.msra.mxu0 %v473
    %475 = vmatprep.subr.mxu0 0.0
    %v476 = vand.u32 %v50, 4294901760
    %v477 = vsub.f32 %v50, %v476
    %v478 = vand.u32 %v477, 4294901760
    %v479 = vsub.f32 %v477, %v478
    %v480 = vand.u32 %v479, 4294901760
    %481 = vmatpush1.msra.mxu0 %v480
    %482 = vmatprep.subr.mxu0 0.0
    %v483 = vand.u32 %v51, 4294901760
    %v484 = vsub.f32 %v51, %v483
    %v485 = vand.u32 %v484, 4294901760
    %v486 = vsub.f32 %v484, %v485
    %v487 = vand.u32 %v486, 4294901760
    %488 = vmatpush1.msra.mxu0 %v487
    %489 = vmatprep.subr.mxu0 0.0
    %v490 = vand.u32 %v52, 4294901760
    %v491 = vsub.f32 %v52, %v490
    %v492 = vand.u32 %v491, 4294901760
    %v493 = vsub.f32 %v491, %v492
    %v494 = vand.u32 %v493, 4294901760
    %495 = vmatpush1.msra.mxu0 %v494
    %496 = vmatprep.subr.mxu0 0.0
    %v497 = vand.u32 %v53, 4294901760
    %v498 = vsub.f32 %v53, %v497
    %v499 = vand.u32 %v498, 4294901760
    %v500 = vsub.f32 %v498, %v499
    %v501 = vand.u32 %v500, 4294901760
    %502 = vmatpush1.msra.mxu0 %v501
    %503 = vmatprep.subr.mxu0 0.0
    %v504 = vand.u32 %v54, 4294901760
    %v505 = vsub.f32 %v54, %v504
    %v506 = vand.u32 %v505, 4294901760
    %v507 = vsub.f32 %v505, %v506
    %v508 = vand.u32 %v507, 4294901760
    %509 = vmatpush1.msra.mxu0 %v508
    %510 = vmatprep.subr.mxu0 0.0
    %v511 = vand.u32 %v55, 4294901760
    %v512 = vsub.f32 %v55, %v511
    %v513 = vand.u32 %v512, 4294901760
    %v514 = vsub.f32 %v512, %v513
    %v515 = vand.u32 %v514, 4294901760
    %516 = vmatpush1.msra.mxu0 %v515
    %517 = vmatprep.subr.mxu0 0.0
    %v518 = vand.u32 %v56, 4294901760
    %v519 = vsub.f32 %v56, %v518
    %v520 = vand.u32 %v519, 4294901760
    %v521 = vsub.f32 %v519, %v520
    %v522 = vand.u32 %v521, 4294901760
    %523 = vmatpush1.msra.mxu0 %v522
    %524 = vmatprep.subr.mxu0 0.0
    %v525 = vand.u32 %v57, 4294901760
    %v526 = vsub.f32 %v57, %v525
    %v527 = vand.u32 %v526, 4294901760
    %v528 = vsub.f32 %v526, %v527
    %v529 = vand.u32 %v528, 4294901760
    %530 = vmatpush1.msra.mxu0 %v529
    %531 = vmatprep.subr.mxu0 0.0
    %v532 = vand.u32 %v58, 4294901760
    %v533 = vsub.f32 %v58, %v532
    %v534 = vand.u32 %v533, 4294901760
    %v535 = vsub.f32 %v533, %v534
    %v536 = vand.u32 %v535, 4294901760
    %537 = vmatpush1.msra.mxu0 %v536
    %538 = vmatprep.subr.mxu0 0.0
    %v539 = vand.u32 %v59, 4294901760
    %v540 = vsub.f32 %v59, %v539
    %v541 = vand.u32 %v540, 4294901760
    %v542 = vsub.f32 %v540, %v541
    %v543 = vand.u32 %v542, 4294901760
    %544 = vmatpush1.msra.mxu0 %v543
    %545 = vmatprep.subr.mxu0 0.0
    %v546 = vand.u32 %v60, 4294901760
    %v547 = vsub.f32 %v60, %v546
    %v548 = vand.u32 %v547, 4294901760
    %v549 = vsub.f32 %v547, %v548
    %v550 = vand.u32 %v549, 4294901760
    %551 = vmatpush1.msra.mxu0 %v550
    %552 = vmatprep.subr.mxu0 0.0
    %v553 = vand.u32 %v61, 4294901760
    %v554 = vsub.f32 %v61, %v553
    %v555 = vand.u32 %v554, 4294901760
    %v556 = vsub.f32 %v554, %v555
    %v557 = vand.u32 %v556, 4294901760
    %558 = vmatpush1.msra.mxu0 %v557
    %559 = vmatprep.subr.mxu0 0.0
    %v560 = vand.u32 %v62, 4294901760
    %v561 = vsub.f32 %v62, %v560
    %v562 = vand.u32 %v561, 4294901760
    %v563 = vsub.f32 %v561, %v562
    %v564 = vand.u32 %v563, 4294901760
    %565 = vmatpush1.msra.mxu0 %v564
    %566 = vmatprep.subr.mxu0 0.0
    %v567 = vand.u32 %v63, 4294901760
    %v568 = vsub.f32 %v63, %v567
    %v569 = vand.u32 %v568, 4294901760
    %v570 = vsub.f32 %v568, %v569
    %v571 = vand.u32 %v570, 4294901760
    %572 = vmatpush1.msra.mxu0 %v571
    %573 = vmatprep.subr.mxu0 0.0
    %v574 = vand.u32 %v64, 4294901760
    %v575 = vsub.f32 %v64, %v574
    %v576 = vand.u32 %v575, 4294901760
    %v577 = vsub.f32 %v575, %v576
    %v578 = vand.u32 %v577, 4294901760
    %579 = vmatpush1.msra.mxu0 %v578
    %580 = vmatprep.subr.mxu0 0.0
    %v581 = vand.u32 %v65, 4294901760
    %v582 = vsub.f32 %v65, %v581
    %v583 = vand.u32 %v582, 4294901760
    %v584 = vsub.f32 %v582, %v583
    %v585 = vand.u32 %v584, 4294901760
    %586 = vmatpush1.msra.mxu0 %v585
    %587 = vmatprep.subr.mxu0 0.0
    %v588 = vand.u32 %v66, 4294901760
    %v589 = vsub.f32 %v66, %v588
    %v590 = vand.u32 %v589, 4294901760
    %v591 = vsub.f32 %v589, %v590
    %v592 = vand.u32 %v591, 4294901760
    %593 = vmatpush1.msra.mxu0 %v592
    %594 = vmatprep.subr.mxu0 0.0
    %v595 = vand.u32 %v67, 4294901760
    %v596 = vsub.f32 %v67, %v595
    %v597 = vand.u32 %v596, 4294901760
    %v598 = vsub.f32 %v596, %v597
    %v599 = vand.u32 %v598, 4294901760
    %600 = vmatpush1.msra.mxu0 %v599
    %601 = vmatprep.subr.mxu0 0.0
    %v602 = vand.u32 %v68, 4294901760
    %v603 = vsub.f32 %v68, %v602
    %v604 = vand.u32 %v603, 4294901760
    %v605 = vsub.f32 %v603, %v604
    %v606 = vand.u32 %v605, 4294901760
    %607 = vmatpush1.msra.mxu0 %v606
    %608 = vmatprep.subr.mxu0 0.0
    %v609 = vand.u32 %v69, 4294901760
    %v610 = vsub.f32 %v69, %v609
    %v611 = vand.u32 %v610, 4294901760
    %v612 = vsub.f32 %v610, %v611
    %v613 = vand.u32 %v612, 4294901760
    %614 = vmatpush1.msra.mxu0 %v613
    %615 = vmatprep.subr.mxu0 0.0
    %v616 = vand.u32 %v70, 4294901760
    %v617 = vsub.f32 %v70, %v616
    %v618 = vand.u32 %v617, 4294901760
    %v619 = vsub.f32 %v617, %v618
    %v620 = vand.u32 %v619, 4294901760
    %621 = vmatpush1.msra.mxu0 %v620
    %622 = vmatprep.subr.mxu0 0.0
    %v623 = vand.u32 %v71, 4294901760
    %v624 = vsub.f32 %v71, %v623
    %v625 = vand.u32 %v624, 4294901760
    %v626 = vsub.f32 %v624, %v625
    %v627 = vand.u32 %v626, 4294901760
    %628 = vmatpush1.msra.mxu0 %v627
    %629 = vmatprep.subr.mxu0 0.0
    %v630 = vand.u32 %v72, 4294901760
    %v631 = vsub.f32 %v72, %v630
    %v632 = vand.u32 %v631, 4294901760
    %v633 = vsub.f32 %v631, %v632
    %v634 = vand.u32 %v633, 4294901760
    %635 = vmatpush1.msra.mxu0 %v634
    %636 = vmatprep.subr.mxu0 0.0
    %v637 = vand.u32 %v73, 4294901760
    %v638 = vsub.f32 %v73, %v637
    %v639 = vand.u32 %v638, 4294901760
    %v640 = vsub.f32 %v638, %v639
    %v641 = vand.u32 %v640, 4294901760
    %642 = vmatpush1.msra.mxu0 %v641
    %643 = vmatprep.subr.mxu0 0.0
    %v644 = vand.u32 %v74, 4294901760
    %v645 = vsub.f32 %v74, %v644
    %v646 = vand.u32 %v645, 4294901760
    %v647 = vsub.f32 %v645, %v646
    %v648 = vand.u32 %v647, 4294901760
    %649 = vmatpush1.msra.mxu0 %v648
    %650 = vmatprep.subr.mxu0 0.0
    %v651 = vand.u32 %v75, 4294901760
    %v652 = vsub.f32 %v75, %v651
    %v653 = vand.u32 %v652, 4294901760
    %v654 = vsub.f32 %v652, %v653
    %v655 = vand.u32 %v654, 4294901760
    %656 = vmatpush1.msra.mxu0 %v655
    %v657 = vand.u32 %v263, 4294901760
    %658 = vmatprep.mubr.f32.mxu0 %v657
    %v659 = vand.u32 %v259, 4294901760
    %660 = vmatmul.mubr.f32.gmra.mrb[0].mxu0 %v659
    %v661 = vpop.f32.mrb[0].mxu0
    %v662 = vadd.f32 %v430, %v661
    %v663 = vpop.f32.mrb[0].mxu0
    %664 = vdwg.mxu0
    %665 = vmatprep.subr.mxu0 0.0
    %v666 = vand.u32 %v44, 4294901760
    %v667 = vsub.f32 %v44, %v666
    %668 = vmatpush1.msra.mxu0 %v667
    %669 = vmatprep.subr.mxu0 0.0
    %v670 = vand.u32 %v45, 4294901760
    %v671 = vsub.f32 %v45, %v670
    %672 = vmatpush1.msra.mxu0 %v671
    %673 = vmatprep.subr.mxu0 0.0
    %v674 = vand.u32 %v46, 4294901760
    %v675 = vsub.f32 %v46, %v674
    %676 = vmatpush1.msra.mxu0 %v675
    %677 = vmatprep.subr.mxu0 0.0
    %v678 = vand.u32 %v47, 4294901760
    %v679 = vsub.f32 %v47, %v678
    %680 = vmatpush1.msra.mxu0 %v679
    %681 = vmatprep.subr.mxu0 0.0
    %v682 = vand.u32 %v48, 4294901760
    %v683 = vsub.f32 %v48, %v682
    %684 = vmatpush1.msra.mxu0 %v683
    %685 = vmatprep.subr.mxu0 0.0
    %v686 = vand.u32 %v49, 4294901760
    %v687 = vsub.f32 %v49, %v686
    %688 = vmatpush1.msra.mxu0 %v687
    %689 = vmatprep.subr.mxu0 0.0
    %v690 = vand.u32 %v50, 4294901760
    %v691 = vsub.f32 %v50, %v690
    %692 = vmatpush1.msra.mxu0 %v691
    %693 = vmatprep.subr.mxu0 0.0
    %v694 = vand.u32 %v51, 4294901760
    %v695 = vsub.f32 %v51, %v694
    %696 = vmatpush1.msra.mxu0 %v695
    %697 = vmatprep.subr.mxu0 0.0
    %v698 = vand.u32 %v52, 4294901760
    %v699 = vsub.f32 %v52, %v698
    %700 = vmatpush1.msra.mxu0 %v699
    %701 = vmatprep.subr.mxu0 0.0
    %v702 = vand.u32 %v53, 4294901760
    %v703 = vsub.f32 %v53, %v702
    %704 = vmatpush1.msra.mxu0 %v703
    %705 = vmatprep.subr.mxu0 0.0
    %v706 = vand.u32 %v54, 4294901760
    %v707 = vsub.f32 %v54, %v706
    %708 = vmatpush1.msra.mxu0 %v707
    %709 = vmatprep.subr.mxu0 0.0
    %v710 = vand.u32 %v55, 4294901760
    %v711 = vsub.f32 %v55, %v710
    %712 = vmatpush1.msra.mxu0 %v711
    %713 = vmatprep.subr.mxu0 0.0
    %v714 = vand.u32 %v56, 4294901760
    %v715 = vsub.f32 %v56, %v714
    %716 = vmatpush1.msra.mxu0 %v715
    %717 = vmatprep.subr.mxu0 0.0
    %v718 = vand.u32 %v57, 4294901760
    %v719 = vsub.f32 %v57, %v718
    %720 = vmatpush1.msra.mxu0 %v719
    %721 = vmatprep.subr.mxu0 0.0
    %v722 = vand.u32 %v58, 4294901760
    %v723 = vsub.f32 %v58, %v722
    %724 = vmatpush1.msra.mxu0 %v723
    %725 = vmatprep.subr.mxu0 0.0
    %v726 = vand.u32 %v59, 4294901760
    %v727 = vsub.f32 %v59, %v726
    %728 = vmatpush1.msra.mxu0 %v727
    %729 = vmatprep.subr.mxu0 0.0
    %v730 = vand.u32 %v60, 4294901760
    %v731 = vsub.f32 %v60, %v730
    %732 = vmatpush1.msra.mxu0 %v731
    %733 = vmatprep.subr.mxu0 0.0
    %v734 = vand.u32 %v61, 4294901760
    %v735 = vsub.f32 %v61, %v734
    %736 = vmatpush1.msra.mxu0 %v735
    %737 = vmatprep.subr.mxu0 0.0
    %v738 = vand.u32 %v62, 4294901760
    %v739 = vsub.f32 %v62, %v738
    %740 = vmatpush1.msra.mxu0 %v739
    %741 = vmatprep.subr.mxu0 0.0
    %v742 = vand.u32 %v63, 4294901760
    %v743 = vsub.f32 %v63, %v742
    %744 = vmatpush1.msra.mxu0 %v743
    %745 = vmatprep.subr.mxu0 0.0
    %v746 = vand.u32 %v64, 4294901760
    %v747 = vsub.f32 %v64, %v746
    %748 = vmatpush1.msra.mxu0 %v747
    %749 = vmatprep.subr.mxu0 0.0
    %v750 = vand.u32 %v65, 4294901760
    %v751 = vsub.f32 %v65, %v750
    %752 = vmatpush1.msra.mxu0 %v751
    %753 = vmatprep.subr.mxu0 0.0
    %v754 = vand.u32 %v66, 4294901760
    %v755 = vsub.f32 %v66, %v754
    %756 = vmatpush1.msra.mxu0 %v755
    %757 = vmatprep.subr.mxu0 0.0
    %v758 = vand.u32 %v67, 4294901760
    %v759 = vsub.f32 %v67, %v758
    %760 = vmatpush1.msra.mxu0 %v759
    %761 = vmatprep.subr.mxu0 0.0
    %v762 = vand.u32 %v68, 4294901760
    %v763 = vsub.f32 %v68, %v762
    %764 = vmatpush1.msra.mxu0 %v763
    %765 = vmatprep.subr.mxu0 0.0
    %v766 = vand.u32 %v69, 4294901760
    %v767 = vsub.f32 %v69, %v766
    %768 = vmatpush1.msra.mxu0 %v767
    %769 = vmatprep.subr.mxu0 0.0
    %v770 = vand.u32 %v70, 4294901760
    %v771 = vsub.f32 %v70, %v770
    %772 = vmatpush1.msra.mxu0 %v771
    %773 = vmatprep.subr.mxu0 0.0
    %v774 = vand.u32 %v71, 4294901760
    %v775 = vsub.f32 %v71, %v774
    %776 = vmatpush1.msra.mxu0 %v775
    %777 = vmatprep.subr.mxu0 0.0
    %v778 = vand.u32 %v72, 4294901760
    %v779 = vsub.f32 %v72, %v778
    %780 = vmatpush1.msra.mxu0 %v779
    %781 = vmatprep.subr.mxu0 0.0
    %v782 = vand.u32 %v73, 4294901760
    %v783 = vsub.f32 %v73, %v782
    %784 = vmatpush1.msra.mxu0 %v783
    %785 = vmatprep.subr.mxu0 0.0
    %v786 = vand.u32 %v74, 4294901760
    %v787 = vsub.f32 %v74, %v786
    %788 = vmatpush1.msra.mxu0 %v787
    %789 = vmatprep.subr.mxu0 0.0
    %v790 = vand.u32 %v75, 4294901760
    %v791 = vsub.f32 %v75, %v790
    %792 = vmatpush1.msra.mxu0 %v791
    %v793 = vand.u32 %v263, 4294901760
    %v794 = vsub.f32 %v263, %v793
    %795 = vmatprep.mubr.f32.mxu0 %v794
    %v796 = vand.u32 %v259, 4294901760
    %v797 = vsub.f32 %v259, %v796
    %798 = vmatmul.mubr.f32.gmra.mrb[0].mxu0 %v797
    %v799 = vpop.f32.mrb[0].mxu0
    %v800 = vadd.f32 %v662, %v799
    %v801 = vpop.f32.mrb[0].mxu0
    %802 = vdwg.mxu0
    %803 = vmatprep.subr.mxu0 0.0
    %v804 = vand.u32 %v44, 4294901760
    %805 = vmatpush1.msra.mxu0 %v804
    %806 = vmatprep.subr.mxu0 0.0
    %v807 = vand.u32 %v45, 4294901760
    %808 = vmatpush1.msra.mxu0 %v807
    %809 = vmatprep.subr.mxu0 0.0
    %v810 = vand.u32 %v46, 4294901760
    %811 = vmatpush1.msra.mxu0 %v810
    %812 = vmatprep.subr.mxu0 0.0
    %v813 = vand.u32 %v47, 4294901760
    %814 = vmatpush1.msra.mxu0 %v813
    %815 = vmatprep.subr.mxu0 0.0
    %v816 = vand.u32 %v48, 4294901760
    %817 = vmatpush1.msra.mxu0 %v816
    %818 = vmatprep.subr.mxu0 0.0
    %v819 = vand.u32 %v49, 4294901760
    %820 = vmatpush1.msra.mxu0 %v819
    %821 = vmatprep.subr.mxu0 0.0
    %v822 = vand.u32 %v50, 4294901760
    %823 = vmatpush1.msra.mxu0 %v822
    %824 = vmatprep.subr.mxu0 0.0
    %v825 = vand.u32 %v51, 4294901760
    %826 = vmatpush1.msra.mxu0 %v825
    %827 = vmatprep.subr.mxu0 0.0
    %v828 = vand.u32 %v52, 4294901760
    %829 = vmatpush1.msra.mxu0 %v828
    %830 = vmatprep.subr.mxu0 0.0
    %v831 = vand.u32 %v53, 4294901760
    %832 = vmatpush1.msra.mxu0 %v831
    %833 = vmatprep.subr.mxu0 0.0
    %v834 = vand.u32 %v54, 4294901760
    %835 = vmatpush1.msra.mxu0 %v834
    %836 = vmatprep.subr.mxu0 0.0
    %v837 = vand.u32 %v55, 4294901760
    %838 = vmatpush1.msra.mxu0 %v837
    %839 = vmatprep.subr.mxu0 0.0
    %v840 = vand.u32 %v56, 4294901760
    %841 = vmatpush1.msra.mxu0 %v840
    %842 = vmatprep.subr.mxu0 0.0
    %v843 = vand.u32 %v57, 4294901760
    %844 = vmatpush1.msra.mxu0 %v843
    %845 = vmatprep.subr.mxu0 0.0
    %v846 = vand.u32 %v58, 4294901760
    %847 = vmatpush1.msra.mxu0 %v846
    %848 = vmatprep.subr.mxu0 0.0
    %v849 = vand.u32 %v59, 4294901760
    %850 = vmatpush1.msra.mxu0 %v849
    %851 = vmatprep.subr.mxu0 0.0
    %v852 = vand.u32 %v60, 4294901760
    %853 = vmatpush1.msra.mxu0 %v852
    %854 = vmatprep.subr.mxu0 0.0
    %v855 = vand.u32 %v61, 4294901760
    %856 = vmatpush1.msra.mxu0 %v855
    %857 = vmatprep.subr.mxu0 0.0
    %v858 = vand.u32 %v62, 4294901760
    %859 = vmatpush1.msra.mxu0 %v858
    %860 = vmatprep.subr.mxu0 0.0
    %v861 = vand.u32 %v63, 4294901760
    %862 = vmatpush1.msra.mxu0 %v861
    %863 = vmatprep.subr.mxu0 0.0
    %v864 = vand.u32 %v64, 4294901760
    %865 = vmatpush1.msra.mxu0 %v864
    %866 = vmatprep.subr.mxu0 0.0
    %v867 = vand.u32 %v65, 4294901760
    %868 = vmatpush1.msra.mxu0 %v867
    %869 = vmatprep.subr.mxu0 0.0
    %v870 = vand.u32 %v66, 4294901760
    %871 = vmatpush1.msra.mxu0 %v870
    %872 = vmatprep.subr.mxu0 0.0
    %v873 = vand.u32 %v67, 4294901760
    %874 = vmatpush1.msra.mxu0 %v873
    %875 = vmatprep.subr.mxu0 0.0
    %v876 = vand.u32 %v68, 4294901760
    %877 = vmatpush1.msra.mxu0 %v876
    %878 = vmatprep.subr.mxu0 0.0
    %v879 = vand.u32 %v69, 4294901760
    %880 = vmatpush1.msra.mxu0 %v879
    %881 = vmatprep.subr.mxu0 0.0
    %v882 = vand.u32 %v70, 4294901760
    %883 = vmatpush1.msra.mxu0 %v882
    %884 = vmatprep.subr.mxu0 0.0
    %v885 = vand.u32 %v71, 4294901760
    %886 = vmatpush1.msra.mxu0 %v885
    %887 = vmatprep.subr.mxu0 0.0
    %v888 = vand.u32 %v72, 4294901760
    %889 = vmatpush1.msra.mxu0 %v888
    %890 = vmatprep.subr.mxu0 0.0
    %v891 = vand.u32 %v73, 4294901760
    %892 = vmatpush1.msra.mxu0 %v891
    %893 = vmatprep.subr.mxu0 0.0
    %v894 = vand.u32 %v74, 4294901760
    %895 = vmatpush1.msra.mxu0 %v894
    %896 = vmatprep.subr.mxu0 0.0
    %v897 = vand.u32 %v75, 4294901760
    %898 = vmatpush1.msra.mxu0 %v897
    %v899 = vand.u32 %v263, 4294901760
    %v900 = vsub.f32 %v263, %v899
    %v901 = vand.u32 %v900, 4294901760
    %902 = vmatprep.mubr.f32.mxu0 %v901
    %v903 = vand.u32 %v259, 4294901760
    %v904 = vsub.f32 %v259, %v903
    %v905 = vand.u32 %v904, 4294901760
    %906 = vmatmul.mubr.f32.gmra.mrb[0].mxu0 %v905
    %v907 = vpop.f32.mrb[0].mxu0
    %v908 = vadd.f32 %v800, %v907
    %v909 = vpop.f32.mrb[0].mxu0
    %910 = vdwg.mxu0
    %911 = vmatprep.subr.mxu0 0.0
    %v912 = vand.u32 %v44, 4294901760
    %v913 = vsub.f32 %v44, %v912
    %v914 = vand.u32 %v913, 4294901760
    %915 = vmatpush1.msra.mxu0 %v914
    %916 = vmatprep.subr.mxu0 0.0
    %v917 = vand.u32 %v45, 4294901760
    %v918 = vsub.f32 %v45, %v917
    %v919 = vand.u32 %v918, 4294901760
    %920 = vmatpush1.msra.mxu0 %v919
    %921 = vmatprep.subr.mxu0 0.0
    %v922 = vand.u32 %v46, 4294901760
    %v923 = vsub.f32 %v46, %v922
    %v924 = vand.u32 %v923, 4294901760
    %925 = vmatpush1.msra.mxu0 %v924
    %926 = vmatprep.subr.mxu0 0.0
    %v927 = vand.u32 %v47, 4294901760
    %v928 = vsub.f32 %v47, %v927
    %v929 = vand.u32 %v928, 4294901760
    %930 = vmatpush1.msra.mxu0 %v929
    %931 = vmatprep.subr.mxu0 0.0
    %v932 = vand.u32 %v48, 4294901760
    %v933 = vsub.f32 %v48, %v932
    %v934 = vand.u32 %v933, 4294901760
    %935 = vmatpush1.msra.mxu0 %v934
    %936 = vmatprep.subr.mxu0 0.0
    %v937 = vand.u32 %v49, 4294901760
    %v938 = vsub.f32 %v49, %v937
    %v939 = vand.u32 %v938, 4294901760
    %940 = vmatpush1.msra.mxu0 %v939
    %941 = vmatprep.subr.mxu0 0.0
    %v942 = vand.u32 %v50, 4294901760
    %v943 = vsub.f32 %v50, %v942
    %v944 = vand.u32 %v943, 4294901760
    %945 = vmatpush1.msra.mxu0 %v944
    %946 = vmatprep.subr.mxu0 0.0
    %v947 = vand.u32 %v51, 4294901760
    %v948 = vsub.f32 %v51, %v947
    %v949 = vand.u32 %v948, 4294901760
    %950 = vmatpush1.msra.mxu0 %v949
    %951 = vmatprep.subr.mxu0 0.0
    %v952 = vand.u32 %v52, 4294901760
    %v953 = vsub.f32 %v52, %v952
    %v954 = vand.u32 %v953, 4294901760
    %955 = vmatpush1.msra.mxu0 %v954
    %956 = vmatprep.subr.mxu0 0.0
    %v957 = vand.u32 %v53, 4294901760
    %v958 = vsub.f32 %v53, %v957
    %v959 = vand.u32 %v958, 4294901760
    %960 = vmatpush1.msra.mxu0 %v959
    %961 = vmatprep.subr.mxu0 0.0
    %v962 = vand.u32 %v54, 4294901760
    %v963 = vsub.f32 %v54, %v962
    %v964 = vand.u32 %v963, 4294901760
    %965 = vmatpush1.msra.mxu0 %v964
    %966 = vmatprep.subr.mxu0 0.0
    %v967 = vand.u32 %v55, 4294901760
    %v968 = vsub.f32 %v55, %v967
    %v969 = vand.u32 %v968, 4294901760
    %970 = vmatpush1.msra.mxu0 %v969
    %971 = vmatprep.subr.mxu0 0.0
    %v972 = vand.u32 %v56, 4294901760
    %v973 = vsub.f32 %v56, %v972
    %v974 = vand.u32 %v973, 4294901760
    %975 = vmatpush1.msra.mxu0 %v974
    %976 = vmatprep.subr.mxu0 0.0
    %v977 = vand.u32 %v57, 4294901760
    %v978 = vsub.f32 %v57, %v977
    %v979 = vand.u32 %v978, 4294901760
    %980 = vmatpush1.msra.mxu0 %v979
    %981 = vmatprep.subr.mxu0 0.0
    %v982 = vand.u32 %v58, 4294901760
    %v983 = vsub.f32 %v58, %v982
    %v984 = vand.u32 %v983, 4294901760
    %985 = vmatpush1.msra.mxu0 %v984
    %986 = vmatprep.subr.mxu0 0.0
    %v987 = vand.u32 %v59, 4294901760
    %v988 = vsub.f32 %v59, %v987
    %v989 = vand.u32 %v988, 4294901760
    %990 = vmatpush1.msra.mxu0 %v989
    %991 = vmatprep.subr.mxu0 0.0
    %v992 = vand.u32 %v60, 4294901760
    %v993 = vsub.f32 %v60, %v992
    %v994 = vand.u32 %v993, 4294901760
    %995 = vmatpush1.msra.mxu0 %v994
    %996 = vmatprep.subr.mxu0 0.0
    %v997 = vand.u32 %v61, 4294901760
    %v998 = vsub.f32 %v61, %v997
    %v999 = vand.u32 %v998, 4294901760
    %1000 = vmatpush1.msra.mxu0 %v999
    %1001 = vmatprep.subr.mxu0 0.0
    %v1002 = vand.u32 %v62, 4294901760
    %v1003 = vsub.f32 %v62, %v1002
    %v1004 = vand.u32 %v1003, 4294901760
    %1005 = vmatpush1.msra.mxu0 %v1004
    %1006 = vmatprep.subr.mxu0 0.0
    %v1007 = vand.u32 %v63, 4294901760
    %v1008 = vsub.f32 %v63, %v1007
    %v1009 = vand.u32 %v1008, 4294901760
    %1010 = vmatpush1.msra.mxu0 %v1009
    %1011 = vmatprep.subr.mxu0 0.0
    %v1012 = vand.u32 %v64, 4294901760
    %v1013 = vsub.f32 %v64, %v1012
    %v1014 = vand.u32 %v1013, 4294901760
    %1015 = vmatpush1.msra.mxu0 %v1014
    %1016 = vmatprep.subr.mxu0 0.0
    %v1017 = vand.u32 %v65, 4294901760
    %v1018 = vsub.f32 %v65, %v1017
    %v1019 = vand.u32 %v1018, 4294901760
    %1020 = vmatpush1.msra.mxu0 %v1019
    %1021 = vmatprep.subr.mxu0 0.0
    %v1022 = vand.u32 %v66, 4294901760
    %v1023 = vsub.f32 %v66, %v1022
    %v1024 = vand.u32 %v1023, 4294901760
    %1025 = vmatpush1.msra.mxu0 %v1024
    %1026 = vmatprep.subr.mxu0 0.0
    %v1027 = vand.u32 %v67, 4294901760
    %v1028 = vsub.f32 %v67, %v1027
    %v1029 = vand.u32 %v1028, 4294901760
    %1030 = vmatpush1.msra.mxu0 %v1029
    %1031 = vmatprep.subr.mxu0 0.0
    %v1032 = vand.u32 %v68, 4294901760
    %v1033 = vsub.f32 %v68, %v1032
    %v1034 = vand.u32 %v1033, 4294901760
    %1035 = vmatpush1.msra.mxu0 %v1034
    %1036 = vmatprep.subr.mxu0 0.0
    %v1037 = vand.u32 %v69, 4294901760
    %v1038 = vsub.f32 %v69, %v1037
    %v1039 = vand.u32 %v1038, 4294901760
    %1040 = vmatpush1.msra.mxu0 %v1039
    %1041 = vmatprep.subr.mxu0 0.0
    %v1042 = vand.u32 %v70, 4294901760
    %v1043 = vsub.f32 %v70, %v1042
    %v1044 = vand.u32 %v1043, 4294901760
    %1045 = vmatpush1.msra.mxu0 %v1044
    %1046 = vmatprep.subr.mxu0 0.0
    %v1047 = vand.u32 %v71, 4294901760
    %v1048 = vsub.f32 %v71, %v1047
    %v1049 = vand.u32 %v1048, 4294901760
    %1050 = vmatpush1.msra.mxu0 %v1049
    %1051 = vmatprep.subr.mxu0 0.0
    %v1052 = vand.u32 %v72, 4294901760
    %v1053 = vsub.f32 %v72, %v1052
    %v1054 = vand.u32 %v1053, 4294901760
    %1055 = vmatpush1.msra.mxu0 %v1054
    %1056 = vmatprep.subr.mxu0 0.0
    %v1057 = vand.u32 %v73, 4294901760
    %v1058 = vsub.f32 %v73, %v1057
    %v1059 = vand.u32 %v1058, 4294901760
    %1060 = vmatpush1.msra.mxu0 %v1059
    %1061 = vmatprep.subr.mxu0 0.0
    %v1062 = vand.u32 %v74, 4294901760
    %v1063 = vsub.f32 %v74, %v1062
    %v1064 = vand.u32 %v1063, 4294901760
    %1065 = vmatpush1.msra.mxu0 %v1064
    %1066 = vmatprep.subr.mxu0 0.0
    %v1067 = vand.u32 %v75, 4294901760
    %v1068 = vsub.f32 %v75, %v1067
    %v1069 = vand.u32 %v1068, 4294901760
    %1070 = vmatpush1.msra.mxu0 %v1069
    %v1071 = vand.u32 %v263, 4294901760
    %1072 = vmatprep.mubr.f32.mxu0 %v1071
    %v1073 = vand.u32 %v259, 4294901760
    %1074 = vmatmul.mubr.f32.gmra.mrb[0].mxu0 %v1073
    %v1075 = vpop.f32.mrb[0].mxu0
    %v1076 = vadd.f32 %v908, %v1075
    %v1077 = vpop.f32.mrb[0].mxu0
    %1078 = vdwg.mxu0
    %1079 = vmatprep.subr.mxu0 0.0
    %v1080 = vand.u32 %v44, 4294901760
    %1081 = vmatpush1.msra.mxu0 %v1080
    %1082 = vmatprep.subr.mxu0 0.0
    %v1083 = vand.u32 %v45, 4294901760
    %1084 = vmatpush1.msra.mxu0 %v1083
    %1085 = vmatprep.subr.mxu0 0.0
    %v1086 = vand.u32 %v46, 4294901760
    %1087 = vmatpush1.msra.mxu0 %v1086
    %1088 = vmatprep.subr.mxu0 0.0
    %v1089 = vand.u32 %v47, 4294901760
    %1090 = vmatpush1.msra.mxu0 %v1089
    %1091 = vmatprep.subr.mxu0 0.0
    %v1092 = vand.u32 %v48, 4294901760
    %1093 = vmatpush1.msra.mxu0 %v1092
    %1094 = vmatprep.subr.mxu0 0.0
    %v1095 = vand.u32 %v49, 4294901760
    %1096 = vmatpush1.msra.mxu0 %v1095
    %1097 = vmatprep.subr.mxu0 0.0
    %v1098 = vand.u32 %v50, 4294901760
    %1099 = vmatpush1.msra.mxu0 %v1098
    %1100 = vmatprep.subr.mxu0 0.0
    %v1101 = vand.u32 %v51, 4294901760
    %1102 = vmatpush1.msra.mxu0 %v1101
    %1103 = vmatprep.subr.mxu0 0.0
    %v1104 = vand.u32 %v52, 4294901760
    %1105 = vmatpush1.msra.mxu0 %v1104
    %1106 = vmatprep.subr.mxu0 0.0
    %v1107 = vand.u32 %v53, 4294901760
    %1108 = vmatpush1.msra.mxu0 %v1107
    %1109 = vmatprep.subr.mxu0 0.0
    %v1110 = vand.u32 %v54, 4294901760
    %1111 = vmatpush1.msra.mxu0 %v1110
    %1112 = vmatprep.subr.mxu0 0.0
    %v1113 = vand.u32 %v55, 4294901760
    %1114 = vmatpush1.msra.mxu0 %v1113
    %1115 = vmatprep.subr.mxu0 0.0
    %v1116 = vand.u32 %v56, 4294901760
    %1117 = vmatpush1.msra.mxu0 %v1116
    %1118 = vmatprep.subr.mxu0 0.0
    %v1119 = vand.u32 %v57, 4294901760
    %1120 = vmatpush1.msra.mxu0 %v1119
    %1121 = vmatprep.subr.mxu0 0.0
    %v1122 = vand.u32 %v58, 4294901760
    %1123 = vmatpush1.msra.mxu0 %v1122
    %1124 = vmatprep.subr.mxu0 0.0
    %v1125 = vand.u32 %v59, 4294901760
    %1126 = vmatpush1.msra.mxu0 %v1125
    %1127 = vmatprep.subr.mxu0 0.0
    %v1128 = vand.u32 %v60, 4294901760
    %1129 = vmatpush1.msra.mxu0 %v1128
    %1130 = vmatprep.subr.mxu0 0.0
    %v1131 = vand.u32 %v61, 4294901760
    %1132 = vmatpush1.msra.mxu0 %v1131
    %1133 = vmatprep.subr.mxu0 0.0
    %v1134 = vand.u32 %v62, 4294901760
    %1135 = vmatpush1.msra.mxu0 %v1134
    %1136 = vmatprep.subr.mxu0 0.0
    %v1137 = vand.u32 %v63, 4294901760
    %1138 = vmatpush1.msra.mxu0 %v1137
    %1139 = vmatprep.subr.mxu0 0.0
    %v1140 = vand.u32 %v64, 4294901760
    %1141 = vmatpush1.msra.mxu0 %v1140
    %1142 = vmatprep.subr.mxu0 0.0
    %v1143 = vand.u32 %v65, 4294901760
    %1144 = vmatpush1.msra.mxu0 %v1143
    %1145 = vmatprep.subr.mxu0 0.0
    %v1146 = vand.u32 %v66, 4294901760
    %1147 = vmatpush1.msra.mxu0 %v1146
    %1148 = vmatprep.subr.mxu0 0.0
    %v1149 = vand.u32 %v67, 4294901760
    %1150 = vmatpush1.msra.mxu0 %v1149
    %1151 = vmatprep.subr.mxu0 0.0
    %v1152 = vand.u32 %v68, 4294901760
    %1153 = vmatpush1.msra.mxu0 %v1152
    %1154 = vmatprep.subr.mxu0 0.0
    %v1155 = vand.u32 %v69, 4294901760
    %1156 = vmatpush1.msra.mxu0 %v1155
    %1157 = vmatprep.subr.mxu0 0.0
    %v1158 = vand.u32 %v70, 4294901760
    %1159 = vmatpush1.msra.mxu0 %v1158
    %1160 = vmatprep.subr.mxu0 0.0
    %v1161 = vand.u32 %v71, 4294901760
    %1162 = vmatpush1.msra.mxu0 %v1161
    %1163 = vmatprep.subr.mxu0 0.0
    %v1164 = vand.u32 %v72, 4294901760
    %1165 = vmatpush1.msra.mxu0 %v1164
    %1166 = vmatprep.subr.mxu0 0.0
    %v1167 = vand.u32 %v73, 4294901760
    %1168 = vmatpush1.msra.mxu0 %v1167
    %1169 = vmatprep.subr.mxu0 0.0
    %v1170 = vand.u32 %v74, 4294901760
    %1171 = vmatpush1.msra.mxu0 %v1170
    %1172 = vmatprep.subr.mxu0 0.0
    %v1173 = vand.u32 %v75, 4294901760
    %1174 = vmatpush1.msra.mxu0 %v1173
    %v1175 = vand.u32 %v263, 4294901760
    %1176 = vmatprep.mubr.f32.mxu0 %v1175
    %v1177 = vand.u32 %v259, 4294901760
    %1178 = vmatmul.mubr.f32.gmra.mrb[0].mxu0 %v1177
    %v1179 = vpop.f32.mrb[0].mxu0
    %v1180 = vadd.f32 %v1076, %v1179
    %v1181 = vpop.f32.mrb[0].mxu0
    %1182 = vdwg.mxu0
    %1183 = vmatprep.subr.mxu0 0.0
    %v1184 = vand.u32 %v76, 4294901760
    %1185 = vmatpush1.msra.mxu0 %v1184
    %1186 = vmatprep.subr.mxu0 0.0
    %v1187 = vand.u32 %v77, 4294901760
    %1188 = vmatpush1.msra.mxu0 %v1187
    %1189 = vmatprep.subr.mxu0 0.0
    %v1190 = vand.u32 %v78, 4294901760
    %1191 = vmatpush1.msra.mxu0 %v1190
    %1192 = vmatprep.subr.mxu0 0.0
    %v1193 = vand.u32 %v79, 4294901760
    %1194 = vmatpush1.msra.mxu0 %v1193
    %1195 = vmatprep.subr.mxu0 0.0
    %v1196 = vand.u32 %v80, 4294901760
    %1197 = vmatpush1.msra.mxu0 %v1196
    %1198 = vmatprep.subr.mxu0 0.0
    %v1199 = vand.u32 %v81, 4294901760
    %1200 = vmatpush1.msra.mxu0 %v1199
    %1201 = vmatprep.subr.mxu0 0.0
    %v1202 = vand.u32 %v82, 4294901760
    %1203 = vmatpush1.msra.mxu0 %v1202
    %1204 = vmatprep.subr.mxu0 0.0
    %v1205 = vand.u32 %v83, 4294901760
    %1206 = vmatpush1.msra.mxu0 %v1205
    %1207 = vmatprep.subr.mxu0 0.0
    %v1208 = vand.u32 %v84, 4294901760
    %1209 = vmatpush1.msra.mxu0 %v1208
    %1210 = vmatprep.subr.mxu0 0.0
    %v1211 = vand.u32 %v85, 4294901760
    %1212 = vmatpush1.msra.mxu0 %v1211
    %1213 = vmatprep.subr.mxu0 0.0
    %v1214 = vand.u32 %v86, 4294901760
    %1215 = vmatpush1.msra.mxu0 %v1214
    %1216 = vmatprep.subr.mxu0 0.0
    %v1217 = vand.u32 %v87, 4294901760
    %1218 = vmatpush1.msra.mxu0 %v1217
    %1219 = vmatprep.subr.mxu0 0.0
    %v1220 = vand.u32 %v88, 4294901760
    %1221 = vmatpush1.msra.mxu0 %v1220
    %1222 = vmatprep.subr.mxu0 0.0
    %v1223 = vand.u32 %v89, 4294901760
    %1224 = vmatpush1.msra.mxu0 %v1223
    %1225 = vmatprep.subr.mxu0 0.0
    %v1226 = vand.u32 %v90, 4294901760
    %1227 = vmatpush1.msra.mxu0 %v1226
    %1228 = vmatprep.subr.mxu0 0.0
    %v1229 = vand.u32 %v91, 4294901760
    %1230 = vmatpush1.msra.mxu0 %v1229
    %1231 = vmatprep.subr.mxu0 0.0
    %v1232 = vand.u32 %v92, 4294901760
    %1233 = vmatpush1.msra.mxu0 %v1232
    %1234 = vmatprep.subr.mxu0 0.0
    %v1235 = vand.u32 %v93, 4294901760
    %1236 = vmatpush1.msra.mxu0 %v1235
    %1237 = vmatprep.subr.mxu0 0.0
    %v1238 = vand.u32 %v94, 4294901760
    %1239 = vmatpush1.msra.mxu0 %v1238
    %1240 = vmatprep.subr.mxu0 0.0
    %v1241 = vand.u32 %v95, 4294901760
    %1242 = vmatpush1.msra.mxu0 %v1241
    %1243 = vmatprep.subr.mxu0 0.0
    %v1244 = vand.u32 %v96, 4294901760
    %1245 = vmatpush1.msra.mxu0 %v1244
    %1246 = vmatprep.subr.mxu0 0.0
    %v1247 = vand.u32 %v97, 4294901760
    %1248 = vmatpush1.msra.mxu0 %v1247
    %1249 = vmatprep.subr.mxu0 0.0
    %v1250 = vand.u32 %v98, 4294901760
    %1251 = vmatpush1.msra.mxu0 %v1250
    %1252 = vmatprep.subr.mxu0 0.0
    %v1253 = vand.u32 %v99, 4294901760
    %1254 = vmatpush1.msra.mxu0 %v1253
    %1255 = vmatprep.subr.mxu0 0.0
    %v1256 = vand.u32 %v100, 4294901760
    %1257 = vmatpush1.msra.mxu0 %v1256
    %1258 = vmatprep.subr.mxu0 0.0
    %v1259 = vand.u32 %v101, 4294901760
    %1260 = vmatpush1.msra.mxu0 %v1259
    %1261 = vmatprep.subr.mxu0 0.0
    %v1262 = vand.u32 %v102, 4294901760
    %1263 = vmatpush1.msra.mxu0 %v1262
    %1264 = vmatprep.subr.mxu0 0.0
    %v1265 = vand.u32 %v103, 4294901760
    %1266 = vmatpush1.msra.mxu0 %v1265
    %1267 = vmatprep.subr.mxu0 0.0
    %v1268 = vand.u32 %v104, 4294901760
    %1269 = vmatpush1.msra.mxu0 %v1268
    %1270 = vmatprep.subr.mxu0 0.0
    %v1271 = vand.u32 %v105, 4294901760
    %1272 = vmatpush1.msra.mxu0 %v1271
    %1273 = vmatprep.subr.mxu0 0.0
    %v1274 = vand.u32 %v106, 4294901760
    %1275 = vmatpush1.msra.mxu0 %v1274
    %1276 = vmatprep.subr.mxu0 0.0
    %v1277 = vand.u32 %v107, 4294901760
    %1278 = vmatpush1.msra.mxu0 %v1277
    %v1279 = vand.u32 %v271, 4294901760
    %v1280 = vsub.f32 %v271, %v1279
    %v1281 = vand.u32 %v1280, 4294901760
    %v1282 = vsub.f32 %v1280, %v1281
    %v1283 = vand.u32 %v1282, 4294901760
    %1284 = vmatprep.mubr.f32.mxu0 %v1283
    %v1285 = vand.u32 %v267, 4294901760
    %v1286 = vsub.f32 %v267, %v1285
    %v1287 = vand.u32 %v1286, 4294901760
    %v1288 = vsub.f32 %v1286, %v1287
    %v1289 = vand.u32 %v1288, 4294901760
    %1290 = vmatmul.mubr.f32.gmra.mrb[0].mxu0 %v1289
    %v1291 = vpop.f32.mrb[0].mxu0
    %v1292 = vadd.f32 %v1180, %v1291
    %v1293 = vpop.f32.mrb[0].mxu0
    %1294 = vdwg.mxu0
    %1295 = vmatprep.subr.mxu0 0.0
    %v1296 = vand.u32 %v76, 4294901760
    %v1297 = vsub.f32 %v76, %v1296
    %v1298 = vand.u32 %v1297, 4294901760
    %v1299 = vsub.f32 %v1297, %v1298
    %v1300 = vand.u32 %v1299, 4294901760
    %1301 = vmatpush1.msra.mxu0 %v1300
    %1302 = vmatprep.subr.mxu0 0.0
    %v1303 = vand.u32 %v77, 4294901760
    %v1304 = vsub.f32 %v77, %v1303
    %v1305 = vand.u32 %v1304, 4294901760
    %v1306 = vsub.f32 %v1304, %v1305
    %v1307 = vand.u32 %v1306, 4294901760
    %1308 = vmatpush1.msra.mxu0 %v1307
    %1309 = vmatprep.subr.mxu0 0.0
    %v1310 = vand.u32 %v78, 4294901760
    %v1311 = vsub.f32 %v78, %v1310
    %v1312 = vand.u32 %v1311, 4294901760
    %v1313 = vsub.f32 %v1311, %v1312
    %v1314 = vand.u32 %v1313, 4294901760
    %1315 = vmatpush1.msra.mxu0 %v1314
    %1316 = vmatprep.subr.mxu0 0.0
    %v1317 = vand.u32 %v79, 4294901760
    %v1318 = vsub.f32 %v79, %v1317
    %v1319 = vand.u32 %v1318, 4294901760
    %v1320 = vsub.f32 %v1318, %v1319
    %v1321 = vand.u32 %v1320, 4294901760
    %1322 = vmatpush1.msra.mxu0 %v1321
    %1323 = vmatprep.subr.mxu0 0.0
    %v1324 = vand.u32 %v80, 4294901760
    %v1325 = vsub.f32 %v80, %v1324
    %v1326 = vand.u32 %v1325, 4294901760
    %v1327 = vsub.f32 %v1325, %v1326
    %v1328 = vand.u32 %v1327, 4294901760
    %1329 = vmatpush1.msra.mxu0 %v1328
    %1330 = vmatprep.subr.mxu0 0.0
    %v1331 = vand.u32 %v81, 4294901760
    %v1332 = vsub.f32 %v81, %v1331
    %v1333 = vand.u32 %v1332, 4294901760
    %v1334 = vsub.f32 %v1332, %v1333
    %v1335 = vand.u32 %v1334, 4294901760
    %1336 = vmatpush1.msra.mxu0 %v1335
    %1337 = vmatprep.subr.mxu0 0.0
    %v1338 = vand.u32 %v82, 4294901760
    %v1339 = vsub.f32 %v82, %v1338
    %v1340 = vand.u32 %v1339, 4294901760
    %v1341 = vsub.f32 %v1339, %v1340
    %v1342 = vand.u32 %v1341, 4294901760
    %1343 = vmatpush1.msra.mxu0 %v1342
    %1344 = vmatprep.subr.mxu0 0.0
    %v1345 = vand.u32 %v83, 4294901760
    %v1346 = vsub.f32 %v83, %v1345
    %v1347 = vand.u32 %v1346, 4294901760
    %v1348 = vsub.f32 %v1346, %v1347
    %v1349 = vand.u32 %v1348, 4294901760
    %1350 = vmatpush1.msra.mxu0 %v1349
    %1351 = vmatprep.subr.mxu0 0.0
    %v1352 = vand.u32 %v84, 4294901760
    %v1353 = vsub.f32 %v84, %v1352
    %v1354 = vand.u32 %v1353, 4294901760
    %v1355 = vsub.f32 %v1353, %v1354
    %v1356 = vand.u32 %v1355, 4294901760
    %1357 = vmatpush1.msra.mxu0 %v1356
    %1358 = vmatprep.subr.mxu0 0.0
    %v1359 = vand.u32 %v85, 4294901760
    %v1360 = vsub.f32 %v85, %v1359
    %v1361 = vand.u32 %v1360, 4294901760
    %v1362 = vsub.f32 %v1360, %v1361
    %v1363 = vand.u32 %v1362, 4294901760
    %1364 = vmatpush1.msra.mxu0 %v1363
    %1365 = vmatprep.subr.mxu0 0.0
    %v1366 = vand.u32 %v86, 4294901760
    %v1367 = vsub.f32 %v86, %v1366
    %v1368 = vand.u32 %v1367, 4294901760
    %v1369 = vsub.f32 %v1367, %v1368
    %v1370 = vand.u32 %v1369, 4294901760
    %1371 = vmatpush1.msra.mxu0 %v1370
    %1372 = vmatprep.subr.mxu0 0.0
    %v1373 = vand.u32 %v87, 4294901760
    %v1374 = vsub.f32 %v87, %v1373
    %v1375 = vand.u32 %v1374, 4294901760
    %v1376 = vsub.f32 %v1374, %v1375
    %v1377 = vand.u32 %v1376, 4294901760
    %1378 = vmatpush1.msra.mxu0 %v1377
    %1379 = vmatprep.subr.mxu0 0.0
    %v1380 = vand.u32 %v88, 4294901760
    %v1381 = vsub.f32 %v88, %v1380
    %v1382 = vand.u32 %v1381, 4294901760
    %v1383 = vsub.f32 %v1381, %v1382
    %v1384 = vand.u32 %v1383, 4294901760
    %1385 = vmatpush1.msra.mxu0 %v1384
    %1386 = vmatprep.subr.mxu0 0.0
    %v1387 = vand.u32 %v89, 4294901760
    %v1388 = vsub.f32 %v89, %v1387
    %v1389 = vand.u32 %v1388, 4294901760
    %v1390 = vsub.f32 %v1388, %v1389
    %v1391 = vand.u32 %v1390, 4294901760
    %1392 = vmatpush1.msra.mxu0 %v1391
    %1393 = vmatprep.subr.mxu0 0.0
    %v1394 = vand.u32 %v90, 4294901760
    %v1395 = vsub.f32 %v90, %v1394
    %v1396 = vand.u32 %v1395, 4294901760
    %v1397 = vsub.f32 %v1395, %v1396
    %v1398 = vand.u32 %v1397, 4294901760
    %1399 = vmatpush1.msra.mxu0 %v1398
    %1400 = vmatprep.subr.mxu0 0.0
    %v1401 = vand.u32 %v91, 4294901760
    %v1402 = vsub.f32 %v91, %v1401
    %v1403 = vand.u32 %v1402, 4294901760
    %v1404 = vsub.f32 %v1402, %v1403
    %v1405 = vand.u32 %v1404, 4294901760
    %1406 = vmatpush1.msra.mxu0 %v1405
    %1407 = vmatprep.subr.mxu0 0.0
    %v1408 = vand.u32 %v92, 4294901760
    %v1409 = vsub.f32 %v92, %v1408
    %v1410 = vand.u32 %v1409, 4294901760
    %v1411 = vsub.f32 %v1409, %v1410
    %v1412 = vand.u32 %v1411, 4294901760
    %1413 = vmatpush1.msra.mxu0 %v1412
    %1414 = vmatprep.subr.mxu0 0.0
    %v1415 = vand.u32 %v93, 4294901760
    %v1416 = vsub.f32 %v93, %v1415
    %v1417 = vand.u32 %v1416, 4294901760
    %v1418 = vsub.f32 %v1416, %v1417
    %v1419 = vand.u32 %v1418, 4294901760
    %1420 = vmatpush1.msra.mxu0 %v1419
    %1421 = vmatprep.subr.mxu0 0.0
    %v1422 = vand.u32 %v94, 4294901760
    %v1423 = vsub.f32 %v94, %v1422
    %v1424 = vand.u32 %v1423, 4294901760
    %v1425 = vsub.f32 %v1423, %v1424
    %v1426 = vand.u32 %v1425, 4294901760
    %1427 = vmatpush1.msra.mxu0 %v1426
    %1428 = vmatprep.subr.mxu0 0.0
    %v1429 = vand.u32 %v95, 4294901760
    %v1430 = vsub.f32 %v95, %v1429
    %v1431 = vand.u32 %v1430, 4294901760
    %v1432 = vsub.f32 %v1430, %v1431
    %v1433 = vand.u32 %v1432, 4294901760
    %1434 = vmatpush1.msra.mxu0 %v1433
    %1435 = vmatprep.subr.mxu0 0.0
    %v1436 = vand.u32 %v96, 4294901760
    %v1437 = vsub.f32 %v96, %v1436
    %v1438 = vand.u32 %v1437, 4294901760
    %v1439 = vsub.f32 %v1437, %v1438
    %v1440 = vand.u32 %v1439, 4294901760
    %1441 = vmatpush1.msra.mxu0 %v1440
    %1442 = vmatprep.subr.mxu0 0.0
    %v1443 = vand.u32 %v97, 4294901760
    %v1444 = vsub.f32 %v97, %v1443
    %v1445 = vand.u32 %v1444, 4294901760
    %v1446 = vsub.f32 %v1444, %v1445
    %v1447 = vand.u32 %v1446, 4294901760
    %1448 = vmatpush1.msra.mxu0 %v1447
    %1449 = vmatprep.subr.mxu0 0.0
    %v1450 = vand.u32 %v98, 4294901760
    %v1451 = vsub.f32 %v98, %v1450
    %v1452 = vand.u32 %v1451, 4294901760
    %v1453 = vsub.f32 %v1451, %v1452
    %v1454 = vand.u32 %v1453, 4294901760
    %1455 = vmatpush1.msra.mxu0 %v1454
    %1456 = vmatprep.subr.mxu0 0.0
    %v1457 = vand.u32 %v99, 4294901760
    %v1458 = vsub.f32 %v99, %v1457
    %v1459 = vand.u32 %v1458, 4294901760
    %v1460 = vsub.f32 %v1458, %v1459
    %v1461 = vand.u32 %v1460, 4294901760
    %1462 = vmatpush1.msra.mxu0 %v1461
    %1463 = vmatprep.subr.mxu0 0.0
    %v1464 = vand.u32 %v100, 4294901760
    %v1465 = vsub.f32 %v100, %v1464
    %v1466 = vand.u32 %v1465, 4294901760
    %v1467 = vsub.f32 %v1465, %v1466
    %v1468 = vand.u32 %v1467, 4294901760
    %1469 = vmatpush1.msra.mxu0 %v1468
    %1470 = vmatprep.subr.mxu0 0.0
    %v1471 = vand.u32 %v101, 4294901760
    %v1472 = vsub.f32 %v101, %v1471
    %v1473 = vand.u32 %v1472, 4294901760
    %v1474 = vsub.f32 %v1472, %v1473
    %v1475 = vand.u32 %v1474, 4294901760
    %1476 = vmatpush1.msra.mxu0 %v1475
    %1477 = vmatprep.subr.mxu0 0.0
    %v1478 = vand.u32 %v102, 4294901760
    %v1479 = vsub.f32 %v102, %v1478
    %v1480 = vand.u32 %v1479, 4294901760
    %v1481 = vsub.f32 %v1479, %v1480
    %v1482 = vand.u32 %v1481, 4294901760
    %1483 = vmatpush1.msra.mxu0 %v1482
    %1484 = vmatprep.subr.mxu0 0.0
    %v1485 = vand.u32 %v103, 4294901760
    %v1486 = vsub.f32 %v103, %v1485
    %v1487 = vand.u32 %v1486, 4294901760
    %v1488 = vsub.f32 %v1486, %v1487
    %v1489 = vand.u32 %v1488, 4294901760
    %1490 = vmatpush1.msra.mxu0 %v1489
    %1491 = vmatprep.subr.mxu0 0.0
    %v1492 = vand.u32 %v104, 4294901760
    %v1493 = vsub.f32 %v104, %v1492
    %v1494 = vand.u32 %v1493, 4294901760
    %v1495 = vsub.f32 %v1493, %v1494
    %v1496 = vand.u32 %v1495, 4294901760
    %1497 = vmatpush1.msra.mxu0 %v1496
    %1498 = vmatprep.subr.mxu0 0.0
    %v1499 = vand.u32 %v105, 4294901760
    %v1500 = vsub.f32 %v105, %v1499
    %v1501 = vand.u32 %v1500, 4294901760
    %v1502 = vsub.f32 %v1500, %v1501
    %v1503 = vand.u32 %v1502, 4294901760
    %1504 = vmatpush1.msra.mxu0 %v1503
    %1505 = vmatprep.subr.mxu0 0.0
    %v1506 = vand.u32 %v106, 4294901760
    %v1507 = vsub.f32 %v106, %v1506
    %v1508 = vand.u32 %v1507, 4294901760
    %v1509 = vsub.f32 %v1507, %v1508
    %v1510 = vand.u32 %v1509, 4294901760
    %1511 = vmatpush1.msra.mxu0 %v1510
    %1512 = vmatprep.subr.mxu0 0.0
    %v1513 = vand.u32 %v107, 4294901760
    %v1514 = vsub.f32 %v107, %v1513
    %v1515 = vand.u32 %v1514, 4294901760
    %v1516 = vsub.f32 %v1514, %v1515
    %v1517 = vand.u32 %v1516, 4294901760
    %1518 = vmatpush1.msra.mxu0 %v1517
    %v1519 = vand.u32 %v271, 4294901760
    %1520 = vmatprep.mubr.f32.mxu0 %v1519
    %v1521 = vand.u32 %v267, 4294901760
    %1522 = vmatmul.mubr.f32.gmra.mrb[0].mxu0 %v1521
    %v1523 = vpop.f32.mrb[0].mxu0
    %v1524 = vadd.f32 %v1292, %v1523
    %v1525 = vpop.f32.mrb[0].mxu0
    %1526 = vdwg.mxu0
    %1527 = vmatprep.subr.mxu0 0.0
    %v1528 = vand.u32 %v76, 4294901760
    %v1529 = vsub.f32 %v76, %v1528
    %1530 = vmatpush1.msra.mxu0 %v1529
    %1531 = vmatprep.subr.mxu0 0.0
    %v1532 = vand.u32 %v77, 4294901760
    %v1533 = vsub.f32 %v77, %v1532
    %1534 = vmatpush1.msra.mxu0 %v1533
    %1535 = vmatprep.subr.mxu0 0.0
    %v1536 = vand.u32 %v78, 4294901760
    %v1537 = vsub.f32 %v78, %v1536
    %1538 = vmatpush1.msra.mxu0 %v1537
    %1539 = vmatprep.subr.mxu0 0.0
    %v1540 = vand.u32 %v79, 4294901760
    %v1541 = vsub.f32 %v79, %v1540
    %1542 = vmatpush1.msra.mxu0 %v1541
    %1543 = vmatprep.subr.mxu0 0.0
    %v1544 = vand.u32 %v80, 4294901760
    %v1545 = vsub.f32 %v80, %v1544
    %1546 = vmatpush1.msra.mxu0 %v1545
    %1547 = vmatprep.subr.mxu0 0.0
    %v1548 = vand.u32 %v81, 4294901760
    %v1549 = vsub.f32 %v81, %v1548
    %1550 = vmatpush1.msra.mxu0 %v1549
    %1551 = vmatprep.subr.mxu0 0.0
    %v1552 = vand.u32 %v82, 4294901760
    %v1553 = vsub.f32 %v82, %v1552
    %1554 = vmatpush1.msra.mxu0 %v1553
    %1555 = vmatprep.subr.mxu0 0.0
    %v1556 = vand.u32 %v83, 4294901760
    %v1557 = vsub.f32 %v83, %v1556
    %1558 = vmatpush1.msra.mxu0 %v1557
    %1559 = vmatprep.subr.mxu0 0.0
    %v1560 = vand.u32 %v84, 4294901760
    %v1561 = vsub.f32 %v84, %v1560
    %1562 = vmatpush1.msra.mxu0 %v1561
    %1563 = vmatprep.subr.mxu0 0.0
    %v1564 = vand.u32 %v85, 4294901760
    %v1565 = vsub.f32 %v85, %v1564
    %1566 = vmatpush1.msra.mxu0 %v1565
    %1567 = vmatprep.subr.mxu0 0.0
    %v1568 = vand.u32 %v86, 4294901760
    %v1569 = vsub.f32 %v86, %v1568
    %1570 = vmatpush1.msra.mxu0 %v1569
    %1571 = vmatprep.subr.mxu0 0.0
    %v1572 = vand.u32 %v87, 4294901760
    %v1573 = vsub.f32 %v87, %v1572
    %1574 = vmatpush1.msra.mxu0 %v1573
    %1575 = vmatprep.subr.mxu0 0.0
    %v1576 = vand.u32 %v88, 4294901760
    %v1577 = vsub.f32 %v88, %v1576
    %1578 = vmatpush1.msra.mxu0 %v1577
    %1579 = vmatprep.subr.mxu0 0.0
    %v1580 = vand.u32 %v89, 4294901760
    %v1581 = vsub.f32 %v89, %v1580
    %1582 = vmatpush1.msra.mxu0 %v1581
    %1583 = vmatprep.subr.mxu0 0.0
    %v1584 = vand.u32 %v90, 4294901760
    %v1585 = vsub.f32 %v90, %v1584
    %1586 = vmatpush1.msra.mxu0 %v1585
    %1587 = vmatprep.subr.mxu0 0.0
    %v1588 = vand.u32 %v91, 4294901760
    %v1589 = vsub.f32 %v91, %v1588
    %1590 = vmatpush1.msra.mxu0 %v1589
    %1591 = vmatprep.subr.mxu0 0.0
    %v1592 = vand.u32 %v92, 4294901760
    %v1593 = vsub.f32 %v92, %v1592
    %1594 = vmatpush1.msra.mxu0 %v1593
    %1595 = vmatprep.subr.mxu0 0.0
    %v1596 = vand.u32 %v93, 4294901760
    %v1597 = vsub.f32 %v93, %v1596
    %1598 = vmatpush1.msra.mxu0 %v1597
    %1599 = vmatprep.subr.mxu0 0.0
    %v1600 = vand.u32 %v94, 4294901760
    %v1601 = vsub.f32 %v94, %v1600
    %1602 = vmatpush1.msra.mxu0 %v1601
    %1603 = vmatprep.subr.mxu0 0.0
    %v1604 = vand.u32 %v95, 4294901760
    %v1605 = vsub.f32 %v95, %v1604
    %1606 = vmatpush1.msra.mxu0 %v1605
    %1607 = vmatprep.subr.mxu0 0.0
    %v1608 = vand.u32 %v96, 4294901760
    %v1609 = vsub.f32 %v96, %v1608
    %1610 = vmatpush1.msra.mxu0 %v1609
    %1611 = vmatprep.subr.mxu0 0.0
    %v1612 = vand.u32 %v97, 4294901760
    %v1613 = vsub.f32 %v97, %v1612
    %1614 = vmatpush1.msra.mxu0 %v1613
    %1615 = vmatprep.subr.mxu0 0.0
    %v1616 = vand.u32 %v98, 4294901760
    %v1617 = vsub.f32 %v98, %v1616
    %1618 = vmatpush1.msra.mxu0 %v1617
    %1619 = vmatprep.subr.mxu0 0.0
    %v1620 = vand.u32 %v99, 4294901760
    %v1621 = vsub.f32 %v99, %v1620
    %1622 = vmatpush1.msra.mxu0 %v1621
    %1623 = vmatprep.subr.mxu0 0.0
    %v1624 = vand.u32 %v100, 4294901760
    %v1625 = vsub.f32 %v100, %v1624
    %1626 = vmatpush1.msra.mxu0 %v1625
    %1627 = vmatprep.subr.mxu0 0.0
    %v1628 = vand.u32 %v101, 4294901760
    %v1629 = vsub.f32 %v101, %v1628
    %1630 = vmatpush1.msra.mxu0 %v1629
    %1631 = vmatprep.subr.mxu0 0.0
    %v1632 = vand.u32 %v102, 4294901760
    %v1633 = vsub.f32 %v102, %v1632
    %1634 = vmatpush1.msra.mxu0 %v1633
    %1635 = vmatprep.subr.mxu0 0.0
    %v1636 = vand.u32 %v103, 4294901760
    %v1637 = vsub.f32 %v103, %v1636
    %1638 = vmatpush1.msra.mxu0 %v1637
    %1639 = vmatprep.subr.mxu0 0.0
    %v1640 = vand.u32 %v104, 4294901760
    %v1641 = vsub.f32 %v104, %v1640
    %1642 = vmatpush1.msra.mxu0 %v1641
    %1643 = vmatprep.subr.mxu0 0.0
    %v1644 = vand.u32 %v105, 4294901760
    %v1645 = vsub.f32 %v105, %v1644
    %1646 = vmatpush1.msra.mxu0 %v1645
    %1647 = vmatprep.subr.mxu0 0.0
    %v1648 = vand.u32 %v106, 4294901760
    %v1649 = vsub.f32 %v106, %v1648
    %1650 = vmatpush1.msra.mxu0 %v1649
    %1651 = vmatprep.subr.mxu0 0.0
    %v1652 = vand.u32 %v107, 4294901760
    %v1653 = vsub.f32 %v107, %v1652
    %1654 = vmatpush1.msra.mxu0 %v1653
    %v1655 = vand.u32 %v271, 4294901760
    %v1656 = vsub.f32 %v271, %v1655
    %1657 = vmatprep.mubr.f32.mxu0 %v1656
    %v1658 = vand.u32 %v267, 4294901760
    %v1659 = vsub.f32 %v267, %v1658
    %1660 = vmatmul.mubr.f32.gmra.mrb[0].mxu0 %v1659
    %v1661 = vpop.f32.mrb[0].mxu0
    %v1662 = vadd.f32 %v1524, %v1661
    %v1663 = vpop.f32.mrb[0].mxu0
    %1664 = vdwg.mxu0
    %1665 = vmatprep.subr.mxu0 0.0
    %v1666 = vand.u32 %v76, 4294901760
    %1667 = vmatpush1.msra.mxu0 %v1666
    %1668 = vmatprep.subr.mxu0 0.0
    %v1669 = vand.u32 %v77, 4294901760
    %1670 = vmatpush1.msra.mxu0 %v1669
    %1671 = vmatprep.subr.mxu0 0.0
    %v1672 = vand.u32 %v78, 4294901760
    %1673 = vmatpush1.msra.mxu0 %v1672
    %1674 = vmatprep.subr.mxu0 0.0
    %v1675 = vand.u32 %v79, 4294901760
    %1676 = vmatpush1.msra.mxu0 %v1675
    %1677 = vmatprep.subr.mxu0 0.0
    %v1678 = vand.u32 %v80, 4294901760
    %1679 = vmatpush1.msra.mxu0 %v1678
    %1680 = vmatprep.subr.mxu0 0.0
    %v1681 = vand.u32 %v81, 4294901760
    %1682 = vmatpush1.msra.mxu0 %v1681
    %1683 = vmatprep.subr.mxu0 0.0
    %v1684 = vand.u32 %v82, 4294901760
    %1685 = vmatpush1.msra.mxu0 %v1684
    %1686 = vmatprep.subr.mxu0 0.0
    %v1687 = vand.u32 %v83, 4294901760
    %1688 = vmatpush1.msra.mxu0 %v1687
    %1689 = vmatprep.subr.mxu0 0.0
    %v1690 = vand.u32 %v84, 4294901760
    %1691 = vmatpush1.msra.mxu0 %v1690
    %1692 = vmatprep.subr.mxu0 0.0
    %v1693 = vand.u32 %v85, 4294901760
    %1694 = vmatpush1.msra.mxu0 %v1693
    %1695 = vmatprep.subr.mxu0 0.0
    %v1696 = vand.u32 %v86, 4294901760
    %1697 = vmatpush1.msra.mxu0 %v1696
    %1698 = vmatprep.subr.mxu0 0.0
    %v1699 = vand.u32 %v87, 4294901760
    %1700 = vmatpush1.msra.mxu0 %v1699
    %1701 = vmatprep.subr.mxu0 0.0
    %v1702 = vand.u32 %v88, 4294901760
    %1703 = vmatpush1.msra.mxu0 %v1702
    %1704 = vmatprep.subr.mxu0 0.0
    %v1705 = vand.u32 %v89, 4294901760
    %1706 = vmatpush1.msra.mxu0 %v1705
    %1707 = vmatprep.subr.mxu0 0.0
    %v1708 = vand.u32 %v90, 4294901760
    %1709 = vmatpush1.msra.mxu0 %v1708
    %1710 = vmatprep.subr.mxu0 0.0
    %v1711 = vand.u32 %v91, 4294901760
    %1712 = vmatpush1.msra.mxu0 %v1711
    %1713 = vmatprep.subr.mxu0 0.0
    %v1714 = vand.u32 %v92, 4294901760
    %1715 = vmatpush1.msra.mxu0 %v1714
    %1716 = vmatprep.subr.mxu0 0.0
    %v1717 = vand.u32 %v93, 4294901760
    %1718 = vmatpush1.msra.mxu0 %v1717
    %1719 = vmatprep.subr.mxu0 0.0
    %v1720 = vand.u32 %v94, 4294901760
    %1721 = vmatpush1.msra.mxu0 %v1720
    %1722 = vmatprep.subr.mxu0 0.0
    %v1723 = vand.u32 %v95, 4294901760
    %1724 = vmatpush1.msra.mxu0 %v1723
    %1725 = vmatprep.subr.mxu0 0.0
    %v1726 = vand.u32 %v96, 4294901760
    %1727 = vmatpush1.msra.mxu0 %v1726
    %1728 = vmatprep.subr.mxu0 0.0
    %v1729 = vand.u32 %v97, 4294901760
    %1730 = vmatpush1.msra.mxu0 %v1729
    %1731 = vmatprep.subr.mxu0 0.0
    %v1732 = vand.u32 %v98, 4294901760
    %1733 = vmatpush1.msra.mxu0 %v1732
    %1734 = vmatprep.subr.mxu0 0.0
    %v1735 = vand.u32 %v99, 4294901760
    %1736 = vmatpush1.msra.mxu0 %v1735
    %1737 = vmatprep.subr.mxu0 0.0
    %v1738 = vand.u32 %v100, 4294901760
    %1739 = vmatpush1.msra.mxu0 %v1738
    %1740 = vmatprep.subr.mxu0 0.0
    %v1741 = vand.u32 %v101, 4294901760
    %1742 = vmatpush1.msra.mxu0 %v1741
    %1743 = vmatprep.subr.mxu0 0.0
    %v1744 = vand.u32 %v102, 4294901760
    %1745 = vmatpush1.msra.mxu0 %v1744
    %1746 = vmatprep.subr.mxu0 0.0
    %v1747 = vand.u32 %v103, 4294901760
    %1748 = vmatpush1.msra.mxu0 %v1747
    %1749 = vmatprep.subr.mxu0 0.0
    %v1750 = vand.u32 %v104, 4294901760
    %1751 = vmatpush1.msra.mxu0 %v1750
    %1752 = vmatprep.subr.mxu0 0.0
    %v1753 = vand.u32 %v105, 4294901760
    %1754 = vmatpush1.msra.mxu0 %v1753
    %1755 = vmatprep.subr.mxu0 0.0
    %v1756 = vand.u32 %v106, 4294901760
    %1757 = vmatpush1.msra.mxu0 %v1756
    %1758 = vmatprep.subr.mxu0 0.0
    %v1759 = vand.u32 %v107, 4294901760
    %1760 = vmatpush1.msra.mxu0 %v1759
    %v1761 = vand.u32 %v271, 4294901760
    %v1762 = vsub.f32 %v271, %v1761
    %v1763 = vand.u32 %v1762, 4294901760
    %1764 = vmatprep.mubr.f32.mxu0 %v1763
    %v1765 = vand.u32 %v267, 4294901760
    %v1766 = vsub.f32 %v267, %v1765
    %v1767 = vand.u32 %v1766, 4294901760
    %1768 = vmatmul.mubr.f32.gmra.mrb[0].mxu0 %v1767
    %v1769 = vpop.f32.mrb[0].mxu0
    %v1770 = vadd.f32 %v1662, %v1769
    %v1771 = vpop.f32.mrb[0].mxu0
    %1772 = vdwg.mxu0
    %1773 = vmatprep.subr.mxu0 0.0
    %v1774 = vand.u32 %v76, 4294901760
    %v1775 = vsub.f32 %v76, %v1774
    %v1776 = vand.u32 %v1775, 4294901760
    %1777 = vmatpush1.msra.mxu0 %v1776
    %1778 = vmatprep.subr.mxu0 0.0
    %v1779 = vand.u32 %v77, 4294901760
    %v1780 = vsub.f32 %v77, %v1779
    %v1781 = vand.u32 %v1780, 4294901760
    %1782 = vmatpush1.msra.mxu0 %v1781
    %1783 = vmatprep.subr.mxu0 0.0
    %v1784 = vand.u32 %v78, 4294901760
    %v1785 = vsub.f32 %v78, %v1784
    %v1786 = vand.u32 %v1785, 4294901760
    %1787 = vmatpush1.msra.mxu0 %v1786
    %1788 = vmatprep.subr.mxu0 0.0
    %v1789 = vand.u32 %v79, 4294901760
    %v1790 = vsub.f32 %v79, %v1789
    %v1791 = vand.u32 %v1790, 4294901760
    %1792 = vmatpush1.msra.mxu0 %v1791
    %1793 = vmatprep.subr.mxu0 0.0
    %v1794 = vand.u32 %v80, 4294901760
    %v1795 = vsub.f32 %v80, %v1794
    %v1796 = vand.u32 %v1795, 4294901760
    %1797 = vmatpush1.msra.mxu0 %v1796
    %1798 = vmatprep.subr.mxu0 0.0
    %v1799 = vand.u32 %v81, 4294901760
    %v1800 = vsub.f32 %v81, %v1799
    %v1801 = vand.u32 %v1800, 4294901760
    %1802 = vmatpush1.msra.mxu0 %v1801
    %1803 = vmatprep.subr.mxu0 0.0
    %v1804 = vand.u32 %v82, 4294901760
    %v1805 = vsub.f32 %v82, %v1804
    %v1806 = vand.u32 %v1805, 4294901760
    %1807 = vmatpush1.msra.mxu0 %v1806
    %1808 = vmatprep.subr.mxu0 0.0
    %v1809 = vand.u32 %v83, 4294901760
    %v1810 = vsub.f32 %v83, %v1809
    %v1811 = vand.u32 %v1810, 4294901760
    %1812 = vmatpush1.msra.mxu0 %v1811
    %1813 = vmatprep.subr.mxu0 0.0
    %v1814 = vand.u32 %v84, 4294901760
    %v1815 = vsub.f32 %v84, %v1814
    %v1816 = vand.u32 %v1815, 4294901760
    %1817 = vmatpush1.msra.mxu0 %v1816
    %1818 = vmatprep.subr.mxu0 0.0
    %v1819 = vand.u32 %v85, 4294901760
    %v1820 = vsub.f32 %v85, %v1819
    %v1821 = vand.u32 %v1820, 4294901760
    %1822 = vmatpush1.msra.mxu0 %v1821
    %1823 = vmatprep.subr.mxu0 0.0
    %v1824 = vand.u32 %v86, 4294901760
    %v1825 = vsub.f32 %v86, %v1824
    %v1826 = vand.u32 %v1825, 4294901760
    %1827 = vmatpush1.msra.mxu0 %v1826
    %1828 = vmatprep.subr.mxu0 0.0
    %v1829 = vand.u32 %v87, 4294901760
    %v1830 = vsub.f32 %v87, %v1829
    %v1831 = vand.u32 %v1830, 4294901760
    %1832 = vmatpush1.msra.mxu0 %v1831
    %1833 = vmatprep.subr.mxu0 0.0
    %v1834 = vand.u32 %v88, 4294901760
    %v1835 = vsub.f32 %v88, %v1834
    %v1836 = vand.u32 %v1835, 4294901760
    %1837 = vmatpush1.msra.mxu0 %v1836
    %1838 = vmatprep.subr.mxu0 0.0
    %v1839 = vand.u32 %v89, 4294901760
    %v1840 = vsub.f32 %v89, %v1839
    %v1841 = vand.u32 %v1840, 4294901760
    %1842 = vmatpush1.msra.mxu0 %v1841
    %1843 = vmatprep.subr.mxu0 0.0
    %v1844 = vand.u32 %v90, 4294901760
    %v1845 = vsub.f32 %v90, %v1844
    %v1846 = vand.u32 %v1845, 4294901760
    %1847 = vmatpush1.msra.mxu0 %v1846
    %1848 = vmatprep.subr.mxu0 0.0
    %v1849 = vand.u32 %v91, 4294901760
    %v1850 = vsub.f32 %v91, %v1849
    %v1851 = vand.u32 %v1850, 4294901760
    %1852 = vmatpush1.msra.mxu0 %v1851
    %1853 = vmatprep.subr.mxu0 0.0
    %v1854 = vand.u32 %v92, 4294901760
    %v1855 = vsub.f32 %v92, %v1854
    %v1856 = vand.u32 %v1855, 4294901760
    %1857 = vmatpush1.msra.mxu0 %v1856
    %1858 = vmatprep.subr.mxu0 0.0
    %v1859 = vand.u32 %v93, 4294901760
    %v1860 = vsub.f32 %v93, %v1859
    %v1861 = vand.u32 %v1860, 4294901760
    %1862 = vmatpush1.msra.mxu0 %v1861
    %1863 = vmatprep.subr.mxu0 0.0
    %v1864 = vand.u32 %v94, 4294901760
    %v1865 = vsub.f32 %v94, %v1864
    %v1866 = vand.u32 %v1865, 4294901760
    %1867 = vmatpush1.msra.mxu0 %v1866
    %1868 = vmatprep.subr.mxu0 0.0
    %v1869 = vand.u32 %v95, 4294901760
    %v1870 = vsub.f32 %v95, %v1869
    %v1871 = vand.u32 %v1870, 4294901760
    %1872 = vmatpush1.msra.mxu0 %v1871
    %1873 = vmatprep.subr.mxu0 0.0
    %v1874 = vand.u32 %v96, 4294901760
    %v1875 = vsub.f32 %v96, %v1874
    %v1876 = vand.u32 %v1875, 4294901760
    %1877 = vmatpush1.msra.mxu0 %v1876
    %1878 = vmatprep.subr.mxu0 0.0
    %v1879 = vand.u32 %v97, 4294901760
    %v1880 = vsub.f32 %v97, %v1879
    %v1881 = vand.u32 %v1880, 4294901760
    %1882 = vmatpush1.msra.mxu0 %v1881
    %1883 = vmatprep.subr.mxu0 0.0
    %v1884 = vand.u32 %v98, 4294901760
    %v1885 = vsub.f32 %v98, %v1884
    %v1886 = vand.u32 %v1885, 4294901760
    %1887 = vmatpush1.msra.mxu0 %v1886
    %1888 = vmatprep.subr.mxu0 0.0
    %v1889 = vand.u32 %v99, 4294901760
    %v1890 = vsub.f32 %v99, %v1889
    %v1891 = vand.u32 %v1890, 4294901760
    %1892 = vmatpush1.msra.mxu0 %v1891
    %1893 = vmatprep.subr.mxu0 0.0
    %v1894 = vand.u32 %v100, 4294901760
    %v1895 = vsub.f32 %v100, %v1894
    %v1896 = vand.u32 %v1895, 4294901760
    %1897 = vmatpush1.msra.mxu0 %v1896
    %1898 = vmatprep.subr.mxu0 0.0
    %v1899 = vand.u32 %v101, 4294901760
    %v1900 = vsub.f32 %v101, %v1899
    %v1901 = vand.u32 %v1900, 4294901760
    %1902 = vmatpush1.msra.mxu0 %v1901
    %1903 = vmatprep.subr.mxu0 0.0
    %v1904 = vand.u32 %v102, 4294901760
    %v1905 = vsub.f32 %v102, %v1904
    %v1906 = vand.u32 %v1905, 4294901760
    %1907 = vmatpush1.msra.mxu0 %v1906
    %1908 = vmatprep.subr.mxu0 0.0
    %v1909 = vand.u32 %v103, 4294901760
    %v1910 = vsub.f32 %v103, %v1909
    %v1911 = vand.u32 %v1910, 4294901760
    %1912 = vmatpush1.msra.mxu0 %v1911
    %1913 = vmatprep.subr.mxu0 0.0
    %v1914 = vand.u32 %v104, 4294901760
    %v1915 = vsub.f32 %v104, %v1914
    %v1916 = vand.u32 %v1915, 4294901760
    %1917 = vmatpush1.msra.mxu0 %v1916
    %1918 = vmatprep.subr.mxu0 0.0
    %v1919 = vand.u32 %v105, 4294901760
    %v1920 = vsub.f32 %v105, %v1919
    %v1921 = vand.u32 %v1920, 4294901760
    %1922 = vmatpush1.msra.mxu0 %v1921
    %1923 = vmatprep.subr.mxu0 0.0
    %v1924 = vand.u32 %v106, 4294901760
    %v1925 = vsub.f32 %v106, %v1924
    %v1926 = vand.u32 %v1925, 4294901760
    %1927 = vmatpush1.msra.mxu0 %v1926
    %1928 = vmatprep.subr.mxu0 0.0
    %v1929 = vand.u32 %v107, 4294901760
    %v1930 = vsub.f32 %v107, %v1929
    %v1931 = vand.u32 %v1930, 4294901760
    %1932 = vmatpush1.msra.mxu0 %v1931
    %v1933 = vand.u32 %v271, 4294901760
    %1934 = vmatprep.mubr.f32.mxu0 %v1933
    %v1935 = vand.u32 %v267, 4294901760
    %1936 = vmatmul.mubr.f32.gmra.mrb[0].mxu0 %v1935
    %v1937 = vpop.f32.mrb[0].mxu0
    %v1938 = vadd.f32 %v1770, %v1937
    %v1939 = vpop.f32.mrb[0].mxu0
    %1940 = vdwg.mxu0
    %1941 = vmatprep.subr.mxu0 0.0
    %v1942 = vand.u32 %v76, 4294901760
    %1943 = vmatpush1.msra.mxu0 %v1942
    %1944 = vmatprep.subr.mxu0 0.0
    %v1945 = vand.u32 %v77, 4294901760
    %1946 = vmatpush1.msra.mxu0 %v1945
    %1947 = vmatprep.subr.mxu0 0.0
    %v1948 = vand.u32 %v78, 4294901760
    %1949 = vmatpush1.msra.mxu0 %v1948
    %1950 = vmatprep.subr.mxu0 0.0
    %v1951 = vand.u32 %v79, 4294901760
    %1952 = vmatpush1.msra.mxu0 %v1951
    %1953 = vmatprep.subr.mxu0 0.0
    %v1954 = vand.u32 %v80, 4294901760
    %1955 = vmatpush1.msra.mxu0 %v1954
    %1956 = vmatprep.subr.mxu0 0.0
    %v1957 = vand.u32 %v81, 4294901760
    %1958 = vmatpush1.msra.mxu0 %v1957
    %1959 = vmatprep.subr.mxu0 0.0
    %v1960 = vand.u32 %v82, 4294901760
    %1961 = vmatpush1.msra.mxu0 %v1960
    %1962 = vmatprep.subr.mxu0 0.0
    %v1963 = vand.u32 %v83, 4294901760
    %1964 = vmatpush1.msra.mxu0 %v1963
    %1965 = vmatprep.subr.mxu0 0.0
    %v1966 = vand.u32 %v84, 4294901760
    %1967 = vmatpush1.msra.mxu0 %v1966
    %1968 = vmatprep.subr.mxu0 0.0
    %v1969 = vand.u32 %v85, 4294901760
    %1970 = vmatpush1.msra.mxu0 %v1969
    %1971 = vmatprep.subr.mxu0 0.0
    %v1972 = vand.u32 %v86, 4294901760
    %1973 = vmatpush1.msra.mxu0 %v1972
    %1974 = vmatprep.subr.mxu0 0.0
    %v1975 = vand.u32 %v87, 4294901760
    %1976 = vmatpush1.msra.mxu0 %v1975
    %1977 = vmatprep.subr.mxu0 0.0
    %v1978 = vand.u32 %v88, 4294901760
    %1979 = vmatpush1.msra.mxu0 %v1978
    %1980 = vmatprep.subr.mxu0 0.0
    %v1981 = vand.u32 %v89, 4294901760
    %1982 = vmatpush1.msra.mxu0 %v1981
    %1983 = vmatprep.subr.mxu0 0.0
    %v1984 = vand.u32 %v90, 4294901760
    %1985 = vmatpush1.msra.mxu0 %v1984
    %1986 = vmatprep.subr.mxu0 0.0
    %v1987 = vand.u32 %v91, 4294901760
    %1988 = vmatpush1.msra.mxu0 %v1987
    %1989 = vmatprep.subr.mxu0 0.0
    %v1990 = vand.u32 %v92, 4294901760
    %1991 = vmatpush1.msra.mxu0 %v1990
    %1992 = vmatprep.subr.mxu0 0.0
    %v1993 = vand.u32 %v93, 4294901760
    %1994 = vmatpush1.msra.mxu0 %v1993
    %1995 = vmatprep.subr.mxu0 0.0
    %v1996 = vand.u32 %v94, 4294901760
    %1997 = vmatpush1.msra.mxu0 %v1996
    %1998 = vmatprep.subr.mxu0 0.0
    %v1999 = vand.u32 %v95, 4294901760
    %2000 = vmatpush1.msra.mxu0 %v1999
    %2001 = vmatprep.subr.mxu0 0.0
    %v2002 = vand.u32 %v96, 4294901760
    %2003 = vmatpush1.msra.mxu0 %v2002
    %2004 = vmatprep.subr.mxu0 0.0
    %v2005 = vand.u32 %v97, 4294901760
    %2006 = vmatpush1.msra.mxu0 %v2005
    %2007 = vmatprep.subr.mxu0 0.0
    %v2008 = vand.u32 %v98, 4294901760
    %2009 = vmatpush1.msra.mxu0 %v2008
    %2010 = vmatprep.subr.mxu0 0.0
    %v2011 = vand.u32 %v99, 4294901760
    %2012 = vmatpush1.msra.mxu0 %v2011
    %2013 = vmatprep.subr.mxu0 0.0
    %v2014 = vand.u32 %v100, 4294901760
    %2015 = vmatpush1.msra.mxu0 %v2014
    %2016 = vmatprep.subr.mxu0 0.0
    %v2017 = vand.u32 %v101, 4294901760
    %2018 = vmatpush1.msra.mxu0 %v2017
    %2019 = vmatprep.subr.mxu0 0.0
    %v2020 = vand.u32 %v102, 4294901760
    %2021 = vmatpush1.msra.mxu0 %v2020
    %2022 = vmatprep.subr.mxu0 0.0
    %v2023 = vand.u32 %v103, 4294901760
    %2024 = vmatpush1.msra.mxu0 %v2023
    %2025 = vmatprep.subr.mxu0 0.0
    %v2026 = vand.u32 %v104, 4294901760
    %2027 = vmatpush1.msra.mxu0 %v2026
    %2028 = vmatprep.subr.mxu0 0.0
    %v2029 = vand.u32 %v105, 4294901760
    %2030 = vmatpush1.msra.mxu0 %v2029
    %2031 = vmatprep.subr.mxu0 0.0
    %v2032 = vand.u32 %v106, 4294901760
    %2033 = vmatpush1.msra.mxu0 %v2032
    %2034 = vmatprep.subr.mxu0 0.0
    %v2035 = vand.u32 %v107, 4294901760
    %2036 = vmatpush1.msra.mxu0 %v2035
    %v2037 = vand.u32 %v271, 4294901760
    %2038 = vmatprep.mubr.f32.mxu0 %v2037
    %v2039 = vand.u32 %v267, 4294901760
    %2040 = vmatmul.mubr.f32.gmra.mrb[0].mxu0 %v2039
    %v2041 = vpop.f32.mrb[0].mxu0
    %v2042 = vadd.f32 %v1938, %v2041
    %v2043 = vpop.f32.mrb[0].mxu0
    %2044 = vdwg.mxu0
    %2045 = vmatprep.subr.mxu0 0.0
    %v2046 = vand.u32 %v108, 4294901760
    %2047 = vmatpush1.msra.mxu0 %v2046
    %2048 = vmatprep.subr.mxu0 0.0
    %v2049 = vand.u32 %v109, 4294901760
    %2050 = vmatpush1.msra.mxu0 %v2049
    %2051 = vmatprep.subr.mxu0 0.0
    %v2052 = vand.u32 %v110, 4294901760
    %2053 = vmatpush1.msra.mxu0 %v2052
    %2054 = vmatprep.subr.mxu0 0.0
    %v2055 = vand.u32 %v111, 4294901760
    %2056 = vmatpush1.msra.mxu0 %v2055
    %2057 = vmatprep.subr.mxu0 0.0
    %v2058 = vand.u32 %v112, 4294901760
    %2059 = vmatpush1.msra.mxu0 %v2058
    %2060 = vmatprep.subr.mxu0 0.0
    %v2061 = vand.u32 %v113, 4294901760
    %2062 = vmatpush1.msra.mxu0 %v2061
    %2063 = vmatprep.subr.mxu0 0.0
    %v2064 = vand.u32 %v114, 4294901760
    %2065 = vmatpush1.msra.mxu0 %v2064
    %2066 = vmatprep.subr.mxu0 0.0
    %v2067 = vand.u32 %v115, 4294901760
    %2068 = vmatpush1.msra.mxu0 %v2067
    %2069 = vmatprep.subr.mxu0 0.0
    %v2070 = vand.u32 %v116, 4294901760
    %2071 = vmatpush1.msra.mxu0 %v2070
    %2072 = vmatprep.subr.mxu0 0.0
    %v2073 = vand.u32 %v117, 4294901760
    %2074 = vmatpush1.msra.mxu0 %v2073
    %2075 = vmatprep.subr.mxu0 0.0
    %v2076 = vand.u32 %v118, 4294901760
    %2077 = vmatpush1.msra.mxu0 %v2076
    %2078 = vmatprep.subr.mxu0 0.0
    %v2079 = vand.u32 %v119, 4294901760
    %2080 = vmatpush1.msra.mxu0 %v2079
    %2081 = vmatprep.subr.mxu0 0.0
    %v2082 = vand.u32 %v120, 4294901760
    %2083 = vmatpush1.msra.mxu0 %v2082
    %2084 = vmatprep.subr.mxu0 0.0
    %v2085 = vand.u32 %v121, 4294901760
    %2086 = vmatpush1.msra.mxu0 %v2085
    %2087 = vmatprep.subr.mxu0 0.0
    %v2088 = vand.u32 %v122, 4294901760
    %2089 = vmatpush1.msra.mxu0 %v2088
    %2090 = vmatprep.subr.mxu0 0.0
    %v2091 = vand.u32 %v123, 4294901760
    %2092 = vmatpush1.msra.mxu0 %v2091
    %2093 = vmatprep.subr.mxu0 0.0
    %v2094 = vand.u32 %v124, 4294901760
    %2095 = vmatpush1.msra.mxu0 %v2094
    %2096 = vmatprep.subr.mxu0 0.0
    %v2097 = vand.u32 %v125, 4294901760
    %2098 = vmatpush1.msra.mxu0 %v2097
    %2099 = vmatprep.subr.mxu0 0.0
    %v2100 = vand.u32 %v126, 4294901760
    %2101 = vmatpush1.msra.mxu0 %v2100
    %2102 = vmatprep.subr.mxu0 0.0
    %v2103 = vand.u32 %v127, 4294901760
    %2104 = vmatpush1.msra.mxu0 %v2103
    %2105 = vmatprep.subr.mxu0 0.0
    %v2106 = vand.u32 %v128, 4294901760
    %2107 = vmatpush1.msra.mxu0 %v2106
    %2108 = vmatprep.subr.mxu0 0.0
    %v2109 = vand.u32 %v129, 4294901760
    %2110 = vmatpush1.msra.mxu0 %v2109
    %2111 = vmatprep.subr.mxu0 0.0
    %v2112 = vand.u32 %v130, 4294901760
    %2113 = vmatpush1.msra.mxu0 %v2112
    %2114 = vmatprep.subr.mxu0 0.0
    %v2115 = vand.u32 %v131, 4294901760
    %2116 = vmatpush1.msra.mxu0 %v2115
    %2117 = vmatprep.subr.mxu0 0.0
    %v2118 = vand.u32 %v132, 4294901760
    %2119 = vmatpush1.msra.mxu0 %v2118
    %2120 = vmatprep.subr.mxu0 0.0
    %v2121 = vand.u32 %v133, 4294901760
    %2122 = vmatpush1.msra.mxu0 %v2121
    %2123 = vmatprep.subr.mxu0 0.0
    %v2124 = vand.u32 %v134, 4294901760
    %2125 = vmatpush1.msra.mxu0 %v2124
    %2126 = vmatprep.subr.mxu0 0.0
    %v2127 = vand.u32 %v135, 4294901760
    %2128 = vmatpush1.msra.mxu0 %v2127
    %2129 = vmatprep.subr.mxu0 0.0
    %v2130 = vand.u32 %v136, 4294901760
    %2131 = vmatpush1.msra.mxu0 %v2130
    %2132 = vmatprep.subr.mxu0 0.0
    %v2133 = vand.u32 %v137, 4294901760
    %2134 = vmatpush1.msra.mxu0 %v2133
    %2135 = vmatprep.subr.mxu0 0.0
    %v2136 = vand.u32 %v138, 4294901760
    %2137 = vmatpush1.msra.mxu0 %v2136
    %2138 = vmatprep.subr.mxu0 0.0
    %v2139 = vand.u32 %v139, 4294901760
    %2140 = vmatpush1.msra.mxu0 %v2139
    %v2141 = vand.u32 %v279, 4294901760
    %v2142 = vsub.f32 %v279, %v2141
    %v2143 = vand.u32 %v2142, 4294901760
    %v2144 = vsub.f32 %v2142, %v2143
    %v2145 = vand.u32 %v2144, 4294901760
    %2146 = vmatprep.mubr.f32.mxu0 %v2145
    %v2147 = vand.u32 %v275, 4294901760
    %v2148 = vsub.f32 %v275, %v2147
    %v2149 = vand.u32 %v2148, 4294901760
    %v2150 = vsub.f32 %v2148, %v2149
    %v2151 = vand.u32 %v2150, 4294901760
    %2152 = vmatmul.mubr.f32.gmra.mrb[0].mxu0 %v2151
    %v2153 = vpop.f32.mrb[0].mxu0
    %v2154 = vadd.f32 %v2042, %v2153
    %v2155 = vpop.f32.mrb[0].mxu0
    %2156 = vdwg.mxu0
    %2157 = vmatprep.subr.mxu0 0.0
    %v2158 = vand.u32 %v108, 4294901760
    %v2159 = vsub.f32 %v108, %v2158
    %v2160 = vand.u32 %v2159, 4294901760
    %v2161 = vsub.f32 %v2159, %v2160
    %v2162 = vand.u32 %v2161, 4294901760
    %2163 = vmatpush1.msra.mxu0 %v2162
    %2164 = vmatprep.subr.mxu0 0.0
    %v2165 = vand.u32 %v109, 4294901760
    %v2166 = vsub.f32 %v109, %v2165
    %v2167 = vand.u32 %v2166, 4294901760
    %v2168 = vsub.f32 %v2166, %v2167
    %v2169 = vand.u32 %v2168, 4294901760
    %2170 = vmatpush1.msra.mxu0 %v2169
    %2171 = vmatprep.subr.mxu0 0.0
    %v2172 = vand.u32 %v110, 4294901760
    %v2173 = vsub.f32 %v110, %v2172
    %v2174 = vand.u32 %v2173, 4294901760
    %v2175 = vsub.f32 %v2173, %v2174
    %v2176 = vand.u32 %v2175, 4294901760
    %2177 = vmatpush1.msra.mxu0 %v2176
    %2178 = vmatprep.subr.mxu0 0.0
    %v2179 = vand.u32 %v111, 4294901760
    %v2180 = vsub.f32 %v111, %v2179
    %v2181 = vand.u32 %v2180, 4294901760
    %v2182 = vsub.f32 %v2180, %v2181
    %v2183 = vand.u32 %v2182, 4294901760
    %2184 = vmatpush1.msra.mxu0 %v2183
    %2185 = vmatprep.subr.mxu0 0.0
    %v2186 = vand.u32 %v112, 4294901760
    %v2187 = vsub.f32 %v112, %v2186
    %v2188 = vand.u32 %v2187, 4294901760
    %v2189 = vsub.f32 %v2187, %v2188
    %v2190 = vand.u32 %v2189, 4294901760
    %2191 = vmatpush1.msra.mxu0 %v2190
    %2192 = vmatprep.subr.mxu0 0.0
    %v2193 = vand.u32 %v113, 4294901760
    %v2194 = vsub.f32 %v113, %v2193
    %v2195 = vand.u32 %v2194, 4294901760
    %v2196 = vsub.f32 %v2194, %v2195
    %v2197 = vand.u32 %v2196, 4294901760
    %2198 = vmatpush1.msra.mxu0 %v2197
    %2199 = vmatprep.subr.mxu0 0.0
    %v2200 = vand.u32 %v114, 4294901760
    %v2201 = vsub.f32 %v114, %v2200
    %v2202 = vand.u32 %v2201, 4294901760
    %v2203 = vsub.f32 %v2201, %v2202
    %v2204 = vand.u32 %v2203, 4294901760
    %2205 = vmatpush1.msra.mxu0 %v2204
    %2206 = vmatprep.subr.mxu0 0.0
    %v2207 = vand.u32 %v115, 4294901760
    %v2208 = vsub.f32 %v115, %v2207
    %v2209 = vand.u32 %v2208, 4294901760
    %v2210 = vsub.f32 %v2208, %v2209
    %v2211 = vand.u32 %v2210, 4294901760
    %2212 = vmatpush1.msra.mxu0 %v2211
    %2213 = vmatprep.subr.mxu0 0.0
    %v2214 = vand.u32 %v116, 4294901760
    %v2215 = vsub.f32 %v116, %v2214
    %v2216 = vand.u32 %v2215, 4294901760
    %v2217 = vsub.f32 %v2215, %v2216
    %v2218 = vand.u32 %v2217, 4294901760
    %2219 = vmatpush1.msra.mxu0 %v2218
    %2220 = vmatprep.subr.mxu0 0.0
    %v2221 = vand.u32 %v117, 4294901760
    %v2222 = vsub.f32 %v117, %v2221
    %v2223 = vand.u32 %v2222, 4294901760
    %v2224 = vsub.f32 %v2222, %v2223
    %v2225 = vand.u32 %v2224, 4294901760
    %2226 = vmatpush1.msra.mxu0 %v2225
    %2227 = vmatprep.subr.mxu0 0.0
    %v2228 = vand.u32 %v118, 4294901760
    %v2229 = vsub.f32 %v118, %v2228
    %v2230 = vand.u32 %v2229, 4294901760
    %v2231 = vsub.f32 %v2229, %v2230
    %v2232 = vand.u32 %v2231, 4294901760
    %2233 = vmatpush1.msra.mxu0 %v2232
    %2234 = vmatprep.subr.mxu0 0.0
    %v2235 = vand.u32 %v119, 4294901760
    %v2236 = vsub.f32 %v119, %v2235
    %v2237 = vand.u32 %v2236, 4294901760
    %v2238 = vsub.f32 %v2236, %v2237
    %v2239 = vand.u32 %v2238, 4294901760
    %2240 = vmatpush1.msra.mxu0 %v2239
    %2241 = vmatprep.subr.mxu0 0.0
    %v2242 = vand.u32 %v120, 4294901760
    %v2243 = vsub.f32 %v120, %v2242
    %v2244 = vand.u32 %v2243, 4294901760
    %v2245 = vsub.f32 %v2243, %v2244
    %v2246 = vand.u32 %v2245, 4294901760
    %2247 = vmatpush1.msra.mxu0 %v2246
    %2248 = vmatprep.subr.mxu0 0.0
    %v2249 = vand.u32 %v121, 4294901760
    %v2250 = vsub.f32 %v121, %v2249
    %v2251 = vand.u32 %v2250, 4294901760
    %v2252 = vsub.f32 %v2250, %v2251
    %v2253 = vand.u32 %v2252, 4294901760
    %2254 = vmatpush1.msra.mxu0 %v2253
    %2255 = vmatprep.subr.mxu0 0.0
    %v2256 = vand.u32 %v122, 4294901760
    %v2257 = vsub.f32 %v122, %v2256
    %v2258 = vand.u32 %v2257, 4294901760
    %v2259 = vsub.f32 %v2257, %v2258
    %v2260 = vand.u32 %v2259, 4294901760
    %2261 = vmatpush1.msra.mxu0 %v2260
    %2262 = vmatprep.subr.mxu0 0.0
    %v2263 = vand.u32 %v123, 4294901760
    %v2264 = vsub.f32 %v123, %v2263
    %v2265 = vand.u32 %v2264, 4294901760
    %v2266 = vsub.f32 %v2264, %v2265
    %v2267 = vand.u32 %v2266, 4294901760
    %2268 = vmatpush1.msra.mxu0 %v2267
    %2269 = vmatprep.subr.mxu0 0.0
    %v2270 = vand.u32 %v124, 4294901760
    %v2271 = vsub.f32 %v124, %v2270
    %v2272 = vand.u32 %v2271, 4294901760
    %v2273 = vsub.f32 %v2271, %v2272
    %v2274 = vand.u32 %v2273, 4294901760
    %2275 = vmatpush1.msra.mxu0 %v2274
    %2276 = vmatprep.subr.mxu0 0.0
    %v2277 = vand.u32 %v125, 4294901760
    %v2278 = vsub.f32 %v125, %v2277
    %v2279 = vand.u32 %v2278, 4294901760
    %v2280 = vsub.f32 %v2278, %v2279
    %v2281 = vand.u32 %v2280, 4294901760
    %2282 = vmatpush1.msra.mxu0 %v2281
    %2283 = vmatprep.subr.mxu0 0.0
    %v2284 = vand.u32 %v126, 4294901760
    %v2285 = vsub.f32 %v126, %v2284
    %v2286 = vand.u32 %v2285, 4294901760
    %v2287 = vsub.f32 %v2285, %v2286
    %v2288 = vand.u32 %v2287, 4294901760
    %2289 = vmatpush1.msra.mxu0 %v2288
    %2290 = vmatprep.subr.mxu0 0.0
    %v2291 = vand.u32 %v127, 4294901760
    %v2292 = vsub.f32 %v127, %v2291
    %v2293 = vand.u32 %v2292, 4294901760
    %v2294 = vsub.f32 %v2292, %v2293
    %v2295 = vand.u32 %v2294, 4294901760
    %2296 = vmatpush1.msra.mxu0 %v2295
    %2297 = vmatprep.subr.mxu0 0.0
    %v2298 = vand.u32 %v128, 4294901760
    %v2299 = vsub.f32 %v128, %v2298
    %v2300 = vand.u32 %v2299, 4294901760
    %v2301 = vsub.f32 %v2299, %v2300
    %v2302 = vand.u32 %v2301, 4294901760
    %2303 = vmatpush1.msra.mxu0 %v2302
    %2304 = vmatprep.subr.mxu0 0.0
    %v2305 = vand.u32 %v129, 4294901760
    %v2306 = vsub.f32 %v129, %v2305
    %v2307 = vand.u32 %v2306, 4294901760
    %v2308 = vsub.f32 %v2306, %v2307
    %v2309 = vand.u32 %v2308, 4294901760
    %2310 = vmatpush1.msra.mxu0 %v2309
    %2311 = vmatprep.subr.mxu0 0.0
    %v2312 = vand.u32 %v130, 4294901760
    %v2313 = vsub.f32 %v130, %v2312
    %v2314 = vand.u32 %v2313, 4294901760
    %v2315 = vsub.f32 %v2313, %v2314
    %v2316 = vand.u32 %v2315, 4294901760
    %2317 = vmatpush1.msra.mxu0 %v2316
    %2318 = vmatprep.subr.mxu0 0.0
    %v2319 = vand.u32 %v131, 4294901760
    %v2320 = vsub.f32 %v131, %v2319
    %v2321 = vand.u32 %v2320, 4294901760
    %v2322 = vsub.f32 %v2320, %v2321
    %v2323 = vand.u32 %v2322, 4294901760
    %2324 = vmatpush1.msra.mxu0 %v2323
    %2325 = vmatprep.subr.mxu0 0.0
    %v2326 = vand.u32 %v132, 4294901760
    %v2327 = vsub.f32 %v132, %v2326
    %v2328 = vand.u32 %v2327, 4294901760
    %v2329 = vsub.f32 %v2327, %v2328
    %v2330 = vand.u32 %v2329, 4294901760
    %2331 = vmatpush1.msra.mxu0 %v2330
    %2332 = vmatprep.subr.mxu0 0.0
    %v2333 = vand.u32 %v133, 4294901760
    %v2334 = vsub.f32 %v133, %v2333
    %v2335 = vand.u32 %v2334, 4294901760
    %v2336 = vsub.f32 %v2334, %v2335
    %v2337 = vand.u32 %v2336, 4294901760
    %2338 = vmatpush1.msra.mxu0 %v2337
    %2339 = vmatprep.subr.mxu0 0.0
    %v2340 = vand.u32 %v134, 4294901760
    %v2341 = vsub.f32 %v134, %v2340
    %v2342 = vand.u32 %v2341, 4294901760
    %v2343 = vsub.f32 %v2341, %v2342
    %v2344 = vand.u32 %v2343, 4294901760
    %2345 = vmatpush1.msra.mxu0 %v2344
    %2346 = vmatprep.subr.mxu0 0.0
    %v2347 = vand.u32 %v135, 4294901760
    %v2348 = vsub.f32 %v135, %v2347
    %v2349 = vand.u32 %v2348, 4294901760
    %v2350 = vsub.f32 %v2348, %v2349
    %v2351 = vand.u32 %v2350, 4294901760
    %2352 = vmatpush1.msra.mxu0 %v2351
    %2353 = vmatprep.subr.mxu0 0.0
    %v2354 = vand.u32 %v136, 4294901760
    %v2355 = vsub.f32 %v136, %v2354
    %v2356 = vand.u32 %v2355, 4294901760
    %v2357 = vsub.f32 %v2355, %v2356
    %v2358 = vand.u32 %v2357, 4294901760
    %2359 = vmatpush1.msra.mxu0 %v2358
    %2360 = vmatprep.subr.mxu0 0.0
    %v2361 = vand.u32 %v137, 4294901760
    %v2362 = vsub.f32 %v137, %v2361
    %v2363 = vand.u32 %v2362, 4294901760
    %v2364 = vsub.f32 %v2362, %v2363
    %v2365 = vand.u32 %v2364, 4294901760
    %2366 = vmatpush1.msra.mxu0 %v2365
    %2367 = vmatprep.subr.mxu0 0.0
    %v2368 = vand.u32 %v138, 4294901760
    %v2369 = vsub.f32 %v138, %v2368
    %v2370 = vand.u32 %v2369, 4294901760
    %v2371 = vsub.f32 %v2369, %v2370
    %v2372 = vand.u32 %v2371, 4294901760
    %2373 = vmatpush1.msra.mxu0 %v2372
    %2374 = vmatprep.subr.mxu0 0.0
    %v2375 = vand.u32 %v139, 4294901760
    %v2376 = vsub.f32 %v139, %v2375
    %v2377 = vand.u32 %v2376, 4294901760
    %v2378 = vsub.f32 %v2376, %v2377
    %v2379 = vand.u32 %v2378, 4294901760
    %2380 = vmatpush1.msra.mxu0 %v2379
    %v2381 = vand.u32 %v279, 4294901760
    %2382 = vmatprep.mubr.f32.mxu0 %v2381
    %v2383 = vand.u32 %v275, 4294901760
    %2384 = vmatmul.mubr.f32.gmra.mrb[0].mxu0 %v2383
    %v2385 = vpop.f32.mrb[0].mxu0
    %v2386 = vadd.f32 %v2154, %v2385
    %v2387 = vpop.f32.mrb[0].mxu0
    %2388 = vdwg.mxu0
    %2389 = vmatprep.subr.mxu0 0.0
    %v2390 = vand.u32 %v108, 4294901760
    %v2391 = vsub.f32 %v108, %v2390
    %2392 = vmatpush1.msra.mxu0 %v2391
    %2393 = vmatprep.subr.mxu0 0.0
    %v2394 = vand.u32 %v109, 4294901760
    %v2395 = vsub.f32 %v109, %v2394
    %2396 = vmatpush1.msra.mxu0 %v2395
    %2397 = vmatprep.subr.mxu0 0.0
    %v2398 = vand.u32 %v110, 4294901760
    %v2399 = vsub.f32 %v110, %v2398
    %2400 = vmatpush1.msra.mxu0 %v2399
    %2401 = vmatprep.subr.mxu0 0.0
    %v2402 = vand.u32 %v111, 4294901760
    %v2403 = vsub.f32 %v111, %v2402
    %2404 = vmatpush1.msra.mxu0 %v2403
    %2405 = vmatprep.subr.mxu0 0.0
    %v2406 = vand.u32 %v112, 4294901760
    %v2407 = vsub.f32 %v112, %v2406
    %2408 = vmatpush1.msra.mxu0 %v2407
    %2409 = vmatprep.subr.mxu0 0.0
    %v2410 = vand.u32 %v113, 4294901760
    %v2411 = vsub.f32 %v113, %v2410
    %2412 = vmatpush1.msra.mxu0 %v2411
    %2413 = vmatprep.subr.mxu0 0.0
    %v2414 = vand.u32 %v114, 4294901760
    %v2415 = vsub.f32 %v114, %v2414
    %2416 = vmatpush1.msra.mxu0 %v2415
    %2417 = vmatprep.subr.mxu0 0.0
    %v2418 = vand.u32 %v115, 4294901760
    %v2419 = vsub.f32 %v115, %v2418
    %2420 = vmatpush1.msra.mxu0 %v2419
    %2421 = vmatprep.subr.mxu0 0.0
    %v2422 = vand.u32 %v116, 4294901760
    %v2423 = vsub.f32 %v116, %v2422
    %2424 = vmatpush1.msra.mxu0 %v2423
    %2425 = vmatprep.subr.mxu0 0.0
    %v2426 = vand.u32 %v117, 4294901760
    %v2427 = vsub.f32 %v117, %v2426
    %2428 = vmatpush1.msra.mxu0 %v2427
    %2429 = vmatprep.subr.mxu0 0.0
    %v2430 = vand.u32 %v118, 4294901760
    %v2431 = vsub.f32 %v118, %v2430
    %2432 = vmatpush1.msra.mxu0 %v2431
    %2433 = vmatprep.subr.mxu0 0.0
    %v2434 = vand.u32 %v119, 4294901760
    %v2435 = vsub.f32 %v119, %v2434
    %2436 = vmatpush1.msra.mxu0 %v2435
    %2437 = vmatprep.subr.mxu0 0.0
    %v2438 = vand.u32 %v120, 4294901760
    %v2439 = vsub.f32 %v120, %v2438
    %2440 = vmatpush1.msra.mxu0 %v2439
    %2441 = vmatprep.subr.mxu0 0.0
    %v2442 = vand.u32 %v121, 4294901760
    %v2443 = vsub.f32 %v121, %v2442
    %2444 = vmatpush1.msra.mxu0 %v2443
    %2445 = vmatprep.subr.mxu0 0.0
    %v2446 = vand.u32 %v122, 4294901760
    %v2447 = vsub.f32 %v122, %v2446
    %2448 = vmatpush1.msra.mxu0 %v2447
    %2449 = vmatprep.subr.mxu0 0.0
    %v2450 = vand.u32 %v123, 4294901760
    %v2451 = vsub.f32 %v123, %v2450
    %2452 = vmatpush1.msra.mxu0 %v2451
    %2453 = vmatprep.subr.mxu0 0.0
    %v2454 = vand.u32 %v124, 4294901760
    %v2455 = vsub.f32 %v124, %v2454
    %2456 = vmatpush1.msra.mxu0 %v2455
    %2457 = vmatprep.subr.mxu0 0.0
    %v2458 = vand.u32 %v125, 4294901760
    %v2459 = vsub.f32 %v125, %v2458
    %2460 = vmatpush1.msra.mxu0 %v2459
    %2461 = vmatprep.subr.mxu0 0.0
    %v2462 = vand.u32 %v126, 4294901760
    %v2463 = vsub.f32 %v126, %v2462
    %2464 = vmatpush1.msra.mxu0 %v2463
    %2465 = vmatprep.subr.mxu0 0.0
    %v2466 = vand.u32 %v127, 4294901760
    %v2467 = vsub.f32 %v127, %v2466
    %2468 = vmatpush1.msra.mxu0 %v2467
    %2469 = vmatprep.subr.mxu0 0.0
    %v2470 = vand.u32 %v128, 4294901760
    %v2471 = vsub.f32 %v128, %v2470
    %2472 = vmatpush1.msra.mxu0 %v2471
    %2473 = vmatprep.subr.mxu0 0.0
    %v2474 = vand.u32 %v129, 4294901760
    %v2475 = vsub.f32 %v129, %v2474
    %2476 = vmatpush1.msra.mxu0 %v2475
    %2477 = vmatprep.subr.mxu0 0.0
    %v2478 = vand.u32 %v130, 4294901760
    %v2479 = vsub.f32 %v130, %v2478
    %2480 = vmatpush1.msra.mxu0 %v2479
    %2481 = vmatprep.subr.mxu0 0.0
    %v2482 = vand.u32 %v131, 4294901760
    %v2483 = vsub.f32 %v131, %v2482
    %2484 = vmatpush1.msra.mxu0 %v2483
    %2485 = vmatprep.subr.mxu0 0.0
    %v2486 = vand.u32 %v132, 4294901760
    %v2487 = vsub.f32 %v132, %v2486
    %2488 = vmatpush1.msra.mxu0 %v2487
    %2489 = vmatprep.subr.mxu0 0.0
    %v2490 = vand.u32 %v133, 4294901760
    %v2491 = vsub.f32 %v133, %v2490
    %2492 = vmatpush1.msra.mxu0 %v2491
    %2493 = vmatprep.subr.mxu0 0.0
    %v2494 = vand.u32 %v134, 4294901760
    %v2495 = vsub.f32 %v134, %v2494
    %2496 = vmatpush1.msra.mxu0 %v2495
    %2497 = vmatprep.subr.mxu0 0.0
    %v2498 = vand.u32 %v135, 4294901760
    %v2499 = vsub.f32 %v135, %v2498
    %2500 = vmatpush1.msra.mxu0 %v2499
    %2501 = vmatprep.subr.mxu0 0.0
    %v2502 = vand.u32 %v136, 4294901760
    %v2503 = vsub.f32 %v136, %v2502
    %2504 = vmatpush1.msra.mxu0 %v2503
    %2505 = vmatprep.subr.mxu0 0.0
    %v2506 = vand.u32 %v137, 4294901760
    %v2507 = vsub.f32 %v137, %v2506
    %2508 = vmatpush1.msra.mxu0 %v2507
    %2509 = vmatprep.subr.mxu0 0.0
    %v2510 = vand.u32 %v138, 4294901760
    %v2511 = vsub.f32 %v138, %v2510
    %2512 = vmatpush1.msra.mxu0 %v2511
    %2513 = vmatprep.subr.mxu0 0.0
    %v2514 = vand.u32 %v139, 4294901760
    %v2515 = vsub.f32 %v139, %v2514
    %2516 = vmatpush1.msra.mxu0 %v2515
    %v2517 = vand.u32 %v279, 4294901760
    %v2518 = vsub.f32 %v279, %v2517
    %2519 = vmatprep.mubr.f32.mxu0 %v2518
    %v2520 = vand.u32 %v275, 4294901760
    %v2521 = vsub.f32 %v275, %v2520
    %2522 = vmatmul.mubr.f32.gmra.mrb[0].mxu0 %v2521
    %v2523 = vpop.f32.mrb[0].mxu0
    %v2524 = vadd.f32 %v2386, %v2523
    %v2525 = vpop.f32.mrb[0].mxu0
    %2526 = vdwg.mxu0
    %2527 = vmatprep.subr.mxu0 0.0
    %v2528 = vand.u32 %v108, 4294901760
    %2529 = vmatpush1.msra.mxu0 %v2528
    %2530 = vmatprep.subr.mxu0 0.0
    %v2531 = vand.u32 %v109, 4294901760
    %2532 = vmatpush1.msra.mxu0 %v2531
    %2533 = vmatprep.subr.mxu0 0.0
    %v2534 = vand.u32 %v110, 4294901760
    %2535 = vmatpush1.msra.mxu0 %v2534
    %2536 = vmatprep.subr.mxu0 0.0
    %v2537 = vand.u32 %v111, 4294901760
    %2538 = vmatpush1.msra.mxu0 %v2537
    %2539 = vmatprep.subr.mxu0 0.0
    %v2540 = vand.u32 %v112, 4294901760
    %2541 = vmatpush1.msra.mxu0 %v2540
    %2542 = vmatprep.subr.mxu0 0.0
    %v2543 = vand.u32 %v113, 4294901760
    %2544 = vmatpush1.msra.mxu0 %v2543
    %2545 = vmatprep.subr.mxu0 0.0
    %v2546 = vand.u32 %v114, 4294901760
    %2547 = vmatpush1.msra.mxu0 %v2546
    %2548 = vmatprep.subr.mxu0 0.0
    %v2549 = vand.u32 %v115, 4294901760
    %2550 = vmatpush1.msra.mxu0 %v2549
    %2551 = vmatprep.subr.mxu0 0.0
    %v2552 = vand.u32 %v116, 4294901760
    %2553 = vmatpush1.msra.mxu0 %v2552
    %2554 = vmatprep.subr.mxu0 0.0
    %v2555 = vand.u32 %v117, 4294901760
    %2556 = vmatpush1.msra.mxu0 %v2555
    %2557 = vmatprep.subr.mxu0 0.0
    %v2558 = vand.u32 %v118, 4294901760
    %2559 = vmatpush1.msra.mxu0 %v2558
    %2560 = vmatprep.subr.mxu0 0.0
    %v2561 = vand.u32 %v119, 4294901760
    %2562 = vmatpush1.msra.mxu0 %v2561
    %2563 = vmatprep.subr.mxu0 0.0
    %v2564 = vand.u32 %v120, 4294901760
    %2565 = vmatpush1.msra.mxu0 %v2564
    %2566 = vmatprep.subr.mxu0 0.0
    %v2567 = vand.u32 %v121, 4294901760
    %2568 = vmatpush1.msra.mxu0 %v2567
    %2569 = vmatprep.subr.mxu0 0.0
    %v2570 = vand.u32 %v122, 4294901760
    %2571 = vmatpush1.msra.mxu0 %v2570
    %2572 = vmatprep.subr.mxu0 0.0
    %v2573 = vand.u32 %v123, 4294901760
    %2574 = vmatpush1.msra.mxu0 %v2573
    %2575 = vmatprep.subr.mxu0 0.0
    %v2576 = vand.u32 %v124, 4294901760
    %2577 = vmatpush1.msra.mxu0 %v2576
    %2578 = vmatprep.subr.mxu0 0.0
    %v2579 = vand.u32 %v125, 4294901760
    %2580 = vmatpush1.msra.mxu0 %v2579
    %2581 = vmatprep.subr.mxu0 0.0
    %v2582 = vand.u32 %v126, 4294901760
    %2583 = vmatpush1.msra.mxu0 %v2582
    %2584 = vmatprep.subr.mxu0 0.0
    %v2585 = vand.u32 %v127, 4294901760
    %2586 = vmatpush1.msra.mxu0 %v2585
    %2587 = vmatprep.subr.mxu0 0.0
    %v2588 = vand.u32 %v128, 4294901760
    %2589 = vmatpush1.msra.mxu0 %v2588
    %2590 = vmatprep.subr.mxu0 0.0
    %v2591 = vand.u32 %v129, 4294901760
    %2592 = vmatpush1.msra.mxu0 %v2591
    %2593 = vmatprep.subr.mxu0 0.0
    %v2594 = vand.u32 %v130, 4294901760
    %2595 = vmatpush1.msra.mxu0 %v2594
    %2596 = vmatprep.subr.mxu0 0.0
    %v2597 = vand.u32 %v131, 4294901760
    %2598 = vmatpush1.msra.mxu0 %v2597
    %2599 = vmatprep.subr.mxu0 0.0
    %v2600 = vand.u32 %v132, 4294901760
    %2601 = vmatpush1.msra.mxu0 %v2600
    %2602 = vmatprep.subr.mxu0 0.0
    %v2603 = vand.u32 %v133, 4294901760
    %2604 = vmatpush1.msra.mxu0 %v2603
    %2605 = vmatprep.subr.mxu0 0.0
    %v2606 = vand.u32 %v134, 4294901760
    %2607 = vmatpush1.msra.mxu0 %v2606
    %2608 = vmatprep.subr.mxu0 0.0
    %v2609 = vand.u32 %v135, 4294901760
    %2610 = vmatpush1.msra.mxu0 %v2609
    %2611 = vmatprep.subr.mxu0 0.0
    %v2612 = vand.u32 %v136, 4294901760
    %2613 = vmatpush1.msra.mxu0 %v2612
    %2614 = vmatprep.subr.mxu0 0.0
    %v2615 = vand.u32 %v137, 4294901760
    %2616 = vmatpush1.msra.mxu0 %v2615
    %2617 = vmatprep.subr.mxu0 0.0
    %v2618 = vand.u32 %v138, 4294901760
    %2619 = vmatpush1.msra.mxu0 %v2618
    %2620 = vmatprep.subr.mxu0 0.0
    %v2621 = vand.u32 %v139, 4294901760
    %2622 = vmatpush1.msra.mxu0 %v2621
    %v2623 = vand.u32 %v279, 4294901760
    %v2624 = vsub.f32 %v279, %v2623
    %v2625 = vand.u32 %v2624, 4294901760
    %2626 = vmatprep.mubr.f32.mxu0 %v2625
    %v2627 = vand.u32 %v275, 4294901760
    %v2628 = vsub.f32 %v275, %v2627
    %v2629 = vand.u32 %v2628, 4294901760
    %2630 = vmatmul.mubr.f32.gmra.mrb[0].mxu0 %v2629
    %v2631 = vpop.f32.mrb[0].mxu0
    %v2632 = vadd.f32 %v2524, %v2631
    %v2633 = vpop.f32.mrb[0].mxu0
    %2634 = vdwg.mxu0
    %2635 = vmatprep.subr.mxu0 0.0
    %v2636 = vand.u32 %v108, 4294901760
    %v2637 = vsub.f32 %v108, %v2636
    %v2638 = vand.u32 %v2637, 4294901760
    %2639 = vmatpush1.msra.mxu0 %v2638
    %2640 = vmatprep.subr.mxu0 0.0
    %v2641 = vand.u32 %v109, 4294901760
    %v2642 = vsub.f32 %v109, %v2641
    %v2643 = vand.u32 %v2642, 4294901760
    %2644 = vmatpush1.msra.mxu0 %v2643
    %2645 = vmatprep.subr.mxu0 0.0
    %v2646 = vand.u32 %v110, 4294901760
    %v2647 = vsub.f32 %v110, %v2646
    %v2648 = vand.u32 %v2647, 4294901760
    %2649 = vmatpush1.msra.mxu0 %v2648
    %2650 = vmatprep.subr.mxu0 0.0
    %v2651 = vand.u32 %v111, 4294901760
    %v2652 = vsub.f32 %v111, %v2651
    %v2653 = vand.u32 %v2652, 4294901760
    %2654 = vmatpush1.msra.mxu0 %v2653
    %2655 = vmatprep.subr.mxu0 0.0
    %v2656 = vand.u32 %v112, 4294901760
    %v2657 = vsub.f32 %v112, %v2656
    %v2658 = vand.u32 %v2657, 4294901760
    %2659 = vmatpush1.msra.mxu0 %v2658
    %2660 = vmatprep.subr.mxu0 0.0
    %v2661 = vand.u32 %v113, 4294901760
    %v2662 = vsub.f32 %v113, %v2661
    %v2663 = vand.u32 %v2662, 4294901760
    %2664 = vmatpush1.msra.mxu0 %v2663
    %2665 = vmatprep.subr.mxu0 0.0
    %v2666 = vand.u32 %v114, 4294901760
    %v2667 = vsub.f32 %v114, %v2666
    %v2668 = vand.u32 %v2667, 4294901760
    %2669 = vmatpush1.msra.mxu0 %v2668
    %2670 = vmatprep.subr.mxu0 0.0
    %v2671 = vand.u32 %v115, 4294901760
    %v2672 = vsub.f32 %v115, %v2671
    %v2673 = vand.u32 %v2672, 4294901760
    %2674 = vmatpush1.msra.mxu0 %v2673
    %2675 = vmatprep.subr.mxu0 0.0
    %v2676 = vand.u32 %v116, 4294901760
    %v2677 = vsub.f32 %v116, %v2676
    %v2678 = vand.u32 %v2677, 4294901760
    %2679 = vmatpush1.msra.mxu0 %v2678
    %2680 = vmatprep.subr.mxu0 0.0
    %v2681 = vand.u32 %v117, 4294901760
    %v2682 = vsub.f32 %v117, %v2681
    %v2683 = vand.u32 %v2682, 4294901760
    %2684 = vmatpush1.msra.mxu0 %v2683
    %2685 = vmatprep.subr.mxu0 0.0
    %v2686 = vand.u32 %v118, 4294901760
    %v2687 = vsub.f32 %v118, %v2686
    %v2688 = vand.u32 %v2687, 4294901760
    %2689 = vmatpush1.msra.mxu0 %v2688
    %2690 = vmatprep.subr.mxu0 0.0
    %v2691 = vand.u32 %v119, 4294901760
    %v2692 = vsub.f32 %v119, %v2691
    %v2693 = vand.u32 %v2692, 4294901760
    %2694 = vmatpush1.msra.mxu0 %v2693
    %2695 = vmatprep.subr.mxu0 0.0
    %v2696 = vand.u32 %v120, 4294901760
    %v2697 = vsub.f32 %v120, %v2696
    %v2698 = vand.u32 %v2697, 4294901760
    %2699 = vmatpush1.msra.mxu0 %v2698
    %2700 = vmatprep.subr.mxu0 0.0
    %v2701 = vand.u32 %v121, 4294901760
    %v2702 = vsub.f32 %v121, %v2701
    %v2703 = vand.u32 %v2702, 4294901760
    %2704 = vmatpush1.msra.mxu0 %v2703
    %2705 = vmatprep.subr.mxu0 0.0
    %v2706 = vand.u32 %v122, 4294901760
    %v2707 = vsub.f32 %v122, %v2706
    %v2708 = vand.u32 %v2707, 4294901760
    %2709 = vmatpush1.msra.mxu0 %v2708
    %2710 = vmatprep.subr.mxu0 0.0
    %v2711 = vand.u32 %v123, 4294901760
    %v2712 = vsub.f32 %v123, %v2711
    %v2713 = vand.u32 %v2712, 4294901760
    %2714 = vmatpush1.msra.mxu0 %v2713
    %2715 = vmatprep.subr.mxu0 0.0
    %v2716 = vand.u32 %v124, 4294901760
    %v2717 = vsub.f32 %v124, %v2716
    %v2718 = vand.u32 %v2717, 4294901760
    %2719 = vmatpush1.msra.mxu0 %v2718
    %2720 = vmatprep.subr.mxu0 0.0
    %v2721 = vand.u32 %v125, 4294901760
    %v2722 = vsub.f32 %v125, %v2721
    %v2723 = vand.u32 %v2722, 4294901760
    %2724 = vmatpush1.msra.mxu0 %v2723
    %2725 = vmatprep.subr.mxu0 0.0
    %v2726 = vand.u32 %v126, 4294901760
    %v2727 = vsub.f32 %v126, %v2726
    %v2728 = vand.u32 %v2727, 4294901760
    %2729 = vmatpush1.msra.mxu0 %v2728
    %2730 = vmatprep.subr.mxu0 0.0
    %v2731 = vand.u32 %v127, 4294901760
    %v2732 = vsub.f32 %v127, %v2731
    %v2733 = vand.u32 %v2732, 4294901760
    %2734 = vmatpush1.msra.mxu0 %v2733
    %2735 = vmatprep.subr.mxu0 0.0
    %v2736 = vand.u32 %v128, 4294901760
    %v2737 = vsub.f32 %v128, %v2736
    %v2738 = vand.u32 %v2737, 4294901760
    %2739 = vmatpush1.msra.mxu0 %v2738
    %2740 = vmatprep.subr.mxu0 0.0
    %v2741 = vand.u32 %v129, 4294901760
    %v2742 = vsub.f32 %v129, %v2741
    %v2743 = vand.u32 %v2742, 4294901760
    %2744 = vmatpush1.msra.mxu0 %v2743
    %2745 = vmatprep.subr.mxu0 0.0
    %v2746 = vand.u32 %v130, 4294901760
    %v2747 = vsub.f32 %v130, %v2746
    %v2748 = vand.u32 %v2747, 4294901760
    %2749 = vmatpush1.msra.mxu0 %v2748
    %2750 = vmatprep.subr.mxu0 0.0
    %v2751 = vand.u32 %v131, 4294901760
    %v2752 = vsub.f32 %v131, %v2751
    %v2753 = vand.u32 %v2752, 4294901760
    %2754 = vmatpush1.msra.mxu0 %v2753
    %2755 = vmatprep.subr.mxu0 0.0
    %v2756 = vand.u32 %v132, 4294901760
    %v2757 = vsub.f32 %v132, %v2756
    %v2758 = vand.u32 %v2757, 4294901760
    %2759 = vmatpush1.msra.mxu0 %v2758
    %2760 = vmatprep.subr.mxu0 0.0
    %v2761 = vand.u32 %v133, 4294901760
    %v2762 = vsub.f32 %v133, %v2761
    %v2763 = vand.u32 %v2762, 4294901760
    %2764 = vmatpush1.msra.mxu0 %v2763
    %2765 = vmatprep.subr.mxu0 0.0
    %v2766 = vand.u32 %v134, 4294901760
    %v2767 = vsub.f32 %v134, %v2766
    %v2768 = vand.u32 %v2767, 4294901760
    %2769 = vmatpush1.msra.mxu0 %v2768
    %2770 = vmatprep.subr.mxu0 0.0
    %v2771 = vand.u32 %v135, 4294901760
    %v2772 = vsub.f32 %v135, %v2771
    %v2773 = vand.u32 %v2772, 4294901760
    %2774 = vmatpush1.msra.mxu0 %v2773
    %2775 = vmatprep.subr.mxu0 0.0
    %v2776 = vand.u32 %v136, 4294901760
    %v2777 = vsub.f32 %v136, %v2776
    %v2778 = vand.u32 %v2777, 4294901760
    %2779 = vmatpush1.msra.mxu0 %v2778
    %2780 = vmatprep.subr.mxu0 0.0
    %v2781 = vand.u32 %v137, 4294901760
    %v2782 = vsub.f32 %v137, %v2781
    %v2783 = vand.u32 %v2782, 4294901760
    %2784 = vmatpush1.msra.mxu0 %v2783
    %2785 = vmatprep.subr.mxu0 0.0
    %v2786 = vand.u32 %v138, 4294901760
    %v2787 = vsub.f32 %v138, %v2786
    %v2788 = vand.u32 %v2787, 4294901760
    %2789 = vmatpush1.msra.mxu0 %v2788
    %2790 = vmatprep.subr.mxu0 0.0
    %v2791 = vand.u32 %v139, 4294901760
    %v2792 = vsub.f32 %v139, %v2791
    %v2793 = vand.u32 %v2792, 4294901760
    %2794 = vmatpush1.msra.mxu0 %v2793
    %v2795 = vand.u32 %v279, 4294901760
    %2796 = vmatprep.mubr.f32.mxu0 %v2795
    %v2797 = vand.u32 %v275, 4294901760
    %2798 = vmatmul.mubr.f32.gmra.mrb[0].mxu0 %v2797
    %v2799 = vpop.f32.mrb[0].mxu0
    %v2800 = vadd.f32 %v2632, %v2799
    %v2801 = vpop.f32.mrb[0].mxu0
    %2802 = vdwg.mxu0
    %2803 = vmatprep.subr.mxu0 0.0
    %v2804 = vand.u32 %v108, 4294901760
    %2805 = vmatpush1.msra.mxu0 %v2804
    %2806 = vmatprep.subr.mxu0 0.0
    %v2807 = vand.u32 %v109, 4294901760
    %2808 = vmatpush1.msra.mxu0 %v2807
    %2809 = vmatprep.subr.mxu0 0.0
    %v2810 = vand.u32 %v110, 4294901760
    %2811 = vmatpush1.msra.mxu0 %v2810
    %2812 = vmatprep.subr.mxu0 0.0
    %v2813 = vand.u32 %v111, 4294901760
    %2814 = vmatpush1.msra.mxu0 %v2813
    %2815 = vmatprep.subr.mxu0 0.0
    %v2816 = vand.u32 %v112, 4294901760
    %2817 = vmatpush1.msra.mxu0 %v2816
    %2818 = vmatprep.subr.mxu0 0.0
    %v2819 = vand.u32 %v113, 4294901760
    %2820 = vmatpush1.msra.mxu0 %v2819
    %2821 = vmatprep.subr.mxu0 0.0
    %v2822 = vand.u32 %v114, 4294901760
    %2823 = vmatpush1.msra.mxu0 %v2822
    %2824 = vmatprep.subr.mxu0 0.0
    %v2825 = vand.u32 %v115, 4294901760
    %2826 = vmatpush1.msra.mxu0 %v2825
    %2827 = vmatprep.subr.mxu0 0.0
    %v2828 = vand.u32 %v116, 4294901760
    %2829 = vmatpush1.msra.mxu0 %v2828
    %2830 = vmatprep.subr.mxu0 0.0
    %v2831 = vand.u32 %v117, 4294901760
    %2832 = vmatpush1.msra.mxu0 %v2831
    %2833 = vmatprep.subr.mxu0 0.0
    %v2834 = vand.u32 %v118, 4294901760
    %2835 = vmatpush1.msra.mxu0 %v2834
    %2836 = vmatprep.subr.mxu0 0.0
    %v2837 = vand.u32 %v119, 4294901760
    %2838 = vmatpush1.msra.mxu0 %v2837
    %2839 = vmatprep.subr.mxu0 0.0
    %v2840 = vand.u32 %v120, 4294901760
    %2841 = vmatpush1.msra.mxu0 %v2840
    %2842 = vmatprep.subr.mxu0 0.0
    %v2843 = vand.u32 %v121, 4294901760
    %2844 = vmatpush1.msra.mxu0 %v2843
    %2845 = vmatprep.subr.mxu0 0.0
    %v2846 = vand.u32 %v122, 4294901760
    %2847 = vmatpush1.msra.mxu0 %v2846
    %2848 = vmatprep.subr.mxu0 0.0
    %v2849 = vand.u32 %v123, 4294901760
    %2850 = vmatpush1.msra.mxu0 %v2849
    %2851 = vmatprep.subr.mxu0 0.0
    %v2852 = vand.u32 %v124, 4294901760
    %2853 = vmatpush1.msra.mxu0 %v2852
    %2854 = vmatprep.subr.mxu0 0.0
    %v2855 = vand.u32 %v125, 4294901760
    %2856 = vmatpush1.msra.mxu0 %v2855
    %2857 = vmatprep.subr.mxu0 0.0
    %v2858 = vand.u32 %v126, 4294901760
    %2859 = vmatpush1.msra.mxu0 %v2858
    %2860 = vmatprep.subr.mxu0 0.0
    %v2861 = vand.u32 %v127, 4294901760
    %2862 = vmatpush1.msra.mxu0 %v2861
    %2863 = vmatprep.subr.mxu0 0.0
    %v2864 = vand.u32 %v128, 4294901760
    %2865 = vmatpush1.msra.mxu0 %v2864
    %2866 = vmatprep.subr.mxu0 0.0
    %v2867 = vand.u32 %v129, 4294901760
    %2868 = vmatpush1.msra.mxu0 %v2867
    %2869 = vmatprep.subr.mxu0 0.0
    %v2870 = vand.u32 %v130, 4294901760
    %2871 = vmatpush1.msra.mxu0 %v2870
    %2872 = vmatprep.subr.mxu0 0.0
    %v2873 = vand.u32 %v131, 4294901760
    %2874 = vmatpush1.msra.mxu0 %v2873
    %2875 = vmatprep.subr.mxu0 0.0
    %v2876 = vand.u32 %v132, 4294901760
    %2877 = vmatpush1.msra.mxu0 %v2876
    %2878 = vmatprep.subr.mxu0 0.0
    %v2879 = vand.u32 %v133, 4294901760
    %2880 = vmatpush1.msra.mxu0 %v2879
    %2881 = vmatprep.subr.mxu0 0.0
    %v2882 = vand.u32 %v134, 4294901760
    %2883 = vmatpush1.msra.mxu0 %v2882
    %2884 = vmatprep.subr.mxu0 0.0
    %v2885 = vand.u32 %v135, 4294901760
    %2886 = vmatpush1.msra.mxu0 %v2885
    %2887 = vmatprep.subr.mxu0 0.0
    %v2888 = vand.u32 %v136, 4294901760
    %2889 = vmatpush1.msra.mxu0 %v2888
    %2890 = vmatprep.subr.mxu0 0.0
    %v2891 = vand.u32 %v137, 4294901760
    %2892 = vmatpush1.msra.mxu0 %v2891
    %2893 = vmatprep.subr.mxu0 0.0
    %v2894 = vand.u32 %v138, 4294901760
    %2895 = vmatpush1.msra.mxu0 %v2894
    %2896 = vmatprep.subr.mxu0 0.0
    %v2897 = vand.u32 %v139, 4294901760
    %2898 = vmatpush1.msra.mxu0 %v2897
    %v2899 = vand.u32 %v279, 4294901760
    %2900 = vmatprep.mubr.f32.mxu0 %v2899
    %v2901 = vand.u32 %v275, 4294901760
    %2902 = vmatmul.mubr.f32.gmra.mrb[0].mxu0 %v2901
    %v2903 = vpop.f32.mrb[0].mxu0
    %v2904 = vadd.f32 %v2800, %v2903
    %v2905 = vpop.f32.mrb[0].mxu0
    %2906 = vdwg.mxu0
    %2907 = vmatprep.subr.mxu0 0.0
    %v2908 = vand.u32 %v140, 4294901760
    %2909 = vmatpush1.msra.mxu0 %v2908
    %2910 = vmatprep.subr.mxu0 0.0
    %v2911 = vand.u32 %v141, 4294901760
    %2912 = vmatpush1.msra.mxu0 %v2911
    %2913 = vmatprep.subr.mxu0 0.0
    %v2914 = vand.u32 %v142, 4294901760
    %2915 = vmatpush1.msra.mxu0 %v2914
    %2916 = vmatprep.subr.mxu0 0.0
    %v2917 = vand.u32 %v143, 4294901760
    %2918 = vmatpush1.msra.mxu0 %v2917
    %2919 = vmatprep.subr.mxu0 0.0
    %v2920 = vand.u32 %v144, 4294901760
    %2921 = vmatpush1.msra.mxu0 %v2920
    %2922 = vmatprep.subr.mxu0 0.0
    %v2923 = vand.u32 %v145, 4294901760
    %2924 = vmatpush1.msra.mxu0 %v2923
    %2925 = vmatprep.subr.mxu0 0.0
    %v2926 = vand.u32 %v146, 4294901760
    %2927 = vmatpush1.msra.mxu0 %v2926
    %2928 = vmatprep.subr.mxu0 0.0
    %v2929 = vand.u32 %v147, 4294901760
    %2930 = vmatpush1.msra.mxu0 %v2929
    %2931 = vmatprep.subr.mxu0 0.0
    %v2932 = vand.u32 %v148, 4294901760
    %2933 = vmatpush1.msra.mxu0 %v2932
    %2934 = vmatprep.subr.mxu0 0.0
    %v2935 = vand.u32 %v149, 4294901760
    %2936 = vmatpush1.msra.mxu0 %v2935
    %2937 = vmatprep.subr.mxu0 0.0
    %v2938 = vand.u32 %v150, 4294901760
    %2939 = vmatpush1.msra.mxu0 %v2938
    %2940 = vmatprep.subr.mxu0 0.0
    %v2941 = vand.u32 %v151, 4294901760
    %2942 = vmatpush1.msra.mxu0 %v2941
    %2943 = vmatprep.subr.mxu0 0.0
    %v2944 = vand.u32 %v152, 4294901760
    %2945 = vmatpush1.msra.mxu0 %v2944
    %2946 = vmatprep.subr.mxu0 0.0
    %v2947 = vand.u32 %v153, 4294901760
    %2948 = vmatpush1.msra.mxu0 %v2947
    %2949 = vmatprep.subr.mxu0 0.0
    %v2950 = vand.u32 %v154, 4294901760
    %2951 = vmatpush1.msra.mxu0 %v2950
    %2952 = vmatprep.subr.mxu0 0.0
    %v2953 = vand.u32 %v155, 4294901760
    %2954 = vmatpush1.msra.mxu0 %v2953
    %2955 = vmatprep.subr.mxu0 0.0
    %v2956 = vand.u32 %v156, 4294901760
    %2957 = vmatpush1.msra.mxu0 %v2956
    %2958 = vmatprep.subr.mxu0 0.0
    %v2959 = vand.u32 %v157, 4294901760
    %2960 = vmatpush1.msra.mxu0 %v2959
    %2961 = vmatprep.subr.mxu0 0.0
    %v2962 = vand.u32 %v158, 4294901760
    %2963 = vmatpush1.msra.mxu0 %v2962
    %2964 = vmatprep.subr.mxu0 0.0
    %v2965 = vand.u32 %v159, 4294901760
    %2966 = vmatpush1.msra.mxu0 %v2965
    %2967 = vmatprep.subr.mxu0 0.0
    %v2968 = vand.u32 %v160, 4294901760
    %2969 = vmatpush1.msra.mxu0 %v2968
    %2970 = vmatprep.subr.mxu0 0.0
    %v2971 = vand.u32 %v161, 4294901760
    %2972 = vmatpush1.msra.mxu0 %v2971
    %2973 = vmatprep.subr.mxu0 0.0
    %v2974 = vand.u32 %v162, 4294901760
    %2975 = vmatpush1.msra.mxu0 %v2974
    %2976 = vmatprep.subr.mxu0 0.0
    %v2977 = vand.u32 %v163, 4294901760
    %2978 = vmatpush1.msra.mxu0 %v2977
    %2979 = vmatprep.subr.mxu0 0.0
    %v2980 = vand.u32 %v164, 4294901760
    %2981 = vmatpush1.msra.mxu0 %v2980
    %2982 = vmatprep.subr.mxu0 0.0
    %v2983 = vand.u32 %v165, 4294901760
    %2984 = vmatpush1.msra.mxu0 %v2983
    %2985 = vmatprep.subr.mxu0 0.0
    %v2986 = vand.u32 %v166, 4294901760
    %2987 = vmatpush1.msra.mxu0 %v2986
    %2988 = vmatprep.subr.mxu0 0.0
    %v2989 = vand.u32 %v167, 4294901760
    %2990 = vmatpush1.msra.mxu0 %v2989
    %2991 = vmatprep.subr.mxu0 0.0
    %v2992 = vand.u32 %v168, 4294901760
    %2993 = vmatpush1.msra.mxu0 %v2992
    %2994 = vmatprep.subr.mxu0 0.0
    %v2995 = vand.u32 %v169, 4294901760
    %2996 = vmatpush1.msra.mxu0 %v2995
    %2997 = vmatprep.subr.mxu0 0.0
    %v2998 = vand.u32 %v170, 4294901760
    %2999 = vmatpush1.msra.mxu0 %v2998
    %3000 = vmatprep.subr.mxu0 0.0
    %v3001 = vand.u32 %v171, 4294901760
    %3002 = vmatpush1.msra.mxu0 %v3001
    %v3003 = vand.u32 %v287, 4294901760
    %v3004 = vsub.f32 %v287, %v3003
    %v3005 = vand.u32 %v3004, 4294901760
    %v3006 = vsub.f32 %v3004, %v3005
    %v3007 = vand.u32 %v3006, 4294901760
    %3008 = vmatprep.mubr.f32.mxu0 %v3007
    %v3009 = vand.u32 %v283, 4294901760
    %v3010 = vsub.f32 %v283, %v3009
    %v3011 = vand.u32 %v3010, 4294901760
    %v3012 = vsub.f32 %v3010, %v3011
    %v3013 = vand.u32 %v3012, 4294901760
    %3014 = vmatmul.mubr.f32.gmra.mrb[0].mxu0 %v3013
    %v3015 = vpop.f32.mrb[0].mxu0
    %v3016 = vadd.f32 %v2904, %v3015
    %v3017 = vpop.f32.mrb[0].mxu0
    %3018 = vdwg.mxu0
    %3019 = vmatprep.subr.mxu0 0.0
    %v3020 = vand.u32 %v140, 4294901760
    %v3021 = vsub.f32 %v140, %v3020
    %v3022 = vand.u32 %v3021, 4294901760
    %v3023 = vsub.f32 %v3021, %v3022
    %v3024 = vand.u32 %v3023, 4294901760
    %3025 = vmatpush1.msra.mxu0 %v3024
    %3026 = vmatprep.subr.mxu0 0.0
    %v3027 = vand.u32 %v141, 4294901760
    %v3028 = vsub.f32 %v141, %v3027
    %v3029 = vand.u32 %v3028, 4294901760
    %v3030 = vsub.f32 %v3028, %v3029
    %v3031 = vand.u32 %v3030, 4294901760
    %3032 = vmatpush1.msra.mxu0 %v3031
    %3033 = vmatprep.subr.mxu0 0.0
    %v3034 = vand.u32 %v142, 4294901760
    %v3035 = vsub.f32 %v142, %v3034
    %v3036 = vand.u32 %v3035, 4294901760
    %v3037 = vsub.f32 %v3035, %v3036
    %v3038 = vand.u32 %v3037, 4294901760
    %3039 = vmatpush1.msra.mxu0 %v3038
    %3040 = vmatprep.subr.mxu0 0.0
    %v3041 = vand.u32 %v143, 4294901760
    %v3042 = vsub.f32 %v143, %v3041
    %v3043 = vand.u32 %v3042, 4294901760
    %v3044 = vsub.f32 %v3042, %v3043
    %v3045 = vand.u32 %v3044, 4294901760
    %3046 = vmatpush1.msra.mxu0 %v3045
    %3047 = vmatprep.subr.mxu0 0.0
    %v3048 = vand.u32 %v144, 4294901760
    %v3049 = vsub.f32 %v144, %v3048
    %v3050 = vand.u32 %v3049, 4294901760
    %v3051 = vsub.f32 %v3049, %v3050
    %v3052 = vand.u32 %v3051, 4294901760
    %3053 = vmatpush1.msra.mxu0 %v3052
    %3054 = vmatprep.subr.mxu0 0.0
    %v3055 = vand.u32 %v145, 4294901760
    %v3056 = vsub.f32 %v145, %v3055
    %v3057 = vand.u32 %v3056, 4294901760
    %v3058 = vsub.f32 %v3056, %v3057
    %v3059 = vand.u32 %v3058, 4294901760
    %3060 = vmatpush1.msra.mxu0 %v3059
    %3061 = vmatprep.subr.mxu0 0.0
    %v3062 = vand.u32 %v146, 4294901760
    %v3063 = vsub.f32 %v146, %v3062
    %v3064 = vand.u32 %v3063, 4294901760
    %v3065 = vsub.f32 %v3063, %v3064
    %v3066 = vand.u32 %v3065, 4294901760
    %3067 = vmatpush1.msra.mxu0 %v3066
    %3068 = vmatprep.subr.mxu0 0.0
    %v3069 = vand.u32 %v147, 4294901760
    %v3070 = vsub.f32 %v147, %v3069
    %v3071 = vand.u32 %v3070, 4294901760
    %v3072 = vsub.f32 %v3070, %v3071
    %v3073 = vand.u32 %v3072, 4294901760
    %3074 = vmatpush1.msra.mxu0 %v3073
    %3075 = vmatprep.subr.mxu0 0.0
    %v3076 = vand.u32 %v148, 4294901760
    %v3077 = vsub.f32 %v148, %v3076
    %v3078 = vand.u32 %v3077, 4294901760
    %v3079 = vsub.f32 %v3077, %v3078
    %v3080 = vand.u32 %v3079, 4294901760
    %3081 = vmatpush1.msra.mxu0 %v3080
    %3082 = vmatprep.subr.mxu0 0.0
    %v3083 = vand.u32 %v149, 4294901760
    %v3084 = vsub.f32 %v149, %v3083
    %v3085 = vand.u32 %v3084, 4294901760
    %v3086 = vsub.f32 %v3084, %v3085
    %v3087 = vand.u32 %v3086, 4294901760
    %3088 = vmatpush1.msra.mxu0 %v3087
    %3089 = vmatprep.subr.mxu0 0.0
    %v3090 = vand.u32 %v150, 4294901760
    %v3091 = vsub.f32 %v150, %v3090
    %v3092 = vand.u32 %v3091, 4294901760
    %v3093 = vsub.f32 %v3091, %v3092
    %v3094 = vand.u32 %v3093, 4294901760
    %3095 = vmatpush1.msra.mxu0 %v3094
    %3096 = vmatprep.subr.mxu0 0.0
    %v3097 = vand.u32 %v151, 4294901760
    %v3098 = vsub.f32 %v151, %v3097
    %v3099 = vand.u32 %v3098, 4294901760
    %v3100 = vsub.f32 %v3098, %v3099
    %v3101 = vand.u32 %v3100, 4294901760
    %3102 = vmatpush1.msra.mxu0 %v3101
    %3103 = vmatprep.subr.mxu0 0.0
    %v3104 = vand.u32 %v152, 4294901760
    %v3105 = vsub.f32 %v152, %v3104
    %v3106 = vand.u32 %v3105, 4294901760
    %v3107 = vsub.f32 %v3105, %v3106
    %v3108 = vand.u32 %v3107, 4294901760
    %3109 = vmatpush1.msra.mxu0 %v3108
    %3110 = vmatprep.subr.mxu0 0.0
    %v3111 = vand.u32 %v153, 4294901760
    %v3112 = vsub.f32 %v153, %v3111
    %v3113 = vand.u32 %v3112, 4294901760
    %v3114 = vsub.f32 %v3112, %v3113
    %v3115 = vand.u32 %v3114, 4294901760
    %3116 = vmatpush1.msra.mxu0 %v3115
    %3117 = vmatprep.subr.mxu0 0.0
    %v3118 = vand.u32 %v154, 4294901760
    %v3119 = vsub.f32 %v154, %v3118
    %v3120 = vand.u32 %v3119, 4294901760
    %v3121 = vsub.f32 %v3119, %v3120
    %v3122 = vand.u32 %v3121, 4294901760
    %3123 = vmatpush1.msra.mxu0 %v3122
    %3124 = vmatprep.subr.mxu0 0.0
    %v3125 = vand.u32 %v155, 4294901760
    %v3126 = vsub.f32 %v155, %v3125
    %v3127 = vand.u32 %v3126, 4294901760
    %v3128 = vsub.f32 %v3126, %v3127
    %v3129 = vand.u32 %v3128, 4294901760
    %3130 = vmatpush1.msra.mxu0 %v3129
    %3131 = vmatprep.subr.mxu0 0.0
    %v3132 = vand.u32 %v156, 4294901760
    %v3133 = vsub.f32 %v156, %v3132
    %v3134 = vand.u32 %v3133, 4294901760
    %v3135 = vsub.f32 %v3133, %v3134
    %v3136 = vand.u32 %v3135, 4294901760
    %3137 = vmatpush1.msra.mxu0 %v3136
    %3138 = vmatprep.subr.mxu0 0.0
    %v3139 = vand.u32 %v157, 4294901760
    %v3140 = vsub.f32 %v157, %v3139
    %v3141 = vand.u32 %v3140, 4294901760
    %v3142 = vsub.f32 %v3140, %v3141
    %v3143 = vand.u32 %v3142, 4294901760
    %3144 = vmatpush1.msra.mxu0 %v3143
    %3145 = vmatprep.subr.mxu0 0.0
    %v3146 = vand.u32 %v158, 4294901760
    %v3147 = vsub.f32 %v158, %v3146
    %v3148 = vand.u32 %v3147, 4294901760
    %v3149 = vsub.f32 %v3147, %v3148
    %v3150 = vand.u32 %v3149, 4294901760
    %3151 = vmatpush1.msra.mxu0 %v3150
    %3152 = vmatprep.subr.mxu0 0.0
    %v3153 = vand.u32 %v159, 4294901760
    %v3154 = vsub.f32 %v159, %v3153
    %v3155 = vand.u32 %v3154, 4294901760
    %v3156 = vsub.f32 %v3154, %v3155
    %v3157 = vand.u32 %v3156, 4294901760
    %3158 = vmatpush1.msra.mxu0 %v3157
    %3159 = vmatprep.subr.mxu0 0.0
    %v3160 = vand.u32 %v160, 4294901760
    %v3161 = vsub.f32 %v160, %v3160
    %v3162 = vand.u32 %v3161, 4294901760
    %v3163 = vsub.f32 %v3161, %v3162
    %v3164 = vand.u32 %v3163, 4294901760
    %3165 = vmatpush1.msra.mxu0 %v3164
    %3166 = vmatprep.subr.mxu0 0.0
    %v3167 = vand.u32 %v161, 4294901760
    %v3168 = vsub.f32 %v161, %v3167
    %v3169 = vand.u32 %v3168, 4294901760
    %v3170 = vsub.f32 %v3168, %v3169
    %v3171 = vand.u32 %v3170, 4294901760
    %3172 = vmatpush1.msra.mxu0 %v3171
    %3173 = vmatprep.subr.mxu0 0.0
    %v3174 = vand.u32 %v162, 4294901760
    %v3175 = vsub.f32 %v162, %v3174
    %v3176 = vand.u32 %v3175, 4294901760
    %v3177 = vsub.f32 %v3175, %v3176
    %v3178 = vand.u32 %v3177, 4294901760
    %3179 = vmatpush1.msra.mxu0 %v3178
    %3180 = vmatprep.subr.mxu0 0.0
    %v3181 = vand.u32 %v163, 4294901760
    %v3182 = vsub.f32 %v163, %v3181
    %v3183 = vand.u32 %v3182, 4294901760
    %v3184 = vsub.f32 %v3182, %v3183
    %v3185 = vand.u32 %v3184, 4294901760
    %3186 = vmatpush1.msra.mxu0 %v3185
    %3187 = vmatprep.subr.mxu0 0.0
    %v3188 = vand.u32 %v164, 4294901760
    %v3189 = vsub.f32 %v164, %v3188
    %v3190 = vand.u32 %v3189, 4294901760
    %v3191 = vsub.f32 %v3189, %v3190
    %v3192 = vand.u32 %v3191, 4294901760
    %3193 = vmatpush1.msra.mxu0 %v3192
    %3194 = vmatprep.subr.mxu0 0.0
    %v3195 = vand.u32 %v165, 4294901760
    %v3196 = vsub.f32 %v165, %v3195
    %v3197 = vand.u32 %v3196, 4294901760
    %v3198 = vsub.f32 %v3196, %v3197
    %v3199 = vand.u32 %v3198, 4294901760
    %3200 = vmatpush1.msra.mxu0 %v3199
    %3201 = vmatprep.subr.mxu0 0.0
    %v3202 = vand.u32 %v166, 4294901760
    %v3203 = vsub.f32 %v166, %v3202
    %v3204 = vand.u32 %v3203, 4294901760
    %v3205 = vsub.f32 %v3203, %v3204
    %v3206 = vand.u32 %v3205, 4294901760
    %3207 = vmatpush1.msra.mxu0 %v3206
    %3208 = vmatprep.subr.mxu0 0.0
    %v3209 = vand.u32 %v167, 4294901760
    %v3210 = vsub.f32 %v167, %v3209
    %v3211 = vand.u32 %v3210, 4294901760
    %v3212 = vsub.f32 %v3210, %v3211
    %v3213 = vand.u32 %v3212, 4294901760
    %3214 = vmatpush1.msra.mxu0 %v3213
    %3215 = vmatprep.subr.mxu0 0.0
    %v3216 = vand.u32 %v168, 4294901760
    %v3217 = vsub.f32 %v168, %v3216
    %v3218 = vand.u32 %v3217, 4294901760
    %v3219 = vsub.f32 %v3217, %v3218
    %v3220 = vand.u32 %v3219, 4294901760
    %3221 = vmatpush1.msra.mxu0 %v3220
    %3222 = vmatprep.subr.mxu0 0.0
    %v3223 = vand.u32 %v169, 4294901760
    %v3224 = vsub.f32 %v169, %v3223
    %v3225 = vand.u32 %v3224, 4294901760
    %v3226 = vsub.f32 %v3224, %v3225
    %v3227 = vand.u32 %v3226, 4294901760
    %3228 = vmatpush1.msra.mxu0 %v3227
    %3229 = vmatprep.subr.mxu0 0.0
    %v3230 = vand.u32 %v170, 4294901760
    %v3231 = vsub.f32 %v170, %v3230
    %v3232 = vand.u32 %v3231, 4294901760
    %v3233 = vsub.f32 %v3231, %v3232
    %v3234 = vand.u32 %v3233, 4294901760
    %3235 = vmatpush1.msra.mxu0 %v3234
    %3236 = vmatprep.subr.mxu0 0.0
    %v3237 = vand.u32 %v171, 4294901760
    %v3238 = vsub.f32 %v171, %v3237
    %v3239 = vand.u32 %v3238, 4294901760
    %v3240 = vsub.f32 %v3238, %v3239
    %v3241 = vand.u32 %v3240, 4294901760
    %3242 = vmatpush1.msra.mxu0 %v3241
    %v3243 = vand.u32 %v287, 4294901760
    %3244 = vmatprep.mubr.f32.mxu0 %v3243
    %v3245 = vand.u32 %v283, 4294901760
    %3246 = vmatmul.mubr.f32.gmra.mrb[0].mxu0 %v3245
    %v3247 = vpop.f32.mrb[0].mxu0
    %v3248 = vadd.f32 %v3016, %v3247
    %v3249 = vpop.f32.mrb[0].mxu0
    %3250 = vdwg.mxu0
    %3251 = vmatprep.subr.mxu0 0.0
    %v3252 = vand.u32 %v140, 4294901760
    %v3253 = vsub.f32 %v140, %v3252
    %3254 = vmatpush1.msra.mxu0 %v3253
    %3255 = vmatprep.subr.mxu0 0.0
    %v3256 = vand.u32 %v141, 4294901760
    %v3257 = vsub.f32 %v141, %v3256
    %3258 = vmatpush1.msra.mxu0 %v3257
    %3259 = vmatprep.subr.mxu0 0.0
    %v3260 = vand.u32 %v142, 4294901760
    %v3261 = vsub.f32 %v142, %v3260
    %3262 = vmatpush1.msra.mxu0 %v3261
    %3263 = vmatprep.subr.mxu0 0.0
    %v3264 = vand.u32 %v143, 4294901760
    %v3265 = vsub.f32 %v143, %v3264
    %3266 = vmatpush1.msra.mxu0 %v3265
    %3267 = vmatprep.subr.mxu0 0.0
    %v3268 = vand.u32 %v144, 4294901760
    %v3269 = vsub.f32 %v144, %v3268
    %3270 = vmatpush1.msra.mxu0 %v3269
    %3271 = vmatprep.subr.mxu0 0.0
    %v3272 = vand.u32 %v145, 4294901760
    %v3273 = vsub.f32 %v145, %v3272
    %3274 = vmatpush1.msra.mxu0 %v3273
    %3275 = vmatprep.subr.mxu0 0.0
    %v3276 = vand.u32 %v146, 4294901760
    %v3277 = vsub.f32 %v146, %v3276
    %3278 = vmatpush1.msra.mxu0 %v3277
    %3279 = vmatprep.subr.mxu0 0.0
    %v3280 = vand.u32 %v147, 4294901760
    %v3281 = vsub.f32 %v147, %v3280
    %3282 = vmatpush1.msra.mxu0 %v3281
    %3283 = vmatprep.subr.mxu0 0.0
    %v3284 = vand.u32 %v148, 4294901760
    %v3285 = vsub.f32 %v148, %v3284
    %3286 = vmatpush1.msra.mxu0 %v3285
    %3287 = vmatprep.subr.mxu0 0.0
    %v3288 = vand.u32 %v149, 4294901760
    %v3289 = vsub.f32 %v149, %v3288
    %3290 = vmatpush1.msra.mxu0 %v3289
    %3291 = vmatprep.subr.mxu0 0.0
    %v3292 = vand.u32 %v150, 4294901760
    %v3293 = vsub.f32 %v150, %v3292
    %3294 = vmatpush1.msra.mxu0 %v3293
    %3295 = vmatprep.subr.mxu0 0.0
    %v3296 = vand.u32 %v151, 4294901760
    %v3297 = vsub.f32 %v151, %v3296
    %3298 = vmatpush1.msra.mxu0 %v3297
    %3299 = vmatprep.subr.mxu0 0.0
    %v3300 = vand.u32 %v152, 4294901760
    %v3301 = vsub.f32 %v152, %v3300
    %3302 = vmatpush1.msra.mxu0 %v3301
    %3303 = vmatprep.subr.mxu0 0.0
    %v3304 = vand.u32 %v153, 4294901760
    %v3305 = vsub.f32 %v153, %v3304
    %3306 = vmatpush1.msra.mxu0 %v3305
    %3307 = vmatprep.subr.mxu0 0.0
    %v3308 = vand.u32 %v154, 4294901760
    %v3309 = vsub.f32 %v154, %v3308
    %3310 = vmatpush1.msra.mxu0 %v3309
    %3311 = vmatprep.subr.mxu0 0.0
    %v3312 = vand.u32 %v155, 4294901760
    %v3313 = vsub.f32 %v155, %v3312
    %3314 = vmatpush1.msra.mxu0 %v3313
    %3315 = vmatprep.subr.mxu0 0.0
    %v3316 = vand.u32 %v156, 4294901760
    %v3317 = vsub.f32 %v156, %v3316
    %3318 = vmatpush1.msra.mxu0 %v3317
    %3319 = vmatprep.subr.mxu0 0.0
    %v3320 = vand.u32 %v157, 4294901760
    %v3321 = vsub.f32 %v157, %v3320
    %3322 = vmatpush1.msra.mxu0 %v3321
    %3323 = vmatprep.subr.mxu0 0.0
    %v3324 = vand.u32 %v158, 4294901760
    %v3325 = vsub.f32 %v158, %v3324
    %3326 = vmatpush1.msra.mxu0 %v3325
    %3327 = vmatprep.subr.mxu0 0.0
    %v3328 = vand.u32 %v159, 4294901760
    %v3329 = vsub.f32 %v159, %v3328
    %3330 = vmatpush1.msra.mxu0 %v3329
    %3331 = vmatprep.subr.mxu0 0.0
    %v3332 = vand.u32 %v160, 4294901760
    %v3333 = vsub.f32 %v160, %v3332
    %3334 = vmatpush1.msra.mxu0 %v3333
    %3335 = vmatprep.subr.mxu0 0.0
    %v3336 = vand.u32 %v161, 4294901760
    %v3337 = vsub.f32 %v161, %v3336
    %3338 = vmatpush1.msra.mxu0 %v3337
    %3339 = vmatprep.subr.mxu0 0.0
    %v3340 = vand.u32 %v162, 4294901760
    %v3341 = vsub.f32 %v162, %v3340
    %3342 = vmatpush1.msra.mxu0 %v3341
    %3343 = vmatprep.subr.mxu0 0.0
    %v3344 = vand.u32 %v163, 4294901760
    %v3345 = vsub.f32 %v163, %v3344
    %3346 = vmatpush1.msra.mxu0 %v3345
    %3347 = vmatprep.subr.mxu0 0.0
    %v3348 = vand.u32 %v164, 4294901760
    %v3349 = vsub.f32 %v164, %v3348
    %3350 = vmatpush1.msra.mxu0 %v3349
    %3351 = vmatprep.subr.mxu0 0.0
    %v3352 = vand.u32 %v165, 4294901760
    %v3353 = vsub.f32 %v165, %v3352
    %3354 = vmatpush1.msra.mxu0 %v3353
    %3355 = vmatprep.subr.mxu0 0.0
    %v3356 = vand.u32 %v166, 4294901760
    %v3357 = vsub.f32 %v166, %v3356
    %3358 = vmatpush1.msra.mxu0 %v3357
    %3359 = vmatprep.subr.mxu0 0.0
    %v3360 = vand.u32 %v167, 4294901760
    %v3361 = vsub.f32 %v167, %v3360
    %3362 = vmatpush1.msra.mxu0 %v3361
    %3363 = vmatprep.subr.mxu0 0.0
    %v3364 = vand.u32 %v168, 4294901760
    %v3365 = vsub.f32 %v168, %v3364
    %3366 = vmatpush1.msra.mxu0 %v3365
    %3367 = vmatprep.subr.mxu0 0.0
    %v3368 = vand.u32 %v169, 4294901760
    %v3369 = vsub.f32 %v169, %v3368
    %3370 = vmatpush1.msra.mxu0 %v3369
    %3371 = vmatprep.subr.mxu0 0.0
    %v3372 = vand.u32 %v170, 4294901760
    %v3373 = vsub.f32 %v170, %v3372
    %3374 = vmatpush1.msra.mxu0 %v3373
    %3375 = vmatprep.subr.mxu0 0.0
    %v3376 = vand.u32 %v171, 4294901760
    %v3377 = vsub.f32 %v171, %v3376
    %3378 = vmatpush1.msra.mxu0 %v3377
    %v3379 = vand.u32 %v287, 4294901760
    %v3380 = vsub.f32 %v287, %v3379
    %3381 = vmatprep.mubr.f32.mxu0 %v3380
    %v3382 = vand.u32 %v283, 4294901760
    %v3383 = vsub.f32 %v283, %v3382
    %3384 = vmatmul.mubr.f32.gmra.mrb[0].mxu0 %v3383
    %v3385 = vpop.f32.mrb[0].mxu0
    %v3386 = vadd.f32 %v3248, %v3385
    %v3387 = vpop.f32.mrb[0].mxu0
    %3388 = vdwg.mxu0
    %3389 = vmatprep.subr.mxu0 0.0
    %v3390 = vand.u32 %v140, 4294901760
    %3391 = vmatpush1.msra.mxu0 %v3390
    %3392 = vmatprep.subr.mxu0 0.0
    %v3393 = vand.u32 %v141, 4294901760
    %3394 = vmatpush1.msra.mxu0 %v3393
    %3395 = vmatprep.subr.mxu0 0.0
    %v3396 = vand.u32 %v142, 4294901760
    %3397 = vmatpush1.msra.mxu0 %v3396
    %3398 = vmatprep.subr.mxu0 0.0
    %v3399 = vand.u32 %v143, 4294901760
    %3400 = vmatpush1.msra.mxu0 %v3399
    %3401 = vmatprep.subr.mxu0 0.0
    %v3402 = vand.u32 %v144, 4294901760
    %3403 = vmatpush1.msra.mxu0 %v3402
    %3404 = vmatprep.subr.mxu0 0.0
    %v3405 = vand.u32 %v145, 4294901760
    %3406 = vmatpush1.msra.mxu0 %v3405
    %3407 = vmatprep.subr.mxu0 0.0
    %v3408 = vand.u32 %v146, 4294901760
    %3409 = vmatpush1.msra.mxu0 %v3408
    %3410 = vmatprep.subr.mxu0 0.0
    %v3411 = vand.u32 %v147, 4294901760
    %3412 = vmatpush1.msra.mxu0 %v3411
    %3413 = vmatprep.subr.mxu0 0.0
    %v3414 = vand.u32 %v148, 4294901760
    %3415 = vmatpush1.msra.mxu0 %v3414
    %3416 = vmatprep.subr.mxu0 0.0
    %v3417 = vand.u32 %v149, 4294901760
    %3418 = vmatpush1.msra.mxu0 %v3417
    %3419 = vmatprep.subr.mxu0 0.0
    %v3420 = vand.u32 %v150, 4294901760
    %3421 = vmatpush1.msra.mxu0 %v3420
    %3422 = vmatprep.subr.mxu0 0.0
    %v3423 = vand.u32 %v151, 4294901760
    %3424 = vmatpush1.msra.mxu0 %v3423
    %3425 = vmatprep.subr.mxu0 0.0
    %v3426 = vand.u32 %v152, 4294901760
    %3427 = vmatpush1.msra.mxu0 %v3426
    %3428 = vmatprep.subr.mxu0 0.0
    %v3429 = vand.u32 %v153, 4294901760
    %3430 = vmatpush1.msra.mxu0 %v3429
    %3431 = vmatprep.subr.mxu0 0.0
    %v3432 = vand.u32 %v154, 4294901760
    %3433 = vmatpush1.msra.mxu0 %v3432
    %3434 = vmatprep.subr.mxu0 0.0
    %v3435 = vand.u32 %v155, 4294901760
    %3436 = vmatpush1.msra.mxu0 %v3435
    %3437 = vmatprep.subr.mxu0 0.0
    %v3438 = vand.u32 %v156, 4294901760
    %3439 = vmatpush1.msra.mxu0 %v3438
    %3440 = vmatprep.subr.mxu0 0.0
    %v3441 = vand.u32 %v157, 4294901760
    %3442 = vmatpush1.msra.mxu0 %v3441
    %3443 = vmatprep.subr.mxu0 0.0
    %v3444 = vand.u32 %v158, 4294901760
    %3445 = vmatpush1.msra.mxu0 %v3444
    %3446 = vmatprep.subr.mxu0 0.0
    %v3447 = vand.u32 %v159, 4294901760
    %3448 = vmatpush1.msra.mxu0 %v3447
    %3449 = vmatprep.subr.mxu0 0.0
    %v3450 = vand.u32 %v160, 4294901760
    %3451 = vmatpush1.msra.mxu0 %v3450
    %3452 = vmatprep.subr.mxu0 0.0
    %v3453 = vand.u32 %v161, 4294901760
    %3454 = vmatpush1.msra.mxu0 %v3453
    %3455 = vmatprep.subr.mxu0 0.0
    %v3456 = vand.u32 %v162, 4294901760
    %3457 = vmatpush1.msra.mxu0 %v3456
    %3458 = vmatprep.subr.mxu0 0.0
    %v3459 = vand.u32 %v163, 4294901760
    %3460 = vmatpush1.msra.mxu0 %v3459
    %3461 = vmatprep.subr.mxu0 0.0
    %v3462 = vand.u32 %v164, 4294901760
    %3463 = vmatpush1.msra.mxu0 %v3462
    %3464 = vmatprep.subr.mxu0 0.0
    %v3465 = vand.u32 %v165, 4294901760
    %3466 = vmatpush1.msra.mxu0 %v3465
    %3467 = vmatprep.subr.mxu0 0.0
    %v3468 = vand.u32 %v166, 4294901760
    %3469 = vmatpush1.msra.mxu0 %v3468
    %3470 = vmatprep.subr.mxu0 0.0
    %v3471 = vand.u32 %v167, 4294901760
    %3472 = vmatpush1.msra.mxu0 %v3471
    %3473 = vmatprep.subr.mxu0 0.0
    %v3474 = vand.u32 %v168, 4294901760
    %3475 = vmatpush1.msra.mxu0 %v3474
    %3476 = vmatprep.subr.mxu0 0.0
    %v3477 = vand.u32 %v169, 4294901760
    %3478 = vmatpush1.msra.mxu0 %v3477
    %3479 = vmatprep.subr.mxu0 0.0
    %v3480 = vand.u32 %v170, 4294901760
    %3481 = vmatpush1.msra.mxu0 %v3480
    %3482 = vmatprep.subr.mxu0 0.0
    %v3483 = vand.u32 %v171, 4294901760
    %3484 = vmatpush1.msra.mxu0 %v3483
    %v3485 = vand.u32 %v287, 4294901760
    %v3486 = vsub.f32 %v287, %v3485
    %v3487 = vand.u32 %v3486, 4294901760
    %3488 = vmatprep.mubr.f32.mxu0 %v3487
    %v3489 = vand.u32 %v283, 4294901760
    %v3490 = vsub.f32 %v283, %v3489
    %v3491 = vand.u32 %v3490, 4294901760
    %3492 = vmatmul.mubr.f32.gmra.mrb[0].mxu0 %v3491
    %v3493 = vpop.f32.mrb[0].mxu0
    %v3494 = vadd.f32 %v3386, %v3493
    %v3495 = vpop.f32.mrb[0].mxu0
    %3496 = vdwg.mxu0
    %3497 = vmatprep.subr.mxu0 0.0
    %v3498 = vand.u32 %v140, 4294901760
    %v3499 = vsub.f32 %v140, %v3498
    %v3500 = vand.u32 %v3499, 4294901760
    %3501 = vmatpush1.msra.mxu0 %v3500
    %3502 = vmatprep.subr.mxu0 0.0
    %v3503 = vand.u32 %v141, 4294901760
    %v3504 = vsub.f32 %v141, %v3503
    %v3505 = vand.u32 %v3504, 4294901760
    %3506 = vmatpush1.msra.mxu0 %v3505
    %3507 = vmatprep.subr.mxu0 0.0
    %v3508 = vand.u32 %v142, 4294901760
    %v3509 = vsub.f32 %v142, %v3508
    %v3510 = vand.u32 %v3509, 4294901760
    %3511 = vmatpush1.msra.mxu0 %v3510
    %3512 = vmatprep.subr.mxu0 0.0
    %v3513 = vand.u32 %v143, 4294901760
    %v3514 = vsub.f32 %v143, %v3513
    %v3515 = vand.u32 %v3514, 4294901760
    %3516 = vmatpush1.msra.mxu0 %v3515
    %3517 = vmatprep.subr.mxu0 0.0
    %v3518 = vand.u32 %v144, 4294901760
    %v3519 = vsub.f32 %v144, %v3518
    %v3520 = vand.u32 %v3519, 4294901760
    %3521 = vmatpush1.msra.mxu0 %v3520
    %3522 = vmatprep.subr.mxu0 0.0
    %v3523 = vand.u32 %v145, 4294901760
    %v3524 = vsub.f32 %v145, %v3523
    %v3525 = vand.u32 %v3524, 4294901760
    %3526 = vmatpush1.msra.mxu0 %v3525
    %3527 = vmatprep.subr.mxu0 0.0
    %v3528 = vand.u32 %v146, 4294901760
    %v3529 = vsub.f32 %v146, %v3528
    %v3530 = vand.u32 %v3529, 4294901760
    %3531 = vmatpush1.msra.mxu0 %v3530
    %3532 = vmatprep.subr.mxu0 0.0
    %v3533 = vand.u32 %v147, 4294901760
    %v3534 = vsub.f32 %v147, %v3533
    %v3535 = vand.u32 %v3534, 4294901760
    %3536 = vmatpush1.msra.mxu0 %v3535
    %3537 = vmatprep.subr.mxu0 0.0
    %v3538 = vand.u32 %v148, 4294901760
    %v3539 = vsub.f32 %v148, %v3538
    %v3540 = vand.u32 %v3539, 4294901760
    %3541 = vmatpush1.msra.mxu0 %v3540
    %3542 = vmatprep.subr.mxu0 0.0
    %v3543 = vand.u32 %v149, 4294901760
    %v3544 = vsub.f32 %v149, %v3543
    %v3545 = vand.u32 %v3544, 4294901760
    %3546 = vmatpush1.msra.mxu0 %v3545
    %3547 = vmatprep.subr.mxu0 0.0
    %v3548 = vand.u32 %v150, 4294901760
    %v3549 = vsub.f32 %v150, %v3548
    %v3550 = vand.u32 %v3549, 4294901760
    %3551 = vmatpush1.msra.mxu0 %v3550
    %3552 = vmatprep.subr.mxu0 0.0
    %v3553 = vand.u32 %v151, 4294901760
    %v3554 = vsub.f32 %v151, %v3553
    %v3555 = vand.u32 %v3554, 4294901760
    %3556 = vmatpush1.msra.mxu0 %v3555
    %3557 = vmatprep.subr.mxu0 0.0
    %v3558 = vand.u32 %v152, 4294901760
    %v3559 = vsub.f32 %v152, %v3558
    %v3560 = vand.u32 %v3559, 4294901760
    %3561 = vmatpush1.msra.mxu0 %v3560
    %3562 = vmatprep.subr.mxu0 0.0
    %v3563 = vand.u32 %v153, 4294901760
    %v3564 = vsub.f32 %v153, %v3563
    %v3565 = vand.u32 %v3564, 4294901760
    %3566 = vmatpush1.msra.mxu0 %v3565
    %3567 = vmatprep.subr.mxu0 0.0
    %v3568 = vand.u32 %v154, 4294901760
    %v3569 = vsub.f32 %v154, %v3568
    %v3570 = vand.u32 %v3569, 4294901760
    %3571 = vmatpush1.msra.mxu0 %v3570
    %3572 = vmatprep.subr.mxu0 0.0
    %v3573 = vand.u32 %v155, 4294901760
    %v3574 = vsub.f32 %v155, %v3573
    %v3575 = vand.u32 %v3574, 4294901760
    %3576 = vmatpush1.msra.mxu0 %v3575
    %3577 = vmatprep.subr.mxu0 0.0
    %v3578 = vand.u32 %v156, 4294901760
    %v3579 = vsub.f32 %v156, %v3578
    %v3580 = vand.u32 %v3579, 4294901760
    %3581 = vmatpush1.msra.mxu0 %v3580
    %3582 = vmatprep.subr.mxu0 0.0
    %v3583 = vand.u32 %v157, 4294901760
    %v3584 = vsub.f32 %v157, %v3583
    %v3585 = vand.u32 %v3584, 4294901760
    %3586 = vmatpush1.msra.mxu0 %v3585
    %3587 = vmatprep.subr.mxu0 0.0
    %v3588 = vand.u32 %v158, 4294901760
    %v3589 = vsub.f32 %v158, %v3588
    %v3590 = vand.u32 %v3589, 4294901760
    %3591 = vmatpush1.msra.mxu0 %v3590
    %3592 = vmatprep.subr.mxu0 0.0
    %v3593 = vand.u32 %v159, 4294901760
    %v3594 = vsub.f32 %v159, %v3593
    %v3595 = vand.u32 %v3594, 4294901760
    %3596 = vmatpush1.msra.mxu0 %v3595
    %3597 = vmatprep.subr.mxu0 0.0
    %v3598 = vand.u32 %v160, 4294901760
    %v3599 = vsub.f32 %v160, %v3598
    %v3600 = vand.u32 %v3599, 4294901760
    %3601 = vmatpush1.msra.mxu0 %v3600
    %3602 = vmatprep.subr.mxu0 0.0
    %v3603 = vand.u32 %v161, 4294901760
    %v3604 = vsub.f32 %v161, %v3603
    %v3605 = vand.u32 %v3604, 4294901760
    %3606 = vmatpush1.msra.mxu0 %v3605
    %3607 = vmatprep.subr.mxu0 0.0
    %v3608 = vand.u32 %v162, 4294901760
    %v3609 = vsub.f32 %v162, %v3608
    %v3610 = vand.u32 %v3609, 4294901760
    %3611 = vmatpush1.msra.mxu0 %v3610
    %3612 = vmatprep.subr.mxu0 0.0
    %v3613 = vand.u32 %v163, 4294901760
    %v3614 = vsub.f32 %v163, %v3613
    %v3615 = vand.u32 %v3614, 4294901760
    %3616 = vmatpush1.msra.mxu0 %v3615
    %3617 = vmatprep.subr.mxu0 0.0
    %v3618 = vand.u32 %v164, 4294901760
    %v3619 = vsub.f32 %v164, %v3618
    %v3620 = vand.u32 %v3619, 4294901760
    %3621 = vmatpush1.msra.mxu0 %v3620
    %3622 = vmatprep.subr.mxu0 0.0
    %v3623 = vand.u32 %v165, 4294901760
    %v3624 = vsub.f32 %v165, %v3623
    %v3625 = vand.u32 %v3624, 4294901760
    %3626 = vmatpush1.msra.mxu0 %v3625
    %3627 = vmatprep.subr.mxu0 0.0
    %v3628 = vand.u32 %v166, 4294901760
    %v3629 = vsub.f32 %v166, %v3628
    %v3630 = vand.u32 %v3629, 4294901760
    %3631 = vmatpush1.msra.mxu0 %v3630
    %3632 = vmatprep.subr.mxu0 0.0
    %v3633 = vand.u32 %v167, 4294901760
    %v3634 = vsub.f32 %v167, %v3633
    %v3635 = vand.u32 %v3634, 4294901760
    %3636 = vmatpush1.msra.mxu0 %v3635
    %3637 = vmatprep.subr.mxu0 0.0
    %v3638 = vand.u32 %v168, 4294901760
    %v3639 = vsub.f32 %v168, %v3638
    %v3640 = vand.u32 %v3639, 4294901760
    %3641 = vmatpush1.msra.mxu0 %v3640
    %3642 = vmatprep.subr.mxu0 0.0
    %v3643 = vand.u32 %v169, 4294901760
    %v3644 = vsub.f32 %v169, %v3643
    %v3645 = vand.u32 %v3644, 4294901760
    %3646 = vmatpush1.msra.mxu0 %v3645
    %3647 = vmatprep.subr.mxu0 0.0
    %v3648 = vand.u32 %v170, 4294901760
    %v3649 = vsub.f32 %v170, %v3648
    %v3650 = vand.u32 %v3649, 4294901760
    %3651 = vmatpush1.msra.mxu0 %v3650
    %3652 = vmatprep.subr.mxu0 0.0
    %v3653 = vand.u32 %v171, 4294901760
    %v3654 = vsub.f32 %v171, %v3653
    %v3655 = vand.u32 %v3654, 4294901760
    %3656 = vmatpush1.msra.mxu0 %v3655
    %v3657 = vand.u32 %v287, 4294901760
    %3658 = vmatprep.mubr.f32.mxu0 %v3657
    %v3659 = vand.u32 %v283, 4294901760
    %3660 = vmatmul.mubr.f32.gmra.mrb[0].mxu0 %v3659
    %v3661 = vpop.f32.mrb[0].mxu0
    %v3662 = vadd.f32 %v3494, %v3661
    %v3663 = vpop.f32.mrb[0].mxu0
    %3664 = vdwg.mxu0
    %3665 = vmatprep.subr.mxu0 0.0
    %v3666 = vand.u32 %v140, 4294901760
    %3667 = vmatpush1.msra.mxu0 %v3666
    %3668 = vmatprep.subr.mxu0 0.0
    %v3669 = vand.u32 %v141, 4294901760
    %3670 = vmatpush1.msra.mxu0 %v3669
    %3671 = vmatprep.subr.mxu0 0.0
    %v3672 = vand.u32 %v142, 4294901760
    %3673 = vmatpush1.msra.mxu0 %v3672
    %3674 = vmatprep.subr.mxu0 0.0
    %v3675 = vand.u32 %v143, 4294901760
    %3676 = vmatpush1.msra.mxu0 %v3675
    %3677 = vmatprep.subr.mxu0 0.0
    %v3678 = vand.u32 %v144, 4294901760
    %3679 = vmatpush1.msra.mxu0 %v3678
    %3680 = vmatprep.subr.mxu0 0.0
    %v3681 = vand.u32 %v145, 4294901760
    %3682 = vmatpush1.msra.mxu0 %v3681
    %3683 = vmatprep.subr.mxu0 0.0
    %v3684 = vand.u32 %v146, 4294901760
    %3685 = vmatpush1.msra.mxu0 %v3684
    %3686 = vmatprep.subr.mxu0 0.0
    %v3687 = vand.u32 %v147, 4294901760
    %3688 = vmatpush1.msra.mxu0 %v3687
    %3689 = vmatprep.subr.mxu0 0.0
    %v3690 = vand.u32 %v148, 4294901760
    %3691 = vmatpush1.msra.mxu0 %v3690
    %3692 = vmatprep.subr.mxu0 0.0
    %v3693 = vand.u32 %v149, 4294901760
    %3694 = vmatpush1.msra.mxu0 %v3693
    %3695 = vmatprep.subr.mxu0 0.0
    %v3696 = vand.u32 %v150, 4294901760
    %3697 = vmatpush1.msra.mxu0 %v3696
    %3698 = vmatprep.subr.mxu0 0.0
    %v3699 = vand.u32 %v151, 4294901760
    %3700 = vmatpush1.msra.mxu0 %v3699
    %3701 = vmatprep.subr.mxu0 0.0
    %v3702 = vand.u32 %v152, 4294901760
    %3703 = vmatpush1.msra.mxu0 %v3702
    %3704 = vmatprep.subr.mxu0 0.0
    %v3705 = vand.u32 %v153, 4294901760
    %3706 = vmatpush1.msra.mxu0 %v3705
    %3707 = vmatprep.subr.mxu0 0.0
    %v3708 = vand.u32 %v154, 4294901760
    %3709 = vmatpush1.msra.mxu0 %v3708
    %3710 = vmatprep.subr.mxu0 0.0
    %v3711 = vand.u32 %v155, 4294901760
    %3712 = vmatpush1.msra.mxu0 %v3711
    %3713 = vmatprep.subr.mxu0 0.0
    %v3714 = vand.u32 %v156, 4294901760
    %3715 = vmatpush1.msra.mxu0 %v3714
    %3716 = vmatprep.subr.mxu0 0.0
    %v3717 = vand.u32 %v157, 4294901760
    %3718 = vmatpush1.msra.mxu0 %v3717
    %3719 = vmatprep.subr.mxu0 0.0
    %v3720 = vand.u32 %v158, 4294901760
    %3721 = vmatpush1.msra.mxu0 %v3720
    %3722 = vmatprep.subr.mxu0 0.0
    %v3723 = vand.u32 %v159, 4294901760
    %3724 = vmatpush1.msra.mxu0 %v3723
    %3725 = vmatprep.subr.mxu0 0.0
    %v3726 = vand.u32 %v160, 4294901760
    %3727 = vmatpush1.msra.mxu0 %v3726
    %3728 = vmatprep.subr.mxu0 0.0
    %v3729 = vand.u32 %v161, 4294901760
    %3730 = vmatpush1.msra.mxu0 %v3729
    %3731 = vmatprep.subr.mxu0 0.0
    %v3732 = vand.u32 %v162, 4294901760
    %3733 = vmatpush1.msra.mxu0 %v3732
    %3734 = vmatprep.subr.mxu0 0.0
    %v3735 = vand.u32 %v163, 4294901760
    %3736 = vmatpush1.msra.mxu0 %v3735
    %3737 = vmatprep.subr.mxu0 0.0
    %v3738 = vand.u32 %v164, 4294901760
    %3739 = vmatpush1.msra.mxu0 %v3738
    %3740 = vmatprep.subr.mxu0 0.0
    %v3741 = vand.u32 %v165, 4294901760
    %3742 = vmatpush1.msra.mxu0 %v3741
    %3743 = vmatprep.subr.mxu0 0.0
    %v3744 = vand.u32 %v166, 4294901760
    %3745 = vmatpush1.msra.mxu0 %v3744
    %3746 = vmatprep.subr.mxu0 0.0
    %v3747 = vand.u32 %v167, 4294901760
    %3748 = vmatpush1.msra.mxu0 %v3747
    %3749 = vmatprep.subr.mxu0 0.0
    %v3750 = vand.u32 %v168, 4294901760
    %3751 = vmatpush1.msra.mxu0 %v3750
    %3752 = vmatprep.subr.mxu0 0.0
    %v3753 = vand.u32 %v169, 4294901760
    %3754 = vmatpush1.msra.mxu0 %v3753
    %3755 = vmatprep.subr.mxu0 0.0
    %v3756 = vand.u32 %v170, 4294901760
    %3757 = vmatpush1.msra.mxu0 %v3756
    %3758 = vmatprep.subr.mxu0 0.0
    %v3759 = vand.u32 %v171, 4294901760
    %3760 = vmatpush1.msra.mxu0 %v3759
    %v3761 = vand.u32 %v287, 4294901760
    %3762 = vmatprep.mubr.f32.mxu0 %v3761
    %v3763 = vand.u32 %v283, 4294901760
    %3764 = vmatmul.mubr.f32.gmra.mrb[0].mxu0 %v3763
    %v3765 = vpop.f32.mrb[0].mxu0
    %v3766 = vadd.f32 %v3662, %v3765
    %v3767 = vpop.f32.mrb[0].mxu0
    %3768 = vdwg.mxu0
    %3769 = vmatprep.subr.mxu0 0.0
    %v3770 = vand.u32 %v172, 4294901760
    %3771 = vmatpush1.msra.mxu0 %v3770
    %3772 = vmatprep.subr.mxu0 0.0
    %v3773 = vand.u32 %v173, 4294901760
    %3774 = vmatpush1.msra.mxu0 %v3773
    %3775 = vmatprep.subr.mxu0 0.0
    %v3776 = vand.u32 %v174, 4294901760
    %3777 = vmatpush1.msra.mxu0 %v3776
    %3778 = vmatprep.subr.mxu0 0.0
    %v3779 = vand.u32 %v175, 4294901760
    %3780 = vmatpush1.msra.mxu0 %v3779
    %3781 = vmatprep.subr.mxu0 0.0
    %v3782 = vand.u32 %v176, 4294901760
    %3783 = vmatpush1.msra.mxu0 %v3782
    %3784 = vmatprep.subr.mxu0 0.0
    %v3785 = vand.u32 %v177, 4294901760
    %3786 = vmatpush1.msra.mxu0 %v3785
    %3787 = vmatprep.subr.mxu0 0.0
    %v3788 = vand.u32 %v178, 4294901760
    %3789 = vmatpush1.msra.mxu0 %v3788
    %3790 = vmatprep.subr.mxu0 0.0
    %v3791 = vand.u32 %v179, 4294901760
    %3792 = vmatpush1.msra.mxu0 %v3791
    %3793 = vmatprep.subr.mxu0 0.0
    %v3794 = vand.u32 %v180, 4294901760
    %3795 = vmatpush1.msra.mxu0 %v3794
    %3796 = vmatprep.subr.mxu0 0.0
    %v3797 = vand.u32 %v181, 4294901760
    %3798 = vmatpush1.msra.mxu0 %v3797
    %3799 = vmatprep.subr.mxu0 0.0
    %v3800 = vand.u32 %v182, 4294901760
    %3801 = vmatpush1.msra.mxu0 %v3800
    %3802 = vmatprep.subr.mxu0 0.0
    %v3803 = vand.u32 %v183, 4294901760
    %3804 = vmatpush1.msra.mxu0 %v3803
    %3805 = vmatprep.subr.mxu0 0.0
    %v3806 = vand.u32 %v184, 4294901760
    %3807 = vmatpush1.msra.mxu0 %v3806
    %3808 = vmatprep.subr.mxu0 0.0
    %v3809 = vand.u32 %v185, 4294901760
    %3810 = vmatpush1.msra.mxu0 %v3809
    %3811 = vmatprep.subr.mxu0 0.0
    %v3812 = vand.u32 %v186, 4294901760
    %3813 = vmatpush1.msra.mxu0 %v3812
    %3814 = vmatprep.subr.mxu0 0.0
    %v3815 = vand.u32 %v187, 4294901760
    %3816 = vmatpush1.msra.mxu0 %v3815
    %3817 = vmatprep.subr.mxu0 0.0
    %v3818 = vand.u32 %v188, 4294901760
    %3819 = vmatpush1.msra.mxu0 %v3818
    %3820 = vmatprep.subr.mxu0 0.0
    %v3821 = vand.u32 %v189, 4294901760
    %3822 = vmatpush1.msra.mxu0 %v3821
    %3823 = vmatprep.subr.mxu0 0.0
    %v3824 = vand.u32 %v190, 4294901760
    %3825 = vmatpush1.msra.mxu0 %v3824
    %3826 = vmatprep.subr.mxu0 0.0
    %v3827 = vand.u32 %v191, 4294901760
    %3828 = vmatpush1.msra.mxu0 %v3827
    %3829 = vmatprep.subr.mxu0 0.0
    %v3830 = vand.u32 %v192, 4294901760
    %3831 = vmatpush1.msra.mxu0 %v3830
    %3832 = vmatprep.subr.mxu0 0.0
    %v3833 = vand.u32 %v193, 4294901760
    %3834 = vmatpush1.msra.mxu0 %v3833
    %3835 = vmatprep.subr.mxu0 0.0
    %v3836 = vand.u32 %v194, 4294901760
    %3837 = vmatpush1.msra.mxu0 %v3836
    %3838 = vmatprep.subr.mxu0 0.0
    %v3839 = vand.u32 %v195, 4294901760
    %3840 = vmatpush1.msra.mxu0 %v3839
    %3841 = vmatprep.subr.mxu0 0.0
    %v3842 = vand.u32 %v196, 4294901760
    %3843 = vmatpush1.msra.mxu0 %v3842
    %3844 = vmatprep.subr.mxu0 0.0
    %v3845 = vand.u32 %v197, 4294901760
    %3846 = vmatpush1.msra.mxu0 %v3845
    %3847 = vmatprep.subr.mxu0 0.0
    %v3848 = vand.u32 %v198, 4294901760
    %3849 = vmatpush1.msra.mxu0 %v3848
    %3850 = vmatprep.subr.mxu0 0.0
    %v3851 = vand.u32 %v199, 4294901760
    %3852 = vmatpush1.msra.mxu0 %v3851
    %3853 = vmatprep.subr.mxu0 0.0
    %v3854 = vand.u32 %v200, 4294901760
    %3855 = vmatpush1.msra.mxu0 %v3854
    %3856 = vmatprep.subr.mxu0 0.0
    %v3857 = vand.u32 %v201, 4294901760
    %3858 = vmatpush1.msra.mxu0 %v3857
    %3859 = vmatprep.subr.mxu0 0.0
    %v3860 = vand.u32 %v202, 4294901760
    %3861 = vmatpush1.msra.mxu0 %v3860
    %3862 = vmatprep.subr.mxu0 0.0
    %v3863 = vand.u32 %v203, 4294901760
    %3864 = vmatpush1.msra.mxu0 %v3863
    %v3865 = vand.u32 %v295, 4294901760
    %v3866 = vsub.f32 %v295, %v3865
    %v3867 = vand.u32 %v3866, 4294901760
    %v3868 = vsub.f32 %v3866, %v3867
    %v3869 = vand.u32 %v3868, 4294901760
    %3870 = vmatprep.mubr.f32.mxu0 %v3869
    %v3871 = vand.u32 %v291, 4294901760
    %v3872 = vsub.f32 %v291, %v3871
    %v3873 = vand.u32 %v3872, 4294901760
    %v3874 = vsub.f32 %v3872, %v3873
    %v3875 = vand.u32 %v3874, 4294901760
    %3876 = vmatmul.mubr.f32.gmra.mrb[0].mxu0 %v3875
    %v3877 = vpop.f32.mrb[0].mxu0
    %v3878 = vadd.f32 %v3766, %v3877
    %v3879 = vpop.f32.mrb[0].mxu0
    %3880 = vdwg.mxu0
    %3881 = vmatprep.subr.mxu0 0.0
    %v3882 = vand.u32 %v172, 4294901760
    %v3883 = vsub.f32 %v172, %v3882
    %v3884 = vand.u32 %v3883, 4294901760
    %v3885 = vsub.f32 %v3883, %v3884
    %v3886 = vand.u32 %v3885, 4294901760
    %3887 = vmatpush1.msra.mxu0 %v3886
    %3888 = vmatprep.subr.mxu0 0.0
    %v3889 = vand.u32 %v173, 4294901760
    %v3890 = vsub.f32 %v173, %v3889
    %v3891 = vand.u32 %v3890, 4294901760
    %v3892 = vsub.f32 %v3890, %v3891
    %v3893 = vand.u32 %v3892, 4294901760
    %3894 = vmatpush1.msra.mxu0 %v3893
    %3895 = vmatprep.subr.mxu0 0.0
    %v3896 = vand.u32 %v174, 4294901760
    %v3897 = vsub.f32 %v174, %v3896
    %v3898 = vand.u32 %v3897, 4294901760
    %v3899 = vsub.f32 %v3897, %v3898
    %v3900 = vand.u32 %v3899, 4294901760
    %3901 = vmatpush1.msra.mxu0 %v3900
    %3902 = vmatprep.subr.mxu0 0.0
    %v3903 = vand.u32 %v175, 4294901760
    %v3904 = vsub.f32 %v175, %v3903
    %v3905 = vand.u32 %v3904, 4294901760
    %v3906 = vsub.f32 %v3904, %v3905
    %v3907 = vand.u32 %v3906, 4294901760
    %3908 = vmatpush1.msra.mxu0 %v3907
    %3909 = vmatprep.subr.mxu0 0.0
    %v3910 = vand.u32 %v176, 4294901760
    %v3911 = vsub.f32 %v176, %v3910
    %v3912 = vand.u32 %v3911, 4294901760
    %v3913 = vsub.f32 %v3911, %v3912
    %v3914 = vand.u32 %v3913, 4294901760
    %3915 = vmatpush1.msra.mxu0 %v3914
    %3916 = vmatprep.subr.mxu0 0.0
    %v3917 = vand.u32 %v177, 4294901760
    %v3918 = vsub.f32 %v177, %v3917
    %v3919 = vand.u32 %v3918, 4294901760
    %v3920 = vsub.f32 %v3918, %v3919
    %v3921 = vand.u32 %v3920, 4294901760
    %3922 = vmatpush1.msra.mxu0 %v3921
    %3923 = vmatprep.subr.mxu0 0.0
    %v3924 = vand.u32 %v178, 4294901760
    %v3925 = vsub.f32 %v178, %v3924
    %v3926 = vand.u32 %v3925, 4294901760
    %v3927 = vsub.f32 %v3925, %v3926
    %v3928 = vand.u32 %v3927, 4294901760
    %3929 = vmatpush1.msra.mxu0 %v3928
    %3930 = vmatprep.subr.mxu0 0.0
    %v3931 = vand.u32 %v179, 4294901760
    %v3932 = vsub.f32 %v179, %v3931
    %v3933 = vand.u32 %v3932, 4294901760
    %v3934 = vsub.f32 %v3932, %v3933
    %v3935 = vand.u32 %v3934, 4294901760
    %3936 = vmatpush1.msra.mxu0 %v3935
    %3937 = vmatprep.subr.mxu0 0.0
    %v3938 = vand.u32 %v180, 4294901760
    %v3939 = vsub.f32 %v180, %v3938
    %v3940 = vand.u32 %v3939, 4294901760
    %v3941 = vsub.f32 %v3939, %v3940
    %v3942 = vand.u32 %v3941, 4294901760
    %3943 = vmatpush1.msra.mxu0 %v3942
    %3944 = vmatprep.subr.mxu0 0.0
    %v3945 = vand.u32 %v181, 4294901760
    %v3946 = vsub.f32 %v181, %v3945
    %v3947 = vand.u32 %v3946, 4294901760
    %v3948 = vsub.f32 %v3946, %v3947
    %v3949 = vand.u32 %v3948, 4294901760
    %3950 = vmatpush1.msra.mxu0 %v3949
    %3951 = vmatprep.subr.mxu0 0.0
    %v3952 = vand.u32 %v182, 4294901760
    %v3953 = vsub.f32 %v182, %v3952
    %v3954 = vand.u32 %v3953, 4294901760
    %v3955 = vsub.f32 %v3953, %v3954
    %v3956 = vand.u32 %v3955, 4294901760
    %3957 = vmatpush1.msra.mxu0 %v3956
    %3958 = vmatprep.subr.mxu0 0.0
    %v3959 = vand.u32 %v183, 4294901760
    %v3960 = vsub.f32 %v183, %v3959
    %v3961 = vand.u32 %v3960, 4294901760
    %v3962 = vsub.f32 %v3960, %v3961
    %v3963 = vand.u32 %v3962, 4294901760
    %3964 = vmatpush1.msra.mxu0 %v3963
    %3965 = vmatprep.subr.mxu0 0.0
    %v3966 = vand.u32 %v184, 4294901760
    %v3967 = vsub.f32 %v184, %v3966
    %v3968 = vand.u32 %v3967, 4294901760
    %v3969 = vsub.f32 %v3967, %v3968
    %v3970 = vand.u32 %v3969, 4294901760
    %3971 = vmatpush1.msra.mxu0 %v3970
    %3972 = vmatprep.subr.mxu0 0.0
    %v3973 = vand.u32 %v185, 4294901760
    %v3974 = vsub.f32 %v185, %v3973
    %v3975 = vand.u32 %v3974, 4294901760
    %v3976 = vsub.f32 %v3974, %v3975
    %v3977 = vand.u32 %v3976, 4294901760
    %3978 = vmatpush1.msra.mxu0 %v3977
    %3979 = vmatprep.subr.mxu0 0.0
    %v3980 = vand.u32 %v186, 4294901760
    %v3981 = vsub.f32 %v186, %v3980
    %v3982 = vand.u32 %v3981, 4294901760
    %v3983 = vsub.f32 %v3981, %v3982
    %v3984 = vand.u32 %v3983, 4294901760
    %3985 = vmatpush1.msra.mxu0 %v3984
    %3986 = vmatprep.subr.mxu0 0.0
    %v3987 = vand.u32 %v187, 4294901760
    %v3988 = vsub.f32 %v187, %v3987
    %v3989 = vand.u32 %v3988, 4294901760
    %v3990 = vsub.f32 %v3988, %v3989
    %v3991 = vand.u32 %v3990, 4294901760
    %3992 = vmatpush1.msra.mxu0 %v3991
    %3993 = vmatprep.subr.mxu0 0.0
    %v3994 = vand.u32 %v188, 4294901760
    %v3995 = vsub.f32 %v188, %v3994
    %v3996 = vand.u32 %v3995, 4294901760
    %v3997 = vsub.f32 %v3995, %v3996
    %v3998 = vand.u32 %v3997, 4294901760
    %3999 = vmatpush1.msra.mxu0 %v3998
    %4000 = vmatprep.subr.mxu0 0.0
    %v4001 = vand.u32 %v189, 4294901760
    %v4002 = vsub.f32 %v189, %v4001
    %v4003 = vand.u32 %v4002, 4294901760
    %v4004 = vsub.f32 %v4002, %v4003
    %v4005 = vand.u32 %v4004, 4294901760
    %4006 = vmatpush1.msra.mxu0 %v4005
    %4007 = vmatprep.subr.mxu0 0.0
    %v4008 = vand.u32 %v190, 4294901760
    %v4009 = vsub.f32 %v190, %v4008
    %v4010 = vand.u32 %v4009, 4294901760
    %v4011 = vsub.f32 %v4009, %v4010
    %v4012 = vand.u32 %v4011, 4294901760
    %4013 = vmatpush1.msra.mxu0 %v4012
    %4014 = vmatprep.subr.mxu0 0.0
    %v4015 = vand.u32 %v191, 4294901760
    %v4016 = vsub.f32 %v191, %v4015
    %v4017 = vand.u32 %v4016, 4294901760
    %v4018 = vsub.f32 %v4016, %v4017
    %v4019 = vand.u32 %v4018, 4294901760
    %4020 = vmatpush1.msra.mxu0 %v4019
    %4021 = vmatprep.subr.mxu0 0.0
    %v4022 = vand.u32 %v192, 4294901760
    %v4023 = vsub.f32 %v192, %v4022
    %v4024 = vand.u32 %v4023, 4294901760
    %v4025 = vsub.f32 %v4023, %v4024
    %v4026 = vand.u32 %v4025, 4294901760
    %4027 = vmatpush1.msra.mxu0 %v4026
    %4028 = vmatprep.subr.mxu0 0.0
    %v4029 = vand.u32 %v193, 4294901760
    %v4030 = vsub.f32 %v193, %v4029
    %v4031 = vand.u32 %v4030, 4294901760
    %v4032 = vsub.f32 %v4030, %v4031
    %v4033 = vand.u32 %v4032, 4294901760
    %4034 = vmatpush1.msra.mxu0 %v4033
    %4035 = vmatprep.subr.mxu0 0.0
    %v4036 = vand.u32 %v194, 4294901760
    %v4037 = vsub.f32 %v194, %v4036
    %v4038 = vand.u32 %v4037, 4294901760
    %v4039 = vsub.f32 %v4037, %v4038
    %v4040 = vand.u32 %v4039, 4294901760
    %4041 = vmatpush1.msra.mxu0 %v4040
    %4042 = vmatprep.subr.mxu0 0.0
    %v4043 = vand.u32 %v195, 4294901760
    %v4044 = vsub.f32 %v195, %v4043
    %v4045 = vand.u32 %v4044, 4294901760
    %v4046 = vsub.f32 %v4044, %v4045
    %v4047 = vand.u32 %v4046, 4294901760
    %4048 = vmatpush1.msra.mxu0 %v4047
    %4049 = vmatprep.subr.mxu0 0.0
    %v4050 = vand.u32 %v196, 4294901760
    %v4051 = vsub.f32 %v196, %v4050
    %v4052 = vand.u32 %v4051, 4294901760
    %v4053 = vsub.f32 %v4051, %v4052
    %v4054 = vand.u32 %v4053, 4294901760
    %4055 = vmatpush1.msra.mxu0 %v4054
    %4056 = vmatprep.subr.mxu0 0.0
    %v4057 = vand.u32 %v197, 4294901760
    %v4058 = vsub.f32 %v197, %v4057
    %v4059 = vand.u32 %v4058, 4294901760
    %v4060 = vsub.f32 %v4058, %v4059
    %v4061 = vand.u32 %v4060, 4294901760
    %4062 = vmatpush1.msra.mxu0 %v4061
    %4063 = vmatprep.subr.mxu0 0.0
    %v4064 = vand.u32 %v198, 4294901760
    %v4065 = vsub.f32 %v198, %v4064
    %v4066 = vand.u32 %v4065, 4294901760
    %v4067 = vsub.f32 %v4065, %v4066
    %v4068 = vand.u32 %v4067, 4294901760
    %4069 = vmatpush1.msra.mxu0 %v4068
    %4070 = vmatprep.subr.mxu0 0.0
    %v4071 = vand.u32 %v199, 4294901760
    %v4072 = vsub.f32 %v199, %v4071
    %v4073 = vand.u32 %v4072, 4294901760
    %v4074 = vsub.f32 %v4072, %v4073
    %v4075 = vand.u32 %v4074, 4294901760
    %4076 = vmatpush1.msra.mxu0 %v4075
    %4077 = vmatprep.subr.mxu0 0.0
    %v4078 = vand.u32 %v200, 4294901760
    %v4079 = vsub.f32 %v200, %v4078
    %v4080 = vand.u32 %v4079, 4294901760
    %v4081 = vsub.f32 %v4079, %v4080
    %v4082 = vand.u32 %v4081, 4294901760
    %4083 = vmatpush1.msra.mxu0 %v4082
    %4084 = vmatprep.subr.mxu0 0.0
    %v4085 = vand.u32 %v201, 4294901760
    %v4086 = vsub.f32 %v201, %v4085
    %v4087 = vand.u32 %v4086, 4294901760
    %v4088 = vsub.f32 %v4086, %v4087
    %v4089 = vand.u32 %v4088, 4294901760
    %4090 = vmatpush1.msra.mxu0 %v4089
    %4091 = vmatprep.subr.mxu0 0.0
    %v4092 = vand.u32 %v202, 4294901760
    %v4093 = vsub.f32 %v202, %v4092
    %v4094 = vand.u32 %v4093, 4294901760
    %v4095 = vsub.f32 %v4093, %v4094
    %v4096 = vand.u32 %v4095, 4294901760
    %4097 = vmatpush1.msra.mxu0 %v4096
    %4098 = vmatprep.subr.mxu0 0.0
    %v4099 = vand.u32 %v203, 4294901760
    %v4100 = vsub.f32 %v203, %v4099
    %v4101 = vand.u32 %v4100, 4294901760
    %v4102 = vsub.f32 %v4100, %v4101
    %v4103 = vand.u32 %v4102, 4294901760
    %4104 = vmatpush1.msra.mxu0 %v4103
    %v4105 = vand.u32 %v295, 4294901760
    %4106 = vmatprep.mubr.f32.mxu0 %v4105
    %v4107 = vand.u32 %v291, 4294901760
    %4108 = vmatmul.mubr.f32.gmra.mrb[0].mxu0 %v4107
    %v4109 = vpop.f32.mrb[0].mxu0
    %v4110 = vadd.f32 %v3878, %v4109
    %v4111 = vpop.f32.mrb[0].mxu0
    %4112 = vdwg.mxu0
    %4113 = vmatprep.subr.mxu0 0.0
    %v4114 = vand.u32 %v172, 4294901760
    %v4115 = vsub.f32 %v172, %v4114
    %4116 = vmatpush1.msra.mxu0 %v4115
    %4117 = vmatprep.subr.mxu0 0.0
    %v4118 = vand.u32 %v173, 4294901760
    %v4119 = vsub.f32 %v173, %v4118
    %4120 = vmatpush1.msra.mxu0 %v4119
    %4121 = vmatprep.subr.mxu0 0.0
    %v4122 = vand.u32 %v174, 4294901760
    %v4123 = vsub.f32 %v174, %v4122
    %4124 = vmatpush1.msra.mxu0 %v4123
    %4125 = vmatprep.subr.mxu0 0.0
    %v4126 = vand.u32 %v175, 4294901760
    %v4127 = vsub.f32 %v175, %v4126
    %4128 = vmatpush1.msra.mxu0 %v4127
    %4129 = vmatprep.subr.mxu0 0.0
    %v4130 = vand.u32 %v176, 4294901760
    %v4131 = vsub.f32 %v176, %v4130
    %4132 = vmatpush1.msra.mxu0 %v4131
    %4133 = vmatprep.subr.mxu0 0.0
    %v4134 = vand.u32 %v177, 4294901760
    %v4135 = vsub.f32 %v177, %v4134
    %4136 = vmatpush1.msra.mxu0 %v4135
    %4137 = vmatprep.subr.mxu0 0.0
    %v4138 = vand.u32 %v178, 4294901760
    %v4139 = vsub.f32 %v178, %v4138
    %4140 = vmatpush1.msra.mxu0 %v4139
    %4141 = vmatprep.subr.mxu0 0.0
    %v4142 = vand.u32 %v179, 4294901760
    %v4143 = vsub.f32 %v179, %v4142
    %4144 = vmatpush1.msra.mxu0 %v4143
    %4145 = vmatprep.subr.mxu0 0.0
    %v4146 = vand.u32 %v180, 4294901760
    %v4147 = vsub.f32 %v180, %v4146
    %4148 = vmatpush1.msra.mxu0 %v4147
    %4149 = vmatprep.subr.mxu0 0.0
    %v4150 = vand.u32 %v181, 4294901760
    %v4151 = vsub.f32 %v181, %v4150
    %4152 = vmatpush1.msra.mxu0 %v4151
    %4153 = vmatprep.subr.mxu0 0.0
    %v4154 = vand.u32 %v182, 4294901760
    %v4155 = vsub.f32 %v182, %v4154
    %4156 = vmatpush1.msra.mxu0 %v4155
    %4157 = vmatprep.subr.mxu0 0.0
    %v4158 = vand.u32 %v183, 4294901760
    %v4159 = vsub.f32 %v183, %v4158
    %4160 = vmatpush1.msra.mxu0 %v4159
    %4161 = vmatprep.subr.mxu0 0.0
    %v4162 = vand.u32 %v184, 4294901760
    %v4163 = vsub.f32 %v184, %v4162
    %4164 = vmatpush1.msra.mxu0 %v4163
    %4165 = vmatprep.subr.mxu0 0.0
    %v4166 = vand.u32 %v185, 4294901760
    %v4167 = vsub.f32 %v185, %v4166
    %4168 = vmatpush1.msra.mxu0 %v4167
    %4169 = vmatprep.subr.mxu0 0.0
    %v4170 = vand.u32 %v186, 4294901760
    %v4171 = vsub.f32 %v186, %v4170
    %4172 = vmatpush1.msra.mxu0 %v4171
    %4173 = vmatprep.subr.mxu0 0.0
    %v4174 = vand.u32 %v187, 4294901760
    %v4175 = vsub.f32 %v187, %v4174
    %4176 = vmatpush1.msra.mxu0 %v4175
    %4177 = vmatprep.subr.mxu0 0.0
    %v4178 = vand.u32 %v188, 4294901760
    %v4179 = vsub.f32 %v188, %v4178
    %4180 = vmatpush1.msra.mxu0 %v4179
    %4181 = vmatprep.subr.mxu0 0.0
    %v4182 = vand.u32 %v189, 4294901760
    %v4183 = vsub.f32 %v189, %v4182
    %4184 = vmatpush1.msra.mxu0 %v4183
    %4185 = vmatprep.subr.mxu0 0.0
    %v4186 = vand.u32 %v190, 4294901760
    %v4187 = vsub.f32 %v190, %v4186
    %4188 = vmatpush1.msra.mxu0 %v4187
    %4189 = vmatprep.subr.mxu0 0.0
    %v4190 = vand.u32 %v191, 4294901760
    %v4191 = vsub.f32 %v191, %v4190
    %4192 = vmatpush1.msra.mxu0 %v4191
    %4193 = vmatprep.subr.mxu0 0.0
    %v4194 = vand.u32 %v192, 4294901760
    %v4195 = vsub.f32 %v192, %v4194
    %4196 = vmatpush1.msra.mxu0 %v4195
    %4197 = vmatprep.subr.mxu0 0.0
    %v4198 = vand.u32 %v193, 4294901760
    %v4199 = vsub.f32 %v193, %v4198
    %4200 = vmatpush1.msra.mxu0 %v4199
    %4201 = vmatprep.subr.mxu0 0.0
    %v4202 = vand.u32 %v194, 4294901760
    %v4203 = vsub.f32 %v194, %v4202
    %4204 = vmatpush1.msra.mxu0 %v4203
    %4205 = vmatprep.subr.mxu0 0.0
    %v4206 = vand.u32 %v195, 4294901760
    %v4207 = vsub.f32 %v195, %v4206
    %4208 = vmatpush1.msra.mxu0 %v4207
    %4209 = vmatprep.subr.mxu0 0.0
    %v4210 = vand.u32 %v196, 4294901760
    %v4211 = vsub.f32 %v196, %v4210
    %4212 = vmatpush1.msra.mxu0 %v4211
    %4213 = vmatprep.subr.mxu0 0.0
    %v4214 = vand.u32 %v197, 4294901760
    %v4215 = vsub.f32 %v197, %v4214
    %4216 = vmatpush1.msra.mxu0 %v4215
    %4217 = vmatprep.subr.mxu0 0.0
    %v4218 = vand.u32 %v198, 4294901760
    %v4219 = vsub.f32 %v198, %v4218
    %4220 = vmatpush1.msra.mxu0 %v4219
    %4221 = vmatprep.subr.mxu0 0.0
    %v4222 = vand.u32 %v199, 4294901760
    %v4223 = vsub.f32 %v199, %v4222
    %4224 = vmatpush1.msra.mxu0 %v4223
    %4225 = vmatprep.subr.mxu0 0.0
    %v4226 = vand.u32 %v200, 4294901760
    %v4227 = vsub.f32 %v200, %v4226
    %4228 = vmatpush1.msra.mxu0 %v4227
    %4229 = vmatprep.subr.mxu0 0.0
    %v4230 = vand.u32 %v201, 4294901760
    %v4231 = vsub.f32 %v201, %v4230
    %4232 = vmatpush1.msra.mxu0 %v4231
    %4233 = vmatprep.subr.mxu0 0.0
    %v4234 = vand.u32 %v202, 4294901760
    %v4235 = vsub.f32 %v202, %v4234
    %4236 = vmatpush1.msra.mxu0 %v4235
    %4237 = vmatprep.subr.mxu0 0.0
    %v4238 = vand.u32 %v203, 4294901760
    %v4239 = vsub.f32 %v203, %v4238
    %4240 = vmatpush1.msra.mxu0 %v4239
    %v4241 = vand.u32 %v295, 4294901760
    %v4242 = vsub.f32 %v295, %v4241
    %4243 = vmatprep.mubr.f32.mxu0 %v4242
    %v4244 = vand.u32 %v291, 4294901760
    %v4245 = vsub.f32 %v291, %v4244
    %4246 = vmatmul.mubr.f32.gmra.mrb[0].mxu0 %v4245
    %v4247 = vpop.f32.mrb[0].mxu0
    %v4248 = vadd.f32 %v4110, %v4247
    %v4249 = vpop.f32.mrb[0].mxu0
    %4250 = vdwg.mxu0
    %4251 = vmatprep.subr.mxu0 0.0
    %v4252 = vand.u32 %v172, 4294901760
    %4253 = vmatpush1.msra.mxu0 %v4252
    %4254 = vmatprep.subr.mxu0 0.0
    %v4255 = vand.u32 %v173, 4294901760
    %4256 = vmatpush1.msra.mxu0 %v4255
    %4257 = vmatprep.subr.mxu0 0.0
    %v4258 = vand.u32 %v174, 4294901760
    %4259 = vmatpush1.msra.mxu0 %v4258
    %4260 = vmatprep.subr.mxu0 0.0
    %v4261 = vand.u32 %v175, 4294901760
    %4262 = vmatpush1.msra.mxu0 %v4261
    %4263 = vmatprep.subr.mxu0 0.0
    %v4264 = vand.u32 %v176, 4294901760
    %4265 = vmatpush1.msra.mxu0 %v4264
    %4266 = vmatprep.subr.mxu0 0.0
    %v4267 = vand.u32 %v177, 4294901760
    %4268 = vmatpush1.msra.mxu0 %v4267
    %4269 = vmatprep.subr.mxu0 0.0
    %v4270 = vand.u32 %v178, 4294901760
    %4271 = vmatpush1.msra.mxu0 %v4270
    %4272 = vmatprep.subr.mxu0 0.0
    %v4273 = vand.u32 %v179, 4294901760
    %4274 = vmatpush1.msra.mxu0 %v4273
    %4275 = vmatprep.subr.mxu0 0.0
    %v4276 = vand.u32 %v180, 4294901760
    %4277 = vmatpush1.msra.mxu0 %v4276
    %4278 = vmatprep.subr.mxu0 0.0
    %v4279 = vand.u32 %v181, 4294901760
    %4280 = vmatpush1.msra.mxu0 %v4279
    %4281 = vmatprep.subr.mxu0 0.0
    %v4282 = vand.u32 %v182, 4294901760
    %4283 = vmatpush1.msra.mxu0 %v4282
    %4284 = vmatprep.subr.mxu0 0.0
    %v4285 = vand.u32 %v183, 4294901760
    %4286 = vmatpush1.msra.mxu0 %v4285
    %4287 = vmatprep.subr.mxu0 0.0
    %v4288 = vand.u32 %v184, 4294901760
    %4289 = vmatpush1.msra.mxu0 %v4288
    %4290 = vmatprep.subr.mxu0 0.0
    %v4291 = vand.u32 %v185, 4294901760
    %4292 = vmatpush1.msra.mxu0 %v4291
    %4293 = vmatprep.subr.mxu0 0.0
    %v4294 = vand.u32 %v186, 4294901760
    %4295 = vmatpush1.msra.mxu0 %v4294
    %4296 = vmatprep.subr.mxu0 0.0
    %v4297 = vand.u32 %v187, 4294901760
    %4298 = vmatpush1.msra.mxu0 %v4297
    %4299 = vmatprep.subr.mxu0 0.0
    %v4300 = vand.u32 %v188, 4294901760
    %4301 = vmatpush1.msra.mxu0 %v4300
    %4302 = vmatprep.subr.mxu0 0.0
    %v4303 = vand.u32 %v189, 4294901760
    %4304 = vmatpush1.msra.mxu0 %v4303
    %4305 = vmatprep.subr.mxu0 0.0
    %v4306 = vand.u32 %v190, 4294901760
    %4307 = vmatpush1.msra.mxu0 %v4306
    %4308 = vmatprep.subr.mxu0 0.0
    %v4309 = vand.u32 %v191, 4294901760
    %4310 = vmatpush1.msra.mxu0 %v4309
    %4311 = vmatprep.subr.mxu0 0.0
    %v4312 = vand.u32 %v192, 4294901760
    %4313 = vmatpush1.msra.mxu0 %v4312
    %4314 = vmatprep.subr.mxu0 0.0
    %v4315 = vand.u32 %v193, 4294901760
    %4316 = vmatpush1.msra.mxu0 %v4315
    %4317 = vmatprep.subr.mxu0 0.0
    %v4318 = vand.u32 %v194, 4294901760
    %4319 = vmatpush1.msra.mxu0 %v4318
    %4320 = vmatprep.subr.mxu0 0.0
    %v4321 = vand.u32 %v195, 4294901760
    %4322 = vmatpush1.msra.mxu0 %v4321
    %4323 = vmatprep.subr.mxu0 0.0
    %v4324 = vand.u32 %v196, 4294901760
    %4325 = vmatpush1.msra.mxu0 %v4324
    %4326 = vmatprep.subr.mxu0 0.0
    %v4327 = vand.u32 %v197, 4294901760
    %4328 = vmatpush1.msra.mxu0 %v4327
    %4329 = vmatprep.subr.mxu0 0.0
    %v4330 = vand.u32 %v198, 4294901760
    %4331 = vmatpush1.msra.mxu0 %v4330
    %4332 = vmatprep.subr.mxu0 0.0
    %v4333 = vand.u32 %v199, 4294901760
    %4334 = vmatpush1.msra.mxu0 %v4333
    %4335 = vmatprep.subr.mxu0 0.0
    %v4336 = vand.u32 %v200, 4294901760
    %4337 = vmatpush1.msra.mxu0 %v4336
    %4338 = vmatprep.subr.mxu0 0.0
    %v4339 = vand.u32 %v201, 4294901760
    %4340 = vmatpush1.msra.mxu0 %v4339
    %4341 = vmatprep.subr.mxu0 0.0
    %v4342 = vand.u32 %v202, 4294901760
    %4343 = vmatpush1.msra.mxu0 %v4342
    %4344 = vmatprep.subr.mxu0 0.0
    %v4345 = vand.u32 %v203, 4294901760
    %4346 = vmatpush1.msra.mxu0 %v4345
    %v4347 = vand.u32 %v295, 4294901760
    %v4348 = vsub.f32 %v295, %v4347
    %v4349 = vand.u32 %v4348, 4294901760
    %4350 = vmatprep.mubr.f32.mxu0 %v4349
    %v4351 = vand.u32 %v291, 4294901760
    %v4352 = vsub.f32 %v291, %v4351
    %v4353 = vand.u32 %v4352, 4294901760
    %4354 = vmatmul.mubr.f32.gmra.mrb[0].mxu0 %v4353
    %v4355 = vpop.f32.mrb[0].mxu0
    %v4356 = vadd.f32 %v4248, %v4355
    %v4357 = vpop.f32.mrb[0].mxu0
    %4358 = vdwg.mxu0
    %4359 = vmatprep.subr.mxu0 0.0
    %v4360 = vand.u32 %v172, 4294901760
    %v4361 = vsub.f32 %v172, %v4360
    %v4362 = vand.u32 %v4361, 4294901760
    %4363 = vmatpush1.msra.mxu0 %v4362
    %4364 = vmatprep.subr.mxu0 0.0
    %v4365 = vand.u32 %v173, 4294901760
    %v4366 = vsub.f32 %v173, %v4365
    %v4367 = vand.u32 %v4366, 4294901760
    %4368 = vmatpush1.msra.mxu0 %v4367
    %4369 = vmatprep.subr.mxu0 0.0
    %v4370 = vand.u32 %v174, 4294901760
    %v4371 = vsub.f32 %v174, %v4370
    %v4372 = vand.u32 %v4371, 4294901760
    %4373 = vmatpush1.msra.mxu0 %v4372
    %4374 = vmatprep.subr.mxu0 0.0
    %v4375 = vand.u32 %v175, 4294901760
    %v4376 = vsub.f32 %v175, %v4375
    %v4377 = vand.u32 %v4376, 4294901760
    %4378 = vmatpush1.msra.mxu0 %v4377
    %4379 = vmatprep.subr.mxu0 0.0
    %v4380 = vand.u32 %v176, 4294901760
    %v4381 = vsub.f32 %v176, %v4380
    %v4382 = vand.u32 %v4381, 4294901760
    %4383 = vmatpush1.msra.mxu0 %v4382
    %4384 = vmatprep.subr.mxu0 0.0
    %v4385 = vand.u32 %v177, 4294901760
    %v4386 = vsub.f32 %v177, %v4385
    %v4387 = vand.u32 %v4386, 4294901760
    %4388 = vmatpush1.msra.mxu0 %v4387
    %4389 = vmatprep.subr.mxu0 0.0
    %v4390 = vand.u32 %v178, 4294901760
    %v4391 = vsub.f32 %v178, %v4390
    %v4392 = vand.u32 %v4391, 4294901760
    %4393 = vmatpush1.msra.mxu0 %v4392
    %4394 = vmatprep.subr.mxu0 0.0
    %v4395 = vand.u32 %v179, 4294901760
    %v4396 = vsub.f32 %v179, %v4395
    %v4397 = vand.u32 %v4396, 4294901760
    %4398 = vmatpush1.msra.mxu0 %v4397
    %4399 = vmatprep.subr.mxu0 0.0
    %v4400 = vand.u32 %v180, 4294901760
    %v4401 = vsub.f32 %v180, %v4400
    %v4402 = vand.u32 %v4401, 4294901760
    %4403 = vmatpush1.msra.mxu0 %v4402
    %4404 = vmatprep.subr.mxu0 0.0
    %v4405 = vand.u32 %v181, 4294901760
    %v4406 = vsub.f32 %v181, %v4405
    %v4407 = vand.u32 %v4406, 4294901760
    %4408 = vmatpush1.msra.mxu0 %v4407
    %4409 = vmatprep.subr.mxu0 0.0
    %v4410 = vand.u32 %v182, 4294901760
    %v4411 = vsub.f32 %v182, %v4410
    %v4412 = vand.u32 %v4411, 4294901760
    %4413 = vmatpush1.msra.mxu0 %v4412
    %4414 = vmatprep.subr.mxu0 0.0
    %v4415 = vand.u32 %v183, 4294901760
    %v4416 = vsub.f32 %v183, %v4415
    %v4417 = vand.u32 %v4416, 4294901760
    %4418 = vmatpush1.msra.mxu0 %v4417
    %4419 = vmatprep.subr.mxu0 0.0
    %v4420 = vand.u32 %v184, 4294901760
    %v4421 = vsub.f32 %v184, %v4420
    %v4422 = vand.u32 %v4421, 4294901760
    %4423 = vmatpush1.msra.mxu0 %v4422
    %4424 = vmatprep.subr.mxu0 0.0
    %v4425 = vand.u32 %v185, 4294901760
    %v4426 = vsub.f32 %v185, %v4425
    %v4427 = vand.u32 %v4426, 4294901760
    %4428 = vmatpush1.msra.mxu0 %v4427
    %4429 = vmatprep.subr.mxu0 0.0
    %v4430 = vand.u32 %v186, 4294901760
    %v4431 = vsub.f32 %v186, %v4430
    %v4432 = vand.u32 %v4431, 4294901760
    %4433 = vmatpush1.msra.mxu0 %v4432
    %4434 = vmatprep.subr.mxu0 0.0
    %v4435 = vand.u32 %v187, 4294901760
    %v4436 = vsub.f32 %v187, %v4435
    %v4437 = vand.u32 %v4436, 4294901760
    %4438 = vmatpush1.msra.mxu0 %v4437
    %4439 = vmatprep.subr.mxu0 0.0
    %v4440 = vand.u32 %v188, 4294901760
    %v4441 = vsub.f32 %v188, %v4440
    %v4442 = vand.u32 %v4441, 4294901760
    %4443 = vmatpush1.msra.mxu0 %v4442
    %4444 = vmatprep.subr.mxu0 0.0
    %v4445 = vand.u32 %v189, 4294901760
    %v4446 = vsub.f32 %v189, %v4445
    %v4447 = vand.u32 %v4446, 4294901760
    %4448 = vmatpush1.msra.mxu0 %v4447
    %4449 = vmatprep.subr.mxu0 0.0
    %v4450 = vand.u32 %v190, 4294901760
    %v4451 = vsub.f32 %v190, %v4450
    %v4452 = vand.u32 %v4451, 4294901760
    %4453 = vmatpush1.msra.mxu0 %v4452
    %4454 = vmatprep.subr.mxu0 0.0
    %v4455 = vand.u32 %v191, 4294901760
    %v4456 = vsub.f32 %v191, %v4455
    %v4457 = vand.u32 %v4456, 4294901760
    %4458 = vmatpush1.msra.mxu0 %v4457
    %4459 = vmatprep.subr.mxu0 0.0
    %v4460 = vand.u32 %v192, 4294901760
    %v4461 = vsub.f32 %v192, %v4460
    %v4462 = vand.u32 %v4461, 4294901760
    %4463 = vmatpush1.msra.mxu0 %v4462
    %4464 = vmatprep.subr.mxu0 0.0
    %v4465 = vand.u32 %v193, 4294901760
    %v4466 = vsub.f32 %v193, %v4465
    %v4467 = vand.u32 %v4466, 4294901760
    %4468 = vmatpush1.msra.mxu0 %v4467
    %4469 = vmatprep.subr.mxu0 0.0
    %v4470 = vand.u32 %v194, 4294901760
    %v4471 = vsub.f32 %v194, %v4470
    %v4472 = vand.u32 %v4471, 4294901760
    %4473 = vmatpush1.msra.mxu0 %v4472
    %4474 = vmatprep.subr.mxu0 0.0
    %v4475 = vand.u32 %v195, 4294901760
    %v4476 = vsub.f32 %v195, %v4475
    %v4477 = vand.u32 %v4476, 4294901760
    %4478 = vmatpush1.msra.mxu0 %v4477
    %4479 = vmatprep.subr.mxu0 0.0
    %v4480 = vand.u32 %v196, 4294901760
    %v4481 = vsub.f32 %v196, %v4480
    %v4482 = vand.u32 %v4481, 4294901760
    %4483 = vmatpush1.msra.mxu0 %v4482
    %4484 = vmatprep.subr.mxu0 0.0
    %v4485 = vand.u32 %v197, 4294901760
    %v4486 = vsub.f32 %v197, %v4485
    %v4487 = vand.u32 %v4486, 4294901760
    %4488 = vmatpush1.msra.mxu0 %v4487
    %4489 = vmatprep.subr.mxu0 0.0
    %v4490 = vand.u32 %v198, 4294901760
    %v4491 = vsub.f32 %v198, %v4490
    %v4492 = vand.u32 %v4491, 4294901760
    %4493 = vmatpush1.msra.mxu0 %v4492
    %4494 = vmatprep.subr.mxu0 0.0
    %v4495 = vand.u32 %v199, 4294901760
    %v4496 = vsub.f32 %v199, %v4495
    %v4497 = vand.u32 %v4496, 4294901760
    %4498 = vmatpush1.msra.mxu0 %v4497
    %4499 = vmatprep.subr.mxu0 0.0
    %v4500 = vand.u32 %v200, 4294901760
    %v4501 = vsub.f32 %v200, %v4500
    %v4502 = vand.u32 %v4501, 4294901760
    %4503 = vmatpush1.msra.mxu0 %v4502
    %4504 = vmatprep.subr.mxu0 0.0
    %v4505 = vand.u32 %v201, 4294901760
    %v4506 = vsub.f32 %v201, %v4505
    %v4507 = vand.u32 %v4506, 4294901760
    %4508 = vmatpush1.msra.mxu0 %v4507
    %4509 = vmatprep.subr.mxu0 0.0
    %v4510 = vand.u32 %v202, 4294901760
    %v4511 = vsub.f32 %v202, %v4510
    %v4512 = vand.u32 %v4511, 4294901760
    %4513 = vmatpush1.msra.mxu0 %v4512
    %4514 = vmatprep.subr.mxu0 0.0
    %v4515 = vand.u32 %v203, 4294901760
    %v4516 = vsub.f32 %v203, %v4515
    %v4517 = vand.u32 %v4516, 4294901760
    %4518 = vmatpush1.msra.mxu0 %v4517
    %v4519 = vand.u32 %v295, 4294901760
    %4520 = vmatprep.mubr.f32.mxu0 %v4519
    %v4521 = vand.u32 %v291, 4294901760
    %4522 = vmatmul.mubr.f32.gmra.mrb[0].mxu0 %v4521
    %v4523 = vpop.f32.mrb[0].mxu0
    %v4524 = vadd.f32 %v4356, %v4523
    %v4525 = vpop.f32.mrb[0].mxu0
    %4526 = vdwg.mxu0
    %4527 = vmatprep.subr.mxu0 0.0
    %v4528 = vand.u32 %v172, 4294901760
    %4529 = vmatpush1.msra.mxu0 %v4528
    %4530 = vmatprep.subr.mxu0 0.0
    %v4531 = vand.u32 %v173, 4294901760
    %4532 = vmatpush1.msra.mxu0 %v4531
    %4533 = vmatprep.subr.mxu0 0.0
    %v4534 = vand.u32 %v174, 4294901760
    %4535 = vmatpush1.msra.mxu0 %v4534
    %4536 = vmatprep.subr.mxu0 0.0
    %v4537 = vand.u32 %v175, 4294901760
    %4538 = vmatpush1.msra.mxu0 %v4537
    %4539 = vmatprep.subr.mxu0 0.0
    %v4540 = vand.u32 %v176, 4294901760
    %4541 = vmatpush1.msra.mxu0 %v4540
    %4542 = vmatprep.subr.mxu0 0.0
    %v4543 = vand.u32 %v177, 4294901760
    %4544 = vmatpush1.msra.mxu0 %v4543
    %4545 = vmatprep.subr.mxu0 0.0
    %v4546 = vand.u32 %v178, 4294901760
    %4547 = vmatpush1.msra.mxu0 %v4546
    %4548 = vmatprep.subr.mxu0 0.0
    %v4549 = vand.u32 %v179, 4294901760
    %4550 = vmatpush1.msra.mxu0 %v4549
    %4551 = vmatprep.subr.mxu0 0.0
    %v4552 = vand.u32 %v180, 4294901760
    %4553 = vmatpush1.msra.mxu0 %v4552
    %4554 = vmatprep.subr.mxu0 0.0
    %v4555 = vand.u32 %v181, 4294901760
    %4556 = vmatpush1.msra.mxu0 %v4555
    %4557 = vmatprep.subr.mxu0 0.0
    %v4558 = vand.u32 %v182, 4294901760
    %4559 = vmatpush1.msra.mxu0 %v4558
    %4560 = vmatprep.subr.mxu0 0.0
    %v4561 = vand.u32 %v183, 4294901760
    %4562 = vmatpush1.msra.mxu0 %v4561
    %4563 = vmatprep.subr.mxu0 0.0
    %v4564 = vand.u32 %v184, 4294901760
    %4565 = vmatpush1.msra.mxu0 %v4564
    %4566 = vmatprep.subr.mxu0 0.0
    %v4567 = vand.u32 %v185, 4294901760
    %4568 = vmatpush1.msra.mxu0 %v4567
    %4569 = vmatprep.subr.mxu0 0.0
    %v4570 = vand.u32 %v186, 4294901760
    %4571 = vmatpush1.msra.mxu0 %v4570
    %4572 = vmatprep.subr.mxu0 0.0
    %v4573 = vand.u32 %v187, 4294901760
    %4574 = vmatpush1.msra.mxu0 %v4573
    %4575 = vmatprep.subr.mxu0 0.0
    %v4576 = vand.u32 %v188, 4294901760
    %4577 = vmatpush1.msra.mxu0 %v4576
    %4578 = vmatprep.subr.mxu0 0.0
    %v4579 = vand.u32 %v189, 4294901760
    %4580 = vmatpush1.msra.mxu0 %v4579
    %4581 = vmatprep.subr.mxu0 0.0
    %v4582 = vand.u32 %v190, 4294901760
    %4583 = vmatpush1.msra.mxu0 %v4582
    %4584 = vmatprep.subr.mxu0 0.0
    %v4585 = vand.u32 %v191, 4294901760
    %4586 = vmatpush1.msra.mxu0 %v4585
    %4587 = vmatprep.subr.mxu0 0.0
    %v4588 = vand.u32 %v192, 4294901760
    %4589 = vmatpush1.msra.mxu0 %v4588
    %4590 = vmatprep.subr.mxu0 0.0
    %v4591 = vand.u32 %v193, 4294901760
    %4592 = vmatpush1.msra.mxu0 %v4591
    %4593 = vmatprep.subr.mxu0 0.0
    %v4594 = vand.u32 %v194, 4294901760
    %4595 = vmatpush1.msra.mxu0 %v4594
    %4596 = vmatprep.subr.mxu0 0.0
    %v4597 = vand.u32 %v195, 4294901760
    %4598 = vmatpush1.msra.mxu0 %v4597
    %4599 = vmatprep.subr.mxu0 0.0
    %v4600 = vand.u32 %v196, 4294901760
    %4601 = vmatpush1.msra.mxu0 %v4600
    %4602 = vmatprep.subr.mxu0 0.0
    %v4603 = vand.u32 %v197, 4294901760
    %4604 = vmatpush1.msra.mxu0 %v4603
    %4605 = vmatprep.subr.mxu0 0.0
    %v4606 = vand.u32 %v198, 4294901760
    %4607 = vmatpush1.msra.mxu0 %v4606
    %4608 = vmatprep.subr.mxu0 0.0
    %v4609 = vand.u32 %v199, 4294901760
    %4610 = vmatpush1.msra.mxu0 %v4609
    %4611 = vmatprep.subr.mxu0 0.0
    %v4612 = vand.u32 %v200, 4294901760
    %4613 = vmatpush1.msra.mxu0 %v4612
    %4614 = vmatprep.subr.mxu0 0.0
    %v4615 = vand.u32 %v201, 4294901760
    %4616 = vmatpush1.msra.mxu0 %v4615
    %4617 = vmatprep.subr.mxu0 0.0
    %v4618 = vand.u32 %v202, 4294901760
    %4619 = vmatpush1.msra.mxu0 %v4618
    %4620 = vmatprep.subr.mxu0 0.0
    %v4621 = vand.u32 %v203, 4294901760
    %4622 = vmatpush1.msra.mxu0 %v4621
    %v4623 = vand.u32 %v295, 4294901760
    %4624 = vmatprep.mubr.f32.mxu0 %v4623
    %v4625 = vand.u32 %v291, 4294901760
    %4626 = vmatmul.mubr.f32.gmra.mrb[0].mxu0 %v4625
    %v4627 = vpop.f32.mrb[0].mxu0
    %v4628 = vadd.f32 %v4524, %v4627
    %v4629 = vpop.f32.mrb[0].mxu0
    %4630 = vdwg.mxu0
    %4631 = vmatprep.subr.mxu0 0.0
    %v4632 = vand.u32 %v204, 4294901760
    %4633 = vmatpush1.msra.mxu0 %v4632
    %4634 = vmatprep.subr.mxu0 0.0
    %v4635 = vand.u32 %v205, 4294901760
    %4636 = vmatpush1.msra.mxu0 %v4635
    %4637 = vmatprep.subr.mxu0 0.0
    %v4638 = vand.u32 %v206, 4294901760
    %4639 = vmatpush1.msra.mxu0 %v4638
    %4640 = vmatprep.subr.mxu0 0.0
    %v4641 = vand.u32 %v207, 4294901760
    %4642 = vmatpush1.msra.mxu0 %v4641
    %4643 = vmatprep.subr.mxu0 0.0
    %v4644 = vand.u32 %v208, 4294901760
    %4645 = vmatpush1.msra.mxu0 %v4644
    %4646 = vmatprep.subr.mxu0 0.0
    %v4647 = vand.u32 %v209, 4294901760
    %4648 = vmatpush1.msra.mxu0 %v4647
    %4649 = vmatprep.subr.mxu0 0.0
    %v4650 = vand.u32 %v210, 4294901760
    %4651 = vmatpush1.msra.mxu0 %v4650
    %4652 = vmatprep.subr.mxu0 0.0
    %v4653 = vand.u32 %v211, 4294901760
    %4654 = vmatpush1.msra.mxu0 %v4653
    %4655 = vmatprep.subr.mxu0 0.0
    %v4656 = vand.u32 %v212, 4294901760
    %4657 = vmatpush1.msra.mxu0 %v4656
    %4658 = vmatprep.subr.mxu0 0.0
    %v4659 = vand.u32 %v213, 4294901760
    %4660 = vmatpush1.msra.mxu0 %v4659
    %4661 = vmatprep.subr.mxu0 0.0
    %v4662 = vand.u32 %v214, 4294901760
    %4663 = vmatpush1.msra.mxu0 %v4662
    %4664 = vmatprep.subr.mxu0 0.0
    %v4665 = vand.u32 %v215, 4294901760
    %4666 = vmatpush1.msra.mxu0 %v4665
    %4667 = vmatprep.subr.mxu0 0.0
    %v4668 = vand.u32 %v216, 4294901760
    %4669 = vmatpush1.msra.mxu0 %v4668
    %4670 = vmatprep.subr.mxu0 0.0
    %v4671 = vand.u32 %v217, 4294901760
    %4672 = vmatpush1.msra.mxu0 %v4671
    %4673 = vmatprep.subr.mxu0 0.0
    %v4674 = vand.u32 %v218, 4294901760
    %4675 = vmatpush1.msra.mxu0 %v4674
    %4676 = vmatprep.subr.mxu0 0.0
    %v4677 = vand.u32 %v219, 4294901760
    %4678 = vmatpush1.msra.mxu0 %v4677
    %4679 = vmatprep.subr.mxu0 0.0
    %v4680 = vand.u32 %v220, 4294901760
    %4681 = vmatpush1.msra.mxu0 %v4680
    %4682 = vmatprep.subr.mxu0 0.0
    %v4683 = vand.u32 %v221, 4294901760
    %4684 = vmatpush1.msra.mxu0 %v4683
    %4685 = vmatprep.subr.mxu0 0.0
    %v4686 = vand.u32 %v222, 4294901760
    %4687 = vmatpush1.msra.mxu0 %v4686
    %4688 = vmatprep.subr.mxu0 0.0
    %v4689 = vand.u32 %v223, 4294901760
    %4690 = vmatpush1.msra.mxu0 %v4689
    %4691 = vmatprep.subr.mxu0 0.0
    %v4692 = vand.u32 %v224, 4294901760
    %4693 = vmatpush1.msra.mxu0 %v4692
    %4694 = vmatprep.subr.mxu0 0.0
    %v4695 = vand.u32 %v225, 4294901760
    %4696 = vmatpush1.msra.mxu0 %v4695
    %4697 = vmatprep.subr.mxu0 0.0
    %v4698 = vand.u32 %v226, 4294901760
    %4699 = vmatpush1.msra.mxu0 %v4698
    %4700 = vmatprep.subr.mxu0 0.0
    %v4701 = vand.u32 %v227, 4294901760
    %4702 = vmatpush1.msra.mxu0 %v4701
    %4703 = vmatprep.subr.mxu0 0.0
    %v4704 = vand.u32 %v228, 4294901760
    %4705 = vmatpush1.msra.mxu0 %v4704
    %4706 = vmatprep.subr.mxu0 0.0
    %v4707 = vand.u32 %v229, 4294901760
    %4708 = vmatpush1.msra.mxu0 %v4707
    %4709 = vmatprep.subr.mxu0 0.0
    %v4710 = vand.u32 %v230, 4294901760
    %4711 = vmatpush1.msra.mxu0 %v4710
    %4712 = vmatprep.subr.mxu0 0.0
    %v4713 = vand.u32 %v231, 4294901760
    %4714 = vmatpush1.msra.mxu0 %v4713
    %4715 = vmatprep.subr.mxu0 0.0
    %v4716 = vand.u32 %v232, 4294901760
    %4717 = vmatpush1.msra.mxu0 %v4716
    %4718 = vmatprep.subr.mxu0 0.0
    %v4719 = vand.u32 %v233, 4294901760
    %4720 = vmatpush1.msra.mxu0 %v4719
    %4721 = vmatprep.subr.mxu0 0.0
    %v4722 = vand.u32 %v234, 4294901760
    %4723 = vmatpush1.msra.mxu0 %v4722
    %4724 = vmatprep.subr.mxu0 0.0
    %v4725 = vand.u32 %v235, 4294901760
    %4726 = vmatpush1.msra.mxu0 %v4725
    %v4727 = vand.u32 %v303, 4294901760
    %v4728 = vsub.f32 %v303, %v4727
    %v4729 = vand.u32 %v4728, 4294901760
    %v4730 = vsub.f32 %v4728, %v4729
    %v4731 = vand.u32 %v4730, 4294901760
    %4732 = vmatprep.mubr.f32.mxu0 %v4731
    %v4733 = vand.u32 %v299, 4294901760
    %v4734 = vsub.f32 %v299, %v4733
    %v4735 = vand.u32 %v4734, 4294901760
    %v4736 = vsub.f32 %v4734, %v4735
    %v4737 = vand.u32 %v4736, 4294901760
    %4738 = vmatmul.mubr.f32.gmra.mrb[0].mxu0 %v4737
    %v4739 = vpop.f32.mrb[0].mxu0
    %v4740 = vadd.f32 %v4628, %v4739
    %v4741 = vpop.f32.mrb[0].mxu0
    %4742 = vdwg.mxu0
    %4743 = vmatprep.subr.mxu0 0.0
    %v4744 = vand.u32 %v204, 4294901760
    %v4745 = vsub.f32 %v204, %v4744
    %v4746 = vand.u32 %v4745, 4294901760
    %v4747 = vsub.f32 %v4745, %v4746
    %v4748 = vand.u32 %v4747, 4294901760
    %4749 = vmatpush1.msra.mxu0 %v4748
    %4750 = vmatprep.subr.mxu0 0.0
    %v4751 = vand.u32 %v205, 4294901760
    %v4752 = vsub.f32 %v205, %v4751
    %v4753 = vand.u32 %v4752, 4294901760
    %v4754 = vsub.f32 %v4752, %v4753
    %v4755 = vand.u32 %v4754, 4294901760
    %4756 = vmatpush1.msra.mxu0 %v4755
    %4757 = vmatprep.subr.mxu0 0.0
    %v4758 = vand.u32 %v206, 4294901760
    %v4759 = vsub.f32 %v206, %v4758
    %v4760 = vand.u32 %v4759, 4294901760
    %v4761 = vsub.f32 %v4759, %v4760
    %v4762 = vand.u32 %v4761, 4294901760
    %4763 = vmatpush1.msra.mxu0 %v4762
    %4764 = vmatprep.subr.mxu0 0.0
    %v4765 = vand.u32 %v207, 4294901760
    %v4766 = vsub.f32 %v207, %v4765
    %v4767 = vand.u32 %v4766, 4294901760
    %v4768 = vsub.f32 %v4766, %v4767
    %v4769 = vand.u32 %v4768, 4294901760
    %4770 = vmatpush1.msra.mxu0 %v4769
    %4771 = vmatprep.subr.mxu0 0.0
    %v4772 = vand.u32 %v208, 4294901760
    %v4773 = vsub.f32 %v208, %v4772
    %v4774 = vand.u32 %v4773, 4294901760
    %v4775 = vsub.f32 %v4773, %v4774
    %v4776 = vand.u32 %v4775, 4294901760
    %4777 = vmatpush1.msra.mxu0 %v4776
    %4778 = vmatprep.subr.mxu0 0.0
    %v4779 = vand.u32 %v209, 4294901760
    %v4780 = vsub.f32 %v209, %v4779
    %v4781 = vand.u32 %v4780, 4294901760
    %v4782 = vsub.f32 %v4780, %v4781
    %v4783 = vand.u32 %v4782, 4294901760
    %4784 = vmatpush1.msra.mxu0 %v4783
    %4785 = vmatprep.subr.mxu0 0.0
    %v4786 = vand.u32 %v210, 4294901760
    %v4787 = vsub.f32 %v210, %v4786
    %v4788 = vand.u32 %v4787, 4294901760
    %v4789 = vsub.f32 %v4787, %v4788
    %v4790 = vand.u32 %v4789, 4294901760
    %4791 = vmatpush1.msra.mxu0 %v4790
    %4792 = vmatprep.subr.mxu0 0.0
    %v4793 = vand.u32 %v211, 4294901760
    %v4794 = vsub.f32 %v211, %v4793
    %v4795 = vand.u32 %v4794, 4294901760
    %v4796 = vsub.f32 %v4794, %v4795
    %v4797 = vand.u32 %v4796, 4294901760
    %4798 = vmatpush1.msra.mxu0 %v4797
    %4799 = vmatprep.subr.mxu0 0.0
    %v4800 = vand.u32 %v212, 4294901760
    %v4801 = vsub.f32 %v212, %v4800
    %v4802 = vand.u32 %v4801, 4294901760
    %v4803 = vsub.f32 %v4801, %v4802
    %v4804 = vand.u32 %v4803, 4294901760
    %4805 = vmatpush1.msra.mxu0 %v4804
    %4806 = vmatprep.subr.mxu0 0.0
    %v4807 = vand.u32 %v213, 4294901760
    %v4808 = vsub.f32 %v213, %v4807
    %v4809 = vand.u32 %v4808, 4294901760
    %v4810 = vsub.f32 %v4808, %v4809
    %v4811 = vand.u32 %v4810, 4294901760
    %4812 = vmatpush1.msra.mxu0 %v4811
    %4813 = vmatprep.subr.mxu0 0.0
    %v4814 = vand.u32 %v214, 4294901760
    %v4815 = vsub.f32 %v214, %v4814
    %v4816 = vand.u32 %v4815, 4294901760
    %v4817 = vsub.f32 %v4815, %v4816
    %v4818 = vand.u32 %v4817, 4294901760
    %4819 = vmatpush1.msra.mxu0 %v4818
    %4820 = vmatprep.subr.mxu0 0.0
    %v4821 = vand.u32 %v215, 4294901760
    %v4822 = vsub.f32 %v215, %v4821
    %v4823 = vand.u32 %v4822, 4294901760
    %v4824 = vsub.f32 %v4822, %v4823
    %v4825 = vand.u32 %v4824, 4294901760
    %4826 = vmatpush1.msra.mxu0 %v4825
    %4827 = vmatprep.subr.mxu0 0.0
    %v4828 = vand.u32 %v216, 4294901760
    %v4829 = vsub.f32 %v216, %v4828
    %v4830 = vand.u32 %v4829, 4294901760
    %v4831 = vsub.f32 %v4829, %v4830
    %v4832 = vand.u32 %v4831, 4294901760
    %4833 = vmatpush1.msra.mxu0 %v4832
    %4834 = vmatprep.subr.mxu0 0.0
    %v4835 = vand.u32 %v217, 4294901760
    %v4836 = vsub.f32 %v217, %v4835
    %v4837 = vand.u32 %v4836, 4294901760
    %v4838 = vsub.f32 %v4836, %v4837
    %v4839 = vand.u32 %v4838, 4294901760
    %4840 = vmatpush1.msra.mxu0 %v4839
    %4841 = vmatprep.subr.mxu0 0.0
    %v4842 = vand.u32 %v218, 4294901760
    %v4843 = vsub.f32 %v218, %v4842
    %v4844 = vand.u32 %v4843, 4294901760
    %v4845 = vsub.f32 %v4843, %v4844
    %v4846 = vand.u32 %v4845, 4294901760
    %4847 = vmatpush1.msra.mxu0 %v4846
    %4848 = vmatprep.subr.mxu0 0.0
    %v4849 = vand.u32 %v219, 4294901760
    %v4850 = vsub.f32 %v219, %v4849
    %v4851 = vand.u32 %v4850, 4294901760
    %v4852 = vsub.f32 %v4850, %v4851
    %v4853 = vand.u32 %v4852, 4294901760
    %4854 = vmatpush1.msra.mxu0 %v4853
    %4855 = vmatprep.subr.mxu0 0.0
    %v4856 = vand.u32 %v220, 4294901760
    %v4857 = vsub.f32 %v220, %v4856
    %v4858 = vand.u32 %v4857, 4294901760
    %v4859 = vsub.f32 %v4857, %v4858
    %v4860 = vand.u32 %v4859, 4294901760
    %4861 = vmatpush1.msra.mxu0 %v4860
    %4862 = vmatprep.subr.mxu0 0.0
    %v4863 = vand.u32 %v221, 4294901760
    %v4864 = vsub.f32 %v221, %v4863
    %v4865 = vand.u32 %v4864, 4294901760
    %v4866 = vsub.f32 %v4864, %v4865
    %v4867 = vand.u32 %v4866, 4294901760
    %4868 = vmatpush1.msra.mxu0 %v4867
    %4869 = vmatprep.subr.mxu0 0.0
    %v4870 = vand.u32 %v222, 4294901760
    %v4871 = vsub.f32 %v222, %v4870
    %v4872 = vand.u32 %v4871, 4294901760
    %v4873 = vsub.f32 %v4871, %v4872
    %v4874 = vand.u32 %v4873, 4294901760
    %4875 = vmatpush1.msra.mxu0 %v4874
    %4876 = vmatprep.subr.mxu0 0.0
    %v4877 = vand.u32 %v223, 4294901760
    %v4878 = vsub.f32 %v223, %v4877
    %v4879 = vand.u32 %v4878, 4294901760
    %v4880 = vsub.f32 %v4878, %v4879
    %v4881 = vand.u32 %v4880, 4294901760
    %4882 = vmatpush1.msra.mxu0 %v4881
    %4883 = vmatprep.subr.mxu0 0.0
    %v4884 = vand.u32 %v224, 4294901760
    %v4885 = vsub.f32 %v224, %v4884
    %v4886 = vand.u32 %v4885, 4294901760
    %v4887 = vsub.f32 %v4885, %v4886
    %v4888 = vand.u32 %v4887, 4294901760
    %4889 = vmatpush1.msra.mxu0 %v4888
    %4890 = vmatprep.subr.mxu0 0.0
    %v4891 = vand.u32 %v225, 4294901760
    %v4892 = vsub.f32 %v225, %v4891
    %v4893 = vand.u32 %v4892, 4294901760
    %v4894 = vsub.f32 %v4892, %v4893
    %v4895 = vand.u32 %v4894, 4294901760
    %4896 = vmatpush1.msra.mxu0 %v4895
    %4897 = vmatprep.subr.mxu0 0.0
    %v4898 = vand.u32 %v226, 4294901760
    %v4899 = vsub.f32 %v226, %v4898
    %v4900 = vand.u32 %v4899, 4294901760
    %v4901 = vsub.f32 %v4899, %v4900
    %v4902 = vand.u32 %v4901, 4294901760
    %4903 = vmatpush1.msra.mxu0 %v4902
    %4904 = vmatprep.subr.mxu0 0.0
    %v4905 = vand.u32 %v227, 4294901760
    %v4906 = vsub.f32 %v227, %v4905
    %v4907 = vand.u32 %v4906, 4294901760
    %v4908 = vsub.f32 %v4906, %v4907
    %v4909 = vand.u32 %v4908, 4294901760
    %4910 = vmatpush1.msra.mxu0 %v4909
    %4911 = vmatprep.subr.mxu0 0.0
    %v4912 = vand.u32 %v228, 4294901760
    %v4913 = vsub.f32 %v228, %v4912
    %v4914 = vand.u32 %v4913, 4294901760
    %v4915 = vsub.f32 %v4913, %v4914
    %v4916 = vand.u32 %v4915, 4294901760
    %4917 = vmatpush1.msra.mxu0 %v4916
    %4918 = vmatprep.subr.mxu0 0.0
    %v4919 = vand.u32 %v229, 4294901760
    %v4920 = vsub.f32 %v229, %v4919
    %v4921 = vand.u32 %v4920, 4294901760
    %v4922 = vsub.f32 %v4920, %v4921
    %v4923 = vand.u32 %v4922, 4294901760
    %4924 = vmatpush1.msra.mxu0 %v4923
    %4925 = vmatprep.subr.mxu0 0.0
    %v4926 = vand.u32 %v230, 4294901760
    %v4927 = vsub.f32 %v230, %v4926
    %v4928 = vand.u32 %v4927, 4294901760
    %v4929 = vsub.f32 %v4927, %v4928
    %v4930 = vand.u32 %v4929, 4294901760
    %4931 = vmatpush1.msra.mxu0 %v4930
    %4932 = vmatprep.subr.mxu0 0.0
    %v4933 = vand.u32 %v231, 4294901760
    %v4934 = vsub.f32 %v231, %v4933
    %v4935 = vand.u32 %v4934, 4294901760
    %v4936 = vsub.f32 %v4934, %v4935
    %v4937 = vand.u32 %v4936, 4294901760
    %4938 = vmatpush1.msra.mxu0 %v4937
    %4939 = vmatprep.subr.mxu0 0.0
    %v4940 = vand.u32 %v232, 4294901760
    %v4941 = vsub.f32 %v232, %v4940
    %v4942 = vand.u32 %v4941, 4294901760
    %v4943 = vsub.f32 %v4941, %v4942
    %v4944 = vand.u32 %v4943, 4294901760
    %4945 = vmatpush1.msra.mxu0 %v4944
    %4946 = vmatprep.subr.mxu0 0.0
    %v4947 = vand.u32 %v233, 4294901760
    %v4948 = vsub.f32 %v233, %v4947
    %v4949 = vand.u32 %v4948, 4294901760
    %v4950 = vsub.f32 %v4948, %v4949
    %v4951 = vand.u32 %v4950, 4294901760
    %4952 = vmatpush1.msra.mxu0 %v4951
    %4953 = vmatprep.subr.mxu0 0.0
    %v4954 = vand.u32 %v234, 4294901760
    %v4955 = vsub.f32 %v234, %v4954
    %v4956 = vand.u32 %v4955, 4294901760
    %v4957 = vsub.f32 %v4955, %v4956
    %v4958 = vand.u32 %v4957, 4294901760
    %4959 = vmatpush1.msra.mxu0 %v4958
    %4960 = vmatprep.subr.mxu0 0.0
    %v4961 = vand.u32 %v235, 4294901760
    %v4962 = vsub.f32 %v235, %v4961
    %v4963 = vand.u32 %v4962, 4294901760
    %v4964 = vsub.f32 %v4962, %v4963
    %v4965 = vand.u32 %v4964, 4294901760
    %4966 = vmatpush1.msra.mxu0 %v4965
    %v4967 = vand.u32 %v303, 4294901760
    %4968 = vmatprep.mubr.f32.mxu0 %v4967
    %v4969 = vand.u32 %v299, 4294901760
    %4970 = vmatmul.mubr.f32.gmra.mrb[0].mxu0 %v4969
    %v4971 = vpop.f32.mrb[0].mxu0
    %v4972 = vadd.f32 %v4740, %v4971
    %v4973 = vpop.f32.mrb[0].mxu0
    %4974 = vdwg.mxu0
    %4975 = vmatprep.subr.mxu0 0.0
    %v4976 = vand.u32 %v204, 4294901760
    %v4977 = vsub.f32 %v204, %v4976
    %4978 = vmatpush1.msra.mxu0 %v4977
    %4979 = vmatprep.subr.mxu0 0.0
    %v4980 = vand.u32 %v205, 4294901760
    %v4981 = vsub.f32 %v205, %v4980
    %4982 = vmatpush1.msra.mxu0 %v4981
    %4983 = vmatprep.subr.mxu0 0.0
    %v4984 = vand.u32 %v206, 4294901760
    %v4985 = vsub.f32 %v206, %v4984
    %4986 = vmatpush1.msra.mxu0 %v4985
    %4987 = vmatprep.subr.mxu0 0.0
    %v4988 = vand.u32 %v207, 4294901760
    %v4989 = vsub.f32 %v207, %v4988
    %4990 = vmatpush1.msra.mxu0 %v4989
    %4991 = vmatprep.subr.mxu0 0.0
    %v4992 = vand.u32 %v208, 4294901760
    %v4993 = vsub.f32 %v208, %v4992
    %4994 = vmatpush1.msra.mxu0 %v4993
    %4995 = vmatprep.subr.mxu0 0.0
    %v4996 = vand.u32 %v209, 4294901760
    %v4997 = vsub.f32 %v209, %v4996
    %4998 = vmatpush1.msra.mxu0 %v4997
    %4999 = vmatprep.subr.mxu0 0.0
    %v5000 = vand.u32 %v210, 4294901760
    %v5001 = vsub.f32 %v210, %v5000
    %5002 = vmatpush1.msra.mxu0 %v5001
    %5003 = vmatprep.subr.mxu0 0.0
    %v5004 = vand.u32 %v211, 4294901760
    %v5005 = vsub.f32 %v211, %v5004
    %5006 = vmatpush1.msra.mxu0 %v5005
    %5007 = vmatprep.subr.mxu0 0.0
    %v5008 = vand.u32 %v212, 4294901760
    %v5009 = vsub.f32 %v212, %v5008
    %5010 = vmatpush1.msra.mxu0 %v5009
    %5011 = vmatprep.subr.mxu0 0.0
    %v5012 = vand.u32 %v213, 4294901760
    %v5013 = vsub.f32 %v213, %v5012
    %5014 = vmatpush1.msra.mxu0 %v5013
    %5015 = vmatprep.subr.mxu0 0.0
    %v5016 = vand.u32 %v214, 4294901760
    %v5017 = vsub.f32 %v214, %v5016
    %5018 = vmatpush1.msra.mxu0 %v5017
    %5019 = vmatprep.subr.mxu0 0.0
    %v5020 = vand.u32 %v215, 4294901760
    %v5021 = vsub.f32 %v215, %v5020
    %5022 = vmatpush1.msra.mxu0 %v5021
    %5023 = vmatprep.subr.mxu0 0.0
    %v5024 = vand.u32 %v216, 4294901760
    %v5025 = vsub.f32 %v216, %v5024
    %5026 = vmatpush1.msra.mxu0 %v5025
    %5027 = vmatprep.subr.mxu0 0.0
    %v5028 = vand.u32 %v217, 4294901760
    %v5029 = vsub.f32 %v217, %v5028
    %5030 = vmatpush1.msra.mxu0 %v5029
    %5031 = vmatprep.subr.mxu0 0.0
    %v5032 = vand.u32 %v218, 4294901760
    %v5033 = vsub.f32 %v218, %v5032
    %5034 = vmatpush1.msra.mxu0 %v5033
    %5035 = vmatprep.subr.mxu0 0.0
    %v5036 = vand.u32 %v219, 4294901760
    %v5037 = vsub.f32 %v219, %v5036
    %5038 = vmatpush1.msra.mxu0 %v5037
    %5039 = vmatprep.subr.mxu0 0.0
    %v5040 = vand.u32 %v220, 4294901760
    %v5041 = vsub.f32 %v220, %v5040
    %5042 = vmatpush1.msra.mxu0 %v5041
    %5043 = vmatprep.subr.mxu0 0.0
    %v5044 = vand.u32 %v221, 4294901760
    %v5045 = vsub.f32 %v221, %v5044
    %5046 = vmatpush1.msra.mxu0 %v5045
    %5047 = vmatprep.subr.mxu0 0.0
    %v5048 = vand.u32 %v222, 4294901760
    %v5049 = vsub.f32 %v222, %v5048
    %5050 = vmatpush1.msra.mxu0 %v5049
    %5051 = vmatprep.subr.mxu0 0.0
    %v5052 = vand.u32 %v223, 4294901760
    %v5053 = vsub.f32 %v223, %v5052
    %5054 = vmatpush1.msra.mxu0 %v5053
    %5055 = vmatprep.subr.mxu0 0.0
    %v5056 = vand.u32 %v224, 4294901760
    %v5057 = vsub.f32 %v224, %v5056
    %5058 = vmatpush1.msra.mxu0 %v5057
    %5059 = vmatprep.subr.mxu0 0.0
    %v5060 = vand.u32 %v225, 4294901760
    %v5061 = vsub.f32 %v225, %v5060
    %5062 = vmatpush1.msra.mxu0 %v5061
    %5063 = vmatprep.subr.mxu0 0.0
    %v5064 = vand.u32 %v226, 4294901760
    %v5065 = vsub.f32 %v226, %v5064
    %5066 = vmatpush1.msra.mxu0 %v5065
    %5067 = vmatprep.subr.mxu0 0.0
    %v5068 = vand.u32 %v227, 4294901760
    %v5069 = vsub.f32 %v227, %v5068
    %5070 = vmatpush1.msra.mxu0 %v5069
    %5071 = vmatprep.subr.mxu0 0.0
    %v5072 = vand.u32 %v228, 4294901760
    %v5073 = vsub.f32 %v228, %v5072
    %5074 = vmatpush1.msra.mxu0 %v5073
    %5075 = vmatprep.subr.mxu0 0.0
    %v5076 = vand.u32 %v229, 4294901760
    %v5077 = vsub.f32 %v229, %v5076
    %5078 = vmatpush1.msra.mxu0 %v5077
    %5079 = vmatprep.subr.mxu0 0.0
    %v5080 = vand.u32 %v230, 4294901760
    %v5081 = vsub.f32 %v230, %v5080
    %5082 = vmatpush1.msra.mxu0 %v5081
    %5083 = vmatprep.subr.mxu0 0.0
    %v5084 = vand.u32 %v231, 4294901760
    %v5085 = vsub.f32 %v231, %v5084
    %5086 = vmatpush1.msra.mxu0 %v5085
    %5087 = vmatprep.subr.mxu0 0.0
    %v5088 = vand.u32 %v232, 4294901760
    %v5089 = vsub.f32 %v232, %v5088
    %5090 = vmatpush1.msra.mxu0 %v5089
    %5091 = vmatprep.subr.mxu0 0.0
    %v5092 = vand.u32 %v233, 4294901760
    %v5093 = vsub.f32 %v233, %v5092
    %5094 = vmatpush1.msra.mxu0 %v5093
    %5095 = vmatprep.subr.mxu0 0.0
    %v5096 = vand.u32 %v234, 4294901760
    %v5097 = vsub.f32 %v234, %v5096
    %5098 = vmatpush1.msra.mxu0 %v5097
    %5099 = vmatprep.subr.mxu0 0.0
    %v5100 = vand.u32 %v235, 4294901760
    %v5101 = vsub.f32 %v235, %v5100
    %5102 = vmatpush1.msra.mxu0 %v5101
    %v5103 = vand.u32 %v303, 4294901760
    %v5104 = vsub.f32 %v303, %v5103
    %5105 = vmatprep.mubr.f32.mxu0 %v5104
    %v5106 = vand.u32 %v299, 4294901760
    %v5107 = vsub.f32 %v299, %v5106
    %5108 = vmatmul.mubr.f32.gmra.mrb[0].mxu0 %v5107
    %v5109 = vpop.f32.mrb[0].mxu0
    %v5110 = vadd.f32 %v4972, %v5109
    %v5111 = vpop.f32.mrb[0].mxu0
    %5112 = vdwg.mxu0
    %5113 = vmatprep.subr.mxu0 0.0
    %v5114 = vand.u32 %v204, 4294901760
    %5115 = vmatpush1.msra.mxu0 %v5114
    %5116 = vmatprep.subr.mxu0 0.0
    %v5117 = vand.u32 %v205, 4294901760
    %5118 = vmatpush1.msra.mxu0 %v5117
    %5119 = vmatprep.subr.mxu0 0.0
    %v5120 = vand.u32 %v206, 4294901760
    %5121 = vmatpush1.msra.mxu0 %v5120
    %5122 = vmatprep.subr.mxu0 0.0
    %v5123 = vand.u32 %v207, 4294901760
    %5124 = vmatpush1.msra.mxu0 %v5123
    %5125 = vmatprep.subr.mxu0 0.0
    %v5126 = vand.u32 %v208, 4294901760
    %5127 = vmatpush1.msra.mxu0 %v5126
    %5128 = vmatprep.subr.mxu0 0.0
    %v5129 = vand.u32 %v209, 4294901760
    %5130 = vmatpush1.msra.mxu0 %v5129
    %5131 = vmatprep.subr.mxu0 0.0
    %v5132 = vand.u32 %v210, 4294901760
    %5133 = vmatpush1.msra.mxu0 %v5132
    %5134 = vmatprep.subr.mxu0 0.0
    %v5135 = vand.u32 %v211, 4294901760
    %5136 = vmatpush1.msra.mxu0 %v5135
    %5137 = vmatprep.subr.mxu0 0.0
    %v5138 = vand.u32 %v212, 4294901760
    %5139 = vmatpush1.msra.mxu0 %v5138
    %5140 = vmatprep.subr.mxu0 0.0
    %v5141 = vand.u32 %v213, 4294901760
    %5142 = vmatpush1.msra.mxu0 %v5141
    %5143 = vmatprep.subr.mxu0 0.0
    %v5144 = vand.u32 %v214, 4294901760
    %5145 = vmatpush1.msra.mxu0 %v5144
    %5146 = vmatprep.subr.mxu0 0.0
    %v5147 = vand.u32 %v215, 4294901760
    %5148 = vmatpush1.msra.mxu0 %v5147
    %5149 = vmatprep.subr.mxu0 0.0
    %v5150 = vand.u32 %v216, 4294901760
    %5151 = vmatpush1.msra.mxu0 %v5150
    %5152 = vmatprep.subr.mxu0 0.0
    %v5153 = vand.u32 %v217, 4294901760
    %5154 = vmatpush1.msra.mxu0 %v5153
    %5155 = vmatprep.subr.mxu0 0.0
    %v5156 = vand.u32 %v218, 4294901760
    %5157 = vmatpush1.msra.mxu0 %v5156
    %5158 = vmatprep.subr.mxu0 0.0
    %v5159 = vand.u32 %v219, 4294901760
    %5160 = vmatpush1.msra.mxu0 %v5159
    %5161 = vmatprep.subr.mxu0 0.0
    %v5162 = vand.u32 %v220, 4294901760
    %5163 = vmatpush1.msra.mxu0 %v5162
    %5164 = vmatprep.subr.mxu0 0.0
    %v5165 = vand.u32 %v221, 4294901760
    %5166 = vmatpush1.msra.mxu0 %v5165
    %5167 = vmatprep.subr.mxu0 0.0
    %v5168 = vand.u32 %v222, 4294901760
    %5169 = vmatpush1.msra.mxu0 %v5168
    %5170 = vmatprep.subr.mxu0 0.0
    %v5171 = vand.u32 %v223, 4294901760
    %5172 = vmatpush1.msra.mxu0 %v5171
    %5173 = vmatprep.subr.mxu0 0.0
    %v5174 = vand.u32 %v224, 4294901760
    %5175 = vmatpush1.msra.mxu0 %v5174
    %5176 = vmatprep.subr.mxu0 0.0
    %v5177 = vand.u32 %v225, 4294901760
    %5178 = vmatpush1.msra.mxu0 %v5177
    %5179 = vmatprep.subr.mxu0 0.0
    %v5180 = vand.u32 %v226, 4294901760
    %5181 = vmatpush1.msra.mxu0 %v5180
    %5182 = vmatprep.subr.mxu0 0.0
    %v5183 = vand.u32 %v227, 4294901760
    %5184 = vmatpush1.msra.mxu0 %v5183
    %5185 = vmatprep.subr.mxu0 0.0
    %v5186 = vand.u32 %v228, 4294901760
    %5187 = vmatpush1.msra.mxu0 %v5186
    %5188 = vmatprep.subr.mxu0 0.0
    %v5189 = vand.u32 %v229, 4294901760
    %5190 = vmatpush1.msra.mxu0 %v5189
    %5191 = vmatprep.subr.mxu0 0.0
    %v5192 = vand.u32 %v230, 4294901760
    %5193 = vmatpush1.msra.mxu0 %v5192
    %5194 = vmatprep.subr.mxu0 0.0
    %v5195 = vand.u32 %v231, 4294901760
    %5196 = vmatpush1.msra.mxu0 %v5195
    %5197 = vmatprep.subr.mxu0 0.0
    %v5198 = vand.u32 %v232, 4294901760
    %5199 = vmatpush1.msra.mxu0 %v5198
    %5200 = vmatprep.subr.mxu0 0.0
    %v5201 = vand.u32 %v233, 4294901760
    %5202 = vmatpush1.msra.mxu0 %v5201
    %5203 = vmatprep.subr.mxu0 0.0
    %v5204 = vand.u32 %v234, 4294901760
    %5205 = vmatpush1.msra.mxu0 %v5204
    %5206 = vmatprep.subr.mxu0 0.0
    %v5207 = vand.u32 %v235, 4294901760
    %5208 = vmatpush1.msra.mxu0 %v5207
    %v5209 = vand.u32 %v303, 4294901760
    %v5210 = vsub.f32 %v303, %v5209
    %v5211 = vand.u32 %v5210, 4294901760
    %5212 = vmatprep.mubr.f32.mxu0 %v5211
    %v5213 = vand.u32 %v299, 4294901760
    %v5214 = vsub.f32 %v299, %v5213
    %v5215 = vand.u32 %v5214, 4294901760
    %5216 = vmatmul.mubr.f32.gmra.mrb[0].mxu0 %v5215
    %v5217 = vpop.f32.mrb[0].mxu0
    %v5218 = vadd.f32 %v5110, %v5217
    %v5219 = vpop.f32.mrb[0].mxu0
    %5220 = vdwg.mxu0
    %5221 = vmatprep.subr.mxu0 0.0
    %v5222 = vand.u32 %v204, 4294901760
    %v5223 = vsub.f32 %v204, %v5222
    %v5224 = vand.u32 %v5223, 4294901760
    %5225 = vmatpush1.msra.mxu0 %v5224
    %5226 = vmatprep.subr.mxu0 0.0
    %v5227 = vand.u32 %v205, 4294901760
    %v5228 = vsub.f32 %v205, %v5227
    %v5229 = vand.u32 %v5228, 4294901760
    %5230 = vmatpush1.msra.mxu0 %v5229
    %5231 = vmatprep.subr.mxu0 0.0
    %v5232 = vand.u32 %v206, 4294901760
    %v5233 = vsub.f32 %v206, %v5232
    %v5234 = vand.u32 %v5233, 4294901760
    %5235 = vmatpush1.msra.mxu0 %v5234
    %5236 = vmatprep.subr.mxu0 0.0
    %v5237 = vand.u32 %v207, 4294901760
    %v5238 = vsub.f32 %v207, %v5237
    %v5239 = vand.u32 %v5238, 4294901760
    %5240 = vmatpush1.msra.mxu0 %v5239
    %5241 = vmatprep.subr.mxu0 0.0
    %v5242 = vand.u32 %v208, 4294901760
    %v5243 = vsub.f32 %v208, %v5242
    %v5244 = vand.u32 %v5243, 4294901760
    %5245 = vmatpush1.msra.mxu0 %v5244
    %5246 = vmatprep.subr.mxu0 0.0
    %v5247 = vand.u32 %v209, 4294901760
    %v5248 = vsub.f32 %v209, %v5247
    %v5249 = vand.u32 %v5248, 4294901760
    %5250 = vmatpush1.msra.mxu0 %v5249
    %5251 = vmatprep.subr.mxu0 0.0
    %v5252 = vand.u32 %v210, 4294901760
    %v5253 = vsub.f32 %v210, %v5252
    %v5254 = vand.u32 %v5253, 4294901760
    %5255 = vmatpush1.msra.mxu0 %v5254
    %5256 = vmatprep.subr.mxu0 0.0
    %v5257 = vand.u32 %v211, 4294901760
    %v5258 = vsub.f32 %v211, %v5257
    %v5259 = vand.u32 %v5258, 4294901760
    %5260 = vmatpush1.msra.mxu0 %v5259
    %5261 = vmatprep.subr.mxu0 0.0
    %v5262 = vand.u32 %v212, 4294901760
    %v5263 = vsub.f32 %v212, %v5262
    %v5264 = vand.u32 %v5263, 4294901760
    %5265 = vmatpush1.msra.mxu0 %v5264
    %5266 = vmatprep.subr.mxu0 0.0
    %v5267 = vand.u32 %v213, 4294901760
    %v5268 = vsub.f32 %v213, %v5267
    %v5269 = vand.u32 %v5268, 4294901760
    %5270 = vmatpush1.msra.mxu0 %v5269
    %5271 = vmatprep.subr.mxu0 0.0
    %v5272 = vand.u32 %v214, 4294901760
    %v5273 = vsub.f32 %v214, %v5272
    %v5274 = vand.u32 %v5273, 4294901760
    %5275 = vmatpush1.msra.mxu0 %v5274
    %5276 = vmatprep.subr.mxu0 0.0
    %v5277 = vand.u32 %v215, 4294901760
    %v5278 = vsub.f32 %v215, %v5277
    %v5279 = vand.u32 %v5278, 4294901760
    %5280 = vmatpush1.msra.mxu0 %v5279
    %5281 = vmatprep.subr.mxu0 0.0
    %v5282 = vand.u32 %v216, 4294901760
    %v5283 = vsub.f32 %v216, %v5282
    %v5284 = vand.u32 %v5283, 4294901760
    %5285 = vmatpush1.msra.mxu0 %v5284
    %5286 = vmatprep.subr.mxu0 0.0
    %v5287 = vand.u32 %v217, 4294901760
    %v5288 = vsub.f32 %v217, %v5287
    %v5289 = vand.u32 %v5288, 4294901760
    %5290 = vmatpush1.msra.mxu0 %v5289
    %5291 = vmatprep.subr.mxu0 0.0
    %v5292 = vand.u32 %v218, 4294901760
    %v5293 = vsub.f32 %v218, %v5292
    %v5294 = vand.u32 %v5293, 4294901760
    %5295 = vmatpush1.msra.mxu0 %v5294
    %5296 = vmatprep.subr.mxu0 0.0
    %v5297 = vand.u32 %v219, 4294901760
    %v5298 = vsub.f32 %v219, %v5297
    %v5299 = vand.u32 %v5298, 4294901760
    %5300 = vmatpush1.msra.mxu0 %v5299
    %5301 = vmatprep.subr.mxu0 0.0
    %v5302 = vand.u32 %v220, 4294901760
    %v5303 = vsub.f32 %v220, %v5302
    %v5304 = vand.u32 %v5303, 4294901760
    %5305 = vmatpush1.msra.mxu0 %v5304
    %5306 = vmatprep.subr.mxu0 0.0
    %v5307 = vand.u32 %v221, 4294901760
    %v5308 = vsub.f32 %v221, %v5307
    %v5309 = vand.u32 %v5308, 4294901760
    %5310 = vmatpush1.msra.mxu0 %v5309
    %5311 = vmatprep.subr.mxu0 0.0
    %v5312 = vand.u32 %v222, 4294901760
    %v5313 = vsub.f32 %v222, %v5312
    %v5314 = vand.u32 %v5313, 4294901760
    %5315 = vmatpush1.msra.mxu0 %v5314
    %5316 = vmatprep.subr.mxu0 0.0
    %v5317 = vand.u32 %v223, 4294901760
    %v5318 = vsub.f32 %v223, %v5317
    %v5319 = vand.u32 %v5318, 4294901760
    %5320 = vmatpush1.msra.mxu0 %v5319
    %5321 = vmatprep.subr.mxu0 0.0
    %v5322 = vand.u32 %v224, 4294901760
    %v5323 = vsub.f32 %v224, %v5322
    %v5324 = vand.u32 %v5323, 4294901760
    %5325 = vmatpush1.msra.mxu0 %v5324
    %5326 = vmatprep.subr.mxu0 0.0
    %v5327 = vand.u32 %v225, 4294901760
    %v5328 = vsub.f32 %v225, %v5327
    %v5329 = vand.u32 %v5328, 4294901760
    %5330 = vmatpush1.msra.mxu0 %v5329
    %5331 = vmatprep.subr.mxu0 0.0
    %v5332 = vand.u32 %v226, 4294901760
    %v5333 = vsub.f32 %v226, %v5332
    %v5334 = vand.u32 %v5333, 4294901760
    %5335 = vmatpush1.msra.mxu0 %v5334
    %5336 = vmatprep.subr.mxu0 0.0
    %v5337 = vand.u32 %v227, 4294901760
    %v5338 = vsub.f32 %v227, %v5337
    %v5339 = vand.u32 %v5338, 4294901760
    %5340 = vmatpush1.msra.mxu0 %v5339
    %5341 = vmatprep.subr.mxu0 0.0
    %v5342 = vand.u32 %v228, 4294901760
    %v5343 = vsub.f32 %v228, %v5342
    %v5344 = vand.u32 %v5343, 4294901760
    %5345 = vmatpush1.msra.mxu0 %v5344
    %5346 = vmatprep.subr.mxu0 0.0
    %v5347 = vand.u32 %v229, 4294901760
    %v5348 = vsub.f32 %v229, %v5347
    %v5349 = vand.u32 %v5348, 4294901760
    %5350 = vmatpush1.msra.mxu0 %v5349
    %5351 = vmatprep.subr.mxu0 0.0
    %v5352 = vand.u32 %v230, 4294901760
    %v5353 = vsub.f32 %v230, %v5352
    %v5354 = vand.u32 %v5353, 4294901760
    %5355 = vmatpush1.msra.mxu0 %v5354
    %5356 = vmatprep.subr.mxu0 0.0
    %v5357 = vand.u32 %v231, 4294901760
    %v5358 = vsub.f32 %v231, %v5357
    %v5359 = vand.u32 %v5358, 4294901760
    %5360 = vmatpush1.msra.mxu0 %v5359
    %5361 = vmatprep.subr.mxu0 0.0
    %v5362 = vand.u32 %v232, 4294901760
    %v5363 = vsub.f32 %v232, %v5362
    %v5364 = vand.u32 %v5363, 4294901760
    %5365 = vmatpush1.msra.mxu0 %v5364
    %5366 = vmatprep.subr.mxu0 0.0
    %v5367 = vand.u32 %v233, 4294901760
    %v5368 = vsub.f32 %v233, %v5367
    %v5369 = vand.u32 %v5368, 4294901760
    %5370 = vmatpush1.msra.mxu0 %v5369
    %5371 = vmatprep.subr.mxu0 0.0
    %v5372 = vand.u32 %v234, 4294901760
    %v5373 = vsub.f32 %v234, %v5372
    %v5374 = vand.u32 %v5373, 4294901760
    %5375 = vmatpush1.msra.mxu0 %v5374
    %5376 = vmatprep.subr.mxu0 0.0
    %v5377 = vand.u32 %v235, 4294901760
    %v5378 = vsub.f32 %v235, %v5377
    %v5379 = vand.u32 %v5378, 4294901760
    %5380 = vmatpush1.msra.mxu0 %v5379
    %v5381 = vand.u32 %v303, 4294901760
    %5382 = vmatprep.mubr.f32.mxu0 %v5381
    %v5383 = vand.u32 %v299, 4294901760
    %5384 = vmatmul.mubr.f32.gmra.mrb[0].mxu0 %v5383
    %v5385 = vpop.f32.mrb[0].mxu0
    %v5386 = vadd.f32 %v5218, %v5385
    %v5387 = vpop.f32.mrb[0].mxu0
    %5388 = vdwg.mxu0
    %5389 = vmatprep.subr.mxu0 0.0
    %v5390 = vand.u32 %v204, 4294901760
    %5391 = vmatpush1.msra.mxu0 %v5390
    %5392 = vmatprep.subr.mxu0 0.0
    %v5393 = vand.u32 %v205, 4294901760
    %5394 = vmatpush1.msra.mxu0 %v5393
    %5395 = vmatprep.subr.mxu0 0.0
    %v5396 = vand.u32 %v206, 4294901760
    %5397 = vmatpush1.msra.mxu0 %v5396
    %5398 = vmatprep.subr.mxu0 0.0
    %v5399 = vand.u32 %v207, 4294901760
    %5400 = vmatpush1.msra.mxu0 %v5399
    %5401 = vmatprep.subr.mxu0 0.0
    %v5402 = vand.u32 %v208, 4294901760
    %5403 = vmatpush1.msra.mxu0 %v5402
    %5404 = vmatprep.subr.mxu0 0.0
    %v5405 = vand.u32 %v209, 4294901760
    %5406 = vmatpush1.msra.mxu0 %v5405
    %5407 = vmatprep.subr.mxu0 0.0
    %v5408 = vand.u32 %v210, 4294901760
    %5409 = vmatpush1.msra.mxu0 %v5408
    %5410 = vmatprep.subr.mxu0 0.0
    %v5411 = vand.u32 %v211, 4294901760
    %5412 = vmatpush1.msra.mxu0 %v5411
    %5413 = vmatprep.subr.mxu0 0.0
    %v5414 = vand.u32 %v212, 4294901760
    %5415 = vmatpush1.msra.mxu0 %v5414
    %5416 = vmatprep.subr.mxu0 0.0
    %v5417 = vand.u32 %v213, 4294901760
    %5418 = vmatpush1.msra.mxu0 %v5417
    %5419 = vmatprep.subr.mxu0 0.0
    %v5420 = vand.u32 %v214, 4294901760
    %5421 = vmatpush1.msra.mxu0 %v5420
    %5422 = vmatprep.subr.mxu0 0.0
    %v5423 = vand.u32 %v215, 4294901760
    %5424 = vmatpush1.msra.mxu0 %v5423
    %5425 = vmatprep.subr.mxu0 0.0
    %v5426 = vand.u32 %v216, 4294901760
    %5427 = vmatpush1.msra.mxu0 %v5426
    %5428 = vmatprep.subr.mxu0 0.0
    %v5429 = vand.u32 %v217, 4294901760
    %5430 = vmatpush1.msra.mxu0 %v5429
    %5431 = vmatprep.subr.mxu0 0.0
    %v5432 = vand.u32 %v218, 4294901760
    %5433 = vmatpush1.msra.mxu0 %v5432
    %5434 = vmatprep.subr.mxu0 0.0
    %v5435 = vand.u32 %v219, 4294901760
    %5436 = vmatpush1.msra.mxu0 %v5435
    %5437 = vmatprep.subr.mxu0 0.0
    %v5438 = vand.u32 %v220, 4294901760
    %5439 = vmatpush1.msra.mxu0 %v5438
    %5440 = vmatprep.subr.mxu0 0.0
    %v5441 = vand.u32 %v221, 4294901760
    %5442 = vmatpush1.msra.mxu0 %v5441
    %5443 = vmatprep.subr.mxu0 0.0
    %v5444 = vand.u32 %v222, 4294901760
    %5445 = vmatpush1.msra.mxu0 %v5444
    %5446 = vmatprep.subr.mxu0 0.0
    %v5447 = vand.u32 %v223, 4294901760
    %5448 = vmatpush1.msra.mxu0 %v5447
    %5449 = vmatprep.subr.mxu0 0.0
    %v5450 = vand.u32 %v224, 4294901760
    %5451 = vmatpush1.msra.mxu0 %v5450
    %5452 = vmatprep.subr.mxu0 0.0
    %v5453 = vand.u32 %v225, 4294901760
    %5454 = vmatpush1.msra.mxu0 %v5453
    %5455 = vmatprep.subr.mxu0 0.0
    %v5456 = vand.u32 %v226, 4294901760
    %5457 = vmatpush1.msra.mxu0 %v5456
    %5458 = vmatprep.subr.mxu0 0.0
    %v5459 = vand.u32 %v227, 4294901760
    %5460 = vmatpush1.msra.mxu0 %v5459
    %5461 = vmatprep.subr.mxu0 0.0
    %v5462 = vand.u32 %v228, 4294901760
    %5463 = vmatpush1.msra.mxu0 %v5462
    %5464 = vmatprep.subr.mxu0 0.0
    %v5465 = vand.u32 %v229, 4294901760
    %5466 = vmatpush1.msra.mxu0 %v5465
    %5467 = vmatprep.subr.mxu0 0.0
    %v5468 = vand.u32 %v230, 4294901760
    %5469 = vmatpush1.msra.mxu0 %v5468
    %5470 = vmatprep.subr.mxu0 0.0
    %v5471 = vand.u32 %v231, 4294901760
    %5472 = vmatpush1.msra.mxu0 %v5471
    %5473 = vmatprep.subr.mxu0 0.0
    %v5474 = vand.u32 %v232, 4294901760
    %5475 = vmatpush1.msra.mxu0 %v5474
    %5476 = vmatprep.subr.mxu0 0.0
    %v5477 = vand.u32 %v233, 4294901760
    %5478 = vmatpush1.msra.mxu0 %v5477
    %5479 = vmatprep.subr.mxu0 0.0
    %v5480 = vand.u32 %v234, 4294901760
    %5481 = vmatpush1.msra.mxu0 %v5480
    %5482 = vmatprep.subr.mxu0 0.0
    %v5483 = vand.u32 %v235, 4294901760
    %5484 = vmatpush1.msra.mxu0 %v5483
    %v5485 = vand.u32 %v303, 4294901760
    %5486 = vmatprep.mubr.f32.mxu0 %v5485
    %v5487 = vand.u32 %v299, 4294901760
    %5488 = vmatmul.mubr.f32.gmra.mrb[0].mxu0 %v5487
    %v5489 = vpop.f32.mrb[0].mxu0
    %v5490 = vadd.f32 %v5386, %v5489
    %v5491 = vpop.f32.mrb[0].mxu0
    %5492 = vdwg.mxu0
    %5493 = vmatprep.subr.mxu0 0.0
    %v5494 = vand.u32 %v236, 4294901760
    %5495 = vmatpush1.msra.mxu0 %v5494
    %5496 = vmatprep.subr.mxu0 0.0
    %v5497 = vand.u32 %v237, 4294901760
    %5498 = vmatpush1.msra.mxu0 %v5497
    %5499 = vmatprep.subr.mxu0 0.0
    %v5500 = vand.u32 %v238, 4294901760
    %5501 = vmatpush1.msra.mxu0 %v5500
    %5502 = vmatprep.subr.mxu0 0.0
    %v5503 = vand.u32 %v239, 4294901760
    %5504 = vmatpush1.msra.mxu0 %v5503
    %5505 = vmatprep.subr.mxu0 0.0
    %v5506 = vand.u32 %v240, 4294901760
    %5507 = vmatpush1.msra.mxu0 %v5506
    %5508 = vmatprep.subr.mxu0 0.0
    %v5509 = vand.u32 %v241, 4294901760
    %5510 = vmatpush1.msra.mxu0 %v5509
    %5511 = vmatprep.subr.mxu0 0.0
    %v5512 = vand.u32 %v242, 4294901760
    %5513 = vmatpush1.msra.mxu0 %v5512
    %5514 = vmatprep.subr.mxu0 0.0
    %v5515 = vand.u32 %v243, 4294901760
    %5516 = vmatpush1.msra.mxu0 %v5515
    %5517 = vmatprep.subr.mxu0 0.0
    %v5518 = vand.u32 %v244, 4294901760
    %5519 = vmatpush1.msra.mxu0 %v5518
    %5520 = vmatprep.subr.mxu0 0.0
    %v5521 = vand.u32 %v245, 4294901760
    %5522 = vmatpush1.msra.mxu0 %v5521
    %5523 = vmatprep.subr.mxu0 0.0
    %v5524 = vand.u32 %v246, 4294901760
    %5525 = vmatpush1.msra.mxu0 %v5524
    %5526 = vmatprep.subr.mxu0 0.0
    %v5527 = vand.u32 %v247, 4294901760
    %5528 = vmatpush1.msra.mxu0 %v5527
    %5529 = vmatprep.subr.mxu0 0.0
    %v5530 = vand.u32 %v248, 4294901760
    %5531 = vmatpush1.msra.mxu0 %v5530
    %5532 = vmatprep.subr.mxu0 0.0
    %v5533 = vand.u32 %v249, 4294901760
    %5534 = vmatpush1.msra.mxu0 %v5533
    %5535 = vmatprep.subr.mxu0 0.0
    %v5536 = vand.u32 %v250, 4294901760
    %5537 = vmatpush1.msra.mxu0 %v5536
    %5538 = vmatprep.subr.mxu0 0.0
    %v5539 = vand.u32 %v251, 4294901760
    %5540 = vmatpush1.msra.mxu0 %v5539
    %5541 = vmatprep.subr.mxu0 0.0
    %5542 = vmatpush1.msra.mxu0 0.0
    %5543 = vmatprep.subr.mxu0 0.0
    %5544 = vmatpush1.msra.mxu0 0.0
    %5545 = vmatprep.subr.mxu0 0.0
    %5546 = vmatpush1.msra.mxu0 0.0
    %5547 = vmatprep.subr.mxu0 0.0
    %5548 = vmatpush1.msra.mxu0 0.0
    %5549 = vmatprep.subr.mxu0 0.0
    %5550 = vmatpush1.msra.mxu0 0.0
    %5551 = vmatprep.subr.mxu0 0.0
    %5552 = vmatpush1.msra.mxu0 0.0
    %5553 = vmatprep.subr.mxu0 0.0
    %5554 = vmatpush1.msra.mxu0 0.0
    %5555 = vmatprep.subr.mxu0 0.0
    %5556 = vmatpush1.msra.mxu0 0.0
    %5557 = vmatprep.subr.mxu0 0.0
    %5558 = vmatpush1.msra.mxu0 0.0
    %5559 = vmatprep.subr.mxu0 0.0
    %5560 = vmatpush1.msra.mxu0 0.0
    %5561 = vmatprep.subr.mxu0 0.0
    %5562 = vmatpush1.msra.mxu0 0.0
    %5563 = vmatprep.subr.mxu0 0.0
    %5564 = vmatpush1.msra.mxu0 0.0
    %5565 = vmatprep.subr.mxu0 0.0
    %5566 = vmatpush1.msra.mxu0 0.0
    %5567 = vmatprep.subr.mxu0 0.0
    %5568 = vmatpush1.msra.mxu0 0.0
    %5569 = vmatprep.subr.mxu0 0.0
    %5570 = vmatpush1.msra.mxu0 0.0
    %5571 = vmatprep.subr.mxu0 0.0
    %5572 = vmatpush1.msra.mxu0 0.0
    %5573 = vmatprep.mubr.f32.mxu0 0.0
    %v5574 = vand.u32 %v307, 4294901760
    %v5575 = vsub.f32 %v307, %v5574
    %v5576 = vand.u32 %v5575, 4294901760
    %v5577 = vsub.f32 %v5575, %v5576
    %v5578 = vand.u32 %v5577, 4294901760
    %5579 = vmatmul.mubr.f32.gmra.mrb[0].mxu0 %v5578
    %v5580 = vpop.f32.mrb[0].mxu0
    %v5581 = vadd.f32 %v5490, %v5580
    %v5582 = vpop.f32.mrb[0].mxu0
    %5583 = vdwg.mxu0
    %5584 = vmatprep.subr.mxu0 0.0
    %v5585 = vand.u32 %v236, 4294901760
    %v5586 = vsub.f32 %v236, %v5585
    %v5587 = vand.u32 %v5586, 4294901760
    %v5588 = vsub.f32 %v5586, %v5587
    %v5589 = vand.u32 %v5588, 4294901760
    %5590 = vmatpush1.msra.mxu0 %v5589
    %5591 = vmatprep.subr.mxu0 0.0
    %v5592 = vand.u32 %v237, 4294901760
    %v5593 = vsub.f32 %v237, %v5592
    %v5594 = vand.u32 %v5593, 4294901760
    %v5595 = vsub.f32 %v5593, %v5594
    %v5596 = vand.u32 %v5595, 4294901760
    %5597 = vmatpush1.msra.mxu0 %v5596
    %5598 = vmatprep.subr.mxu0 0.0
    %v5599 = vand.u32 %v238, 4294901760
    %v5600 = vsub.f32 %v238, %v5599
    %v5601 = vand.u32 %v5600, 4294901760
    %v5602 = vsub.f32 %v5600, %v5601
    %v5603 = vand.u32 %v5602, 4294901760
    %5604 = vmatpush1.msra.mxu0 %v5603
    %5605 = vmatprep.subr.mxu0 0.0
    %v5606 = vand.u32 %v239, 4294901760
    %v5607 = vsub.f32 %v239, %v5606
    %v5608 = vand.u32 %v5607, 4294901760
    %v5609 = vsub.f32 %v5607, %v5608
    %v5610 = vand.u32 %v5609, 4294901760
    %5611 = vmatpush1.msra.mxu0 %v5610
    %5612 = vmatprep.subr.mxu0 0.0
    %v5613 = vand.u32 %v240, 4294901760
    %v5614 = vsub.f32 %v240, %v5613
    %v5615 = vand.u32 %v5614, 4294901760
    %v5616 = vsub.f32 %v5614, %v5615
    %v5617 = vand.u32 %v5616, 4294901760
    %5618 = vmatpush1.msra.mxu0 %v5617
    %5619 = vmatprep.subr.mxu0 0.0
    %v5620 = vand.u32 %v241, 4294901760
    %v5621 = vsub.f32 %v241, %v5620
    %v5622 = vand.u32 %v5621, 4294901760
    %v5623 = vsub.f32 %v5621, %v5622
    %v5624 = vand.u32 %v5623, 4294901760
    %5625 = vmatpush1.msra.mxu0 %v5624
    %5626 = vmatprep.subr.mxu0 0.0
    %v5627 = vand.u32 %v242, 4294901760
    %v5628 = vsub.f32 %v242, %v5627
    %v5629 = vand.u32 %v5628, 4294901760
    %v5630 = vsub.f32 %v5628, %v5629
    %v5631 = vand.u32 %v5630, 4294901760
    %5632 = vmatpush1.msra.mxu0 %v5631
    %5633 = vmatprep.subr.mxu0 0.0
    %v5634 = vand.u32 %v243, 4294901760
    %v5635 = vsub.f32 %v243, %v5634
    %v5636 = vand.u32 %v5635, 4294901760
    %v5637 = vsub.f32 %v5635, %v5636
    %v5638 = vand.u32 %v5637, 4294901760
    %5639 = vmatpush1.msra.mxu0 %v5638
    %5640 = vmatprep.subr.mxu0 0.0
    %v5641 = vand.u32 %v244, 4294901760
    %v5642 = vsub.f32 %v244, %v5641
    %v5643 = vand.u32 %v5642, 4294901760
    %v5644 = vsub.f32 %v5642, %v5643
    %v5645 = vand.u32 %v5644, 4294901760
    %5646 = vmatpush1.msra.mxu0 %v5645
    %5647 = vmatprep.subr.mxu0 0.0
    %v5648 = vand.u32 %v245, 4294901760
    %v5649 = vsub.f32 %v245, %v5648
    %v5650 = vand.u32 %v5649, 4294901760
    %v5651 = vsub.f32 %v5649, %v5650
    %v5652 = vand.u32 %v5651, 4294901760
    %5653 = vmatpush1.msra.mxu0 %v5652
    %5654 = vmatprep.subr.mxu0 0.0
    %v5655 = vand.u32 %v246, 4294901760
    %v5656 = vsub.f32 %v246, %v5655
    %v5657 = vand.u32 %v5656, 4294901760
    %v5658 = vsub.f32 %v5656, %v5657
    %v5659 = vand.u32 %v5658, 4294901760
    %5660 = vmatpush1.msra.mxu0 %v5659
    %5661 = vmatprep.subr.mxu0 0.0
    %v5662 = vand.u32 %v247, 4294901760
    %v5663 = vsub.f32 %v247, %v5662
    %v5664 = vand.u32 %v5663, 4294901760
    %v5665 = vsub.f32 %v5663, %v5664
    %v5666 = vand.u32 %v5665, 4294901760
    %5667 = vmatpush1.msra.mxu0 %v5666
    %5668 = vmatprep.subr.mxu0 0.0
    %v5669 = vand.u32 %v248, 4294901760
    %v5670 = vsub.f32 %v248, %v5669
    %v5671 = vand.u32 %v5670, 4294901760
    %v5672 = vsub.f32 %v5670, %v5671
    %v5673 = vand.u32 %v5672, 4294901760
    %5674 = vmatpush1.msra.mxu0 %v5673
    %5675 = vmatprep.subr.mxu0 0.0
    %v5676 = vand.u32 %v249, 4294901760
    %v5677 = vsub.f32 %v249, %v5676
    %v5678 = vand.u32 %v5677, 4294901760
    %v5679 = vsub.f32 %v5677, %v5678
    %v5680 = vand.u32 %v5679, 4294901760
    %5681 = vmatpush1.msra.mxu0 %v5680
    %5682 = vmatprep.subr.mxu0 0.0
    %v5683 = vand.u32 %v250, 4294901760
    %v5684 = vsub.f32 %v250, %v5683
    %v5685 = vand.u32 %v5684, 4294901760
    %v5686 = vsub.f32 %v5684, %v5685
    %v5687 = vand.u32 %v5686, 4294901760
    %5688 = vmatpush1.msra.mxu0 %v5687
    %5689 = vmatprep.subr.mxu0 0.0
    %v5690 = vand.u32 %v251, 4294901760
    %v5691 = vsub.f32 %v251, %v5690
    %v5692 = vand.u32 %v5691, 4294901760
    %v5693 = vsub.f32 %v5691, %v5692
    %v5694 = vand.u32 %v5693, 4294901760
    %5695 = vmatpush1.msra.mxu0 %v5694
    %5696 = vmatprep.subr.mxu0 0.0
    %5697 = vmatpush1.msra.mxu0 0.0
    %5698 = vmatprep.subr.mxu0 0.0
    %5699 = vmatpush1.msra.mxu0 0.0
    %5700 = vmatprep.subr.mxu0 0.0
    %5701 = vmatpush1.msra.mxu0 0.0
    %5702 = vmatprep.subr.mxu0 0.0
    %5703 = vmatpush1.msra.mxu0 0.0
    %5704 = vmatprep.subr.mxu0 0.0
    %5705 = vmatpush1.msra.mxu0 0.0
    %5706 = vmatprep.subr.mxu0 0.0
    %5707 = vmatpush1.msra.mxu0 0.0
    %5708 = vmatprep.subr.mxu0 0.0
    %5709 = vmatpush1.msra.mxu0 0.0
    %5710 = vmatprep.subr.mxu0 0.0
    %5711 = vmatpush1.msra.mxu0 0.0
    %5712 = vmatprep.subr.mxu0 0.0
    %5713 = vmatpush1.msra.mxu0 0.0
    %5714 = vmatprep.subr.mxu0 0.0
    %5715 = vmatpush1.msra.mxu0 0.0
    %5716 = vmatprep.subr.mxu0 0.0
    %5717 = vmatpush1.msra.mxu0 0.0
    %5718 = vmatprep.subr.mxu0 0.0
    %5719 = vmatpush1.msra.mxu0 0.0
    %5720 = vmatprep.subr.mxu0 0.0
    %5721 = vmatpush1.msra.mxu0 0.0
    %5722 = vmatprep.subr.mxu0 0.0
    %5723 = vmatpush1.msra.mxu0 0.0
    %5724 = vmatprep.subr.mxu0 0.0
    %5725 = vmatpush1.msra.mxu0 0.0
    %5726 = vmatprep.subr.mxu0 0.0
    %5727 = vmatpush1.msra.mxu0 0.0
    %5728 = vmatprep.mubr.f32.mxu0 0.0
    %v5729 = vand.u32 %v307, 4294901760
    %5730 = vmatmul.mubr.f32.gmra.mrb[0].mxu0 %v5729
    %v5731 = vpop.f32.mrb[0].mxu0
    %v5732 = vadd.f32 %v5581, %v5731
    %v5733 = vpop.f32.mrb[0].mxu0
    %5734 = vdwg.mxu0
    %5735 = vmatprep.subr.mxu0 0.0
    %v5736 = vand.u32 %v236, 4294901760
    %v5737 = vsub.f32 %v236, %v5736
    %5738 = vmatpush1.msra.mxu0 %v5737
    %5739 = vmatprep.subr.mxu0 0.0
    %v5740 = vand.u32 %v237, 4294901760
    %v5741 = vsub.f32 %v237, %v5740
    %5742 = vmatpush1.msra.mxu0 %v5741
    %5743 = vmatprep.subr.mxu0 0.0
    %v5744 = vand.u32 %v238, 4294901760
    %v5745 = vsub.f32 %v238, %v5744
    %5746 = vmatpush1.msra.mxu0 %v5745
    %5747 = vmatprep.subr.mxu0 0.0
    %v5748 = vand.u32 %v239, 4294901760
    %v5749 = vsub.f32 %v239, %v5748
    %5750 = vmatpush1.msra.mxu0 %v5749
    %5751 = vmatprep.subr.mxu0 0.0
    %v5752 = vand.u32 %v240, 4294901760
    %v5753 = vsub.f32 %v240, %v5752
    %5754 = vmatpush1.msra.mxu0 %v5753
    %5755 = vmatprep.subr.mxu0 0.0
    %v5756 = vand.u32 %v241, 4294901760
    %v5757 = vsub.f32 %v241, %v5756
    %5758 = vmatpush1.msra.mxu0 %v5757
    %5759 = vmatprep.subr.mxu0 0.0
    %v5760 = vand.u32 %v242, 4294901760
    %v5761 = vsub.f32 %v242, %v5760
    %5762 = vmatpush1.msra.mxu0 %v5761
    %5763 = vmatprep.subr.mxu0 0.0
    %v5764 = vand.u32 %v243, 4294901760
    %v5765 = vsub.f32 %v243, %v5764
    %5766 = vmatpush1.msra.mxu0 %v5765
    %5767 = vmatprep.subr.mxu0 0.0
    %v5768 = vand.u32 %v244, 4294901760
    %v5769 = vsub.f32 %v244, %v5768
    %5770 = vmatpush1.msra.mxu0 %v5769
    %5771 = vmatprep.subr.mxu0 0.0
    %v5772 = vand.u32 %v245, 4294901760
    %v5773 = vsub.f32 %v245, %v5772
    %5774 = vmatpush1.msra.mxu0 %v5773
    %5775 = vmatprep.subr.mxu0 0.0
    %v5776 = vand.u32 %v246, 4294901760
    %v5777 = vsub.f32 %v246, %v5776
    %5778 = vmatpush1.msra.mxu0 %v5777
    %5779 = vmatprep.subr.mxu0 0.0
    %v5780 = vand.u32 %v247, 4294901760
    %v5781 = vsub.f32 %v247, %v5780
    %5782 = vmatpush1.msra.mxu0 %v5781
    %5783 = vmatprep.subr.mxu0 0.0
    %v5784 = vand.u32 %v248, 4294901760
    %v5785 = vsub.f32 %v248, %v5784
    %5786 = vmatpush1.msra.mxu0 %v5785
    %5787 = vmatprep.subr.mxu0 0.0
    %v5788 = vand.u32 %v249, 4294901760
    %v5789 = vsub.f32 %v249, %v5788
    %5790 = vmatpush1.msra.mxu0 %v5789
    %5791 = vmatprep.subr.mxu0 0.0
    %v5792 = vand.u32 %v250, 4294901760
    %v5793 = vsub.f32 %v250, %v5792
    %5794 = vmatpush1.msra.mxu0 %v5793
    %5795 = vmatprep.subr.mxu0 0.0
    %v5796 = vand.u32 %v251, 4294901760
    %v5797 = vsub.f32 %v251, %v5796
    %5798 = vmatpush1.msra.mxu0 %v5797
    %5799 = vmatprep.subr.mxu0 0.0
    %5800 = vmatpush1.msra.mxu0 0.0
    %5801 = vmatprep.subr.mxu0 0.0
    %5802 = vmatpush1.msra.mxu0 0.0
    %5803 = vmatprep.subr.mxu0 0.0
    %5804 = vmatpush1.msra.mxu0 0.0
    %5805 = vmatprep.subr.mxu0 0.0
    %5806 = vmatpush1.msra.mxu0 0.0
    %5807 = vmatprep.subr.mxu0 0.0
    %5808 = vmatpush1.msra.mxu0 0.0
    %5809 = vmatprep.subr.mxu0 0.0
    %5810 = vmatpush1.msra.mxu0 0.0
    %5811 = vmatprep.subr.mxu0 0.0
    %5812 = vmatpush1.msra.mxu0 0.0
    %5813 = vmatprep.subr.mxu0 0.0
    %5814 = vmatpush1.msra.mxu0 0.0
    %5815 = vmatprep.subr.mxu0 0.0
    %5816 = vmatpush1.msra.mxu0 0.0
    %5817 = vmatprep.subr.mxu0 0.0
    %5818 = vmatpush1.msra.mxu0 0.0
    %5819 = vmatprep.subr.mxu0 0.0
    %5820 = vmatpush1.msra.mxu0 0.0
    %5821 = vmatprep.subr.mxu0 0.0
    %5822 = vmatpush1.msra.mxu0 0.0
    %5823 = vmatprep.subr.mxu0 0.0
    %5824 = vmatpush1.msra.mxu0 0.0
    %5825 = vmatprep.subr.mxu0 0.0
    %5826 = vmatpush1.msra.mxu0 0.0
    %5827 = vmatprep.subr.mxu0 0.0
    %5828 = vmatpush1.msra.mxu0 0.0
    %5829 = vmatprep.subr.mxu0 0.0
    %5830 = vmatpush1.msra.mxu0 0.0
    %5831 = vmatprep.mubr.f32.mxu0 0.0
    %v5832 = vand.u32 %v307, 4294901760
    %v5833 = vsub.f32 %v307, %v5832
    %5834 = vmatmul.mubr.f32.gmra.mrb[0].mxu0 %v5833
    %v5835 = vpop.f32.mrb[0].mxu0
    %v5836 = vadd.f32 %v5732, %v5835
    %v5837 = vpop.f32.mrb[0].mxu0
    %5838 = vdwg.mxu0
    %5839 = vmatprep.subr.mxu0 0.0
    %v5840 = vand.u32 %v236, 4294901760
    %5841 = vmatpush1.msra.mxu0 %v5840
    %5842 = vmatprep.subr.mxu0 0.0
    %v5843 = vand.u32 %v237, 4294901760
    %5844 = vmatpush1.msra.mxu0 %v5843
    %5845 = vmatprep.subr.mxu0 0.0
    %v5846 = vand.u32 %v238, 4294901760
    %5847 = vmatpush1.msra.mxu0 %v5846
    %5848 = vmatprep.subr.mxu0 0.0
    %v5849 = vand.u32 %v239, 4294901760
    %5850 = vmatpush1.msra.mxu0 %v5849
    %5851 = vmatprep.subr.mxu0 0.0
    %v5852 = vand.u32 %v240, 4294901760
    %5853 = vmatpush1.msra.mxu0 %v5852
    %5854 = vmatprep.subr.mxu0 0.0
    %v5855 = vand.u32 %v241, 4294901760
    %5856 = vmatpush1.msra.mxu0 %v5855
    %5857 = vmatprep.subr.mxu0 0.0
    %v5858 = vand.u32 %v242, 4294901760
    %5859 = vmatpush1.msra.mxu0 %v5858
    %5860 = vmatprep.subr.mxu0 0.0
    %v5861 = vand.u32 %v243, 4294901760
    %5862 = vmatpush1.msra.mxu0 %v5861
    %5863 = vmatprep.subr.mxu0 0.0
    %v5864 = vand.u32 %v244, 4294901760
    %5865 = vmatpush1.msra.mxu0 %v5864
    %5866 = vmatprep.subr.mxu0 0.0
    %v5867 = vand.u32 %v245, 4294901760
    %5868 = vmatpush1.msra.mxu0 %v5867
    %5869 = vmatprep.subr.mxu0 0.0
    %v5870 = vand.u32 %v246, 4294901760
    %5871 = vmatpush1.msra.mxu0 %v5870
    %5872 = vmatprep.subr.mxu0 0.0
    %v5873 = vand.u32 %v247, 4294901760
    %5874 = vmatpush1.msra.mxu0 %v5873
    %5875 = vmatprep.subr.mxu0 0.0
    %v5876 = vand.u32 %v248, 4294901760
    %5877 = vmatpush1.msra.mxu0 %v5876
    %5878 = vmatprep.subr.mxu0 0.0
    %v5879 = vand.u32 %v249, 4294901760
    %5880 = vmatpush1.msra.mxu0 %v5879
    %5881 = vmatprep.subr.mxu0 0.0
    %v5882 = vand.u32 %v250, 4294901760
    %5883 = vmatpush1.msra.mxu0 %v5882
    %5884 = vmatprep.subr.mxu0 0.0
    %v5885 = vand.u32 %v251, 4294901760
    %5886 = vmatpush1.msra.mxu0 %v5885
    %5887 = vmatprep.subr.mxu0 0.0
    %5888 = vmatpush1.msra.mxu0 0.0
    %5889 = vmatprep.subr.mxu0 0.0
    %5890 = vmatpush1.msra.mxu0 0.0
    %5891 = vmatprep.subr.mxu0 0.0
    %5892 = vmatpush1.msra.mxu0 0.0
    %5893 = vmatprep.subr.mxu0 0.0
    %5894 = vmatpush1.msra.mxu0 0.0
    %5895 = vmatprep.subr.mxu0 0.0
    %5896 = vmatpush1.msra.mxu0 0.0
    %5897 = vmatprep.subr.mxu0 0.0
    %5898 = vmatpush1.msra.mxu0 0.0
    %5899 = vmatprep.subr.mxu0 0.0
    %5900 = vmatpush1.msra.mxu0 0.0
    %5901 = vmatprep.subr.mxu0 0.0
    %5902 = vmatpush1.msra.mxu0 0.0
    %5903 = vmatprep.subr.mxu0 0.0
    %5904 = vmatpush1.msra.mxu0 0.0
    %5905 = vmatprep.subr.mxu0 0.0
    %5906 = vmatpush1.msra.mxu0 0.0
    %5907 = vmatprep.subr.mxu0 0.0
    %5908 = vmatpush1.msra.mxu0 0.0
    %5909 = vmatprep.subr.mxu0 0.0
    %5910 = vmatpush1.msra.mxu0 0.0
    %5911 = vmatprep.subr.mxu0 0.0
    %5912 = vmatpush1.msra.mxu0 0.0
    %5913 = vmatprep.subr.mxu0 0.0
    %5914 = vmatpush1.msra.mxu0 0.0
    %5915 = vmatprep.subr.mxu0 0.0
    %5916 = vmatpush1.msra.mxu0 0.0
    %5917 = vmatprep.subr.mxu0 0.0
    %5918 = vmatpush1.msra.mxu0 0.0
    %5919 = vmatprep.mubr.f32.mxu0 0.0
    %v5920 = vand.u32 %v307, 4294901760
    %v5921 = vsub.f32 %v307, %v5920
    %v5922 = vand.u32 %v5921, 4294901760
    %5923 = vmatmul.mubr.f32.gmra.mrb[0].mxu0 %v5922
    %v5924 = vpop.f32.mrb[0].mxu0
    %v5925 = vadd.f32 %v5836, %v5924
    %v5926 = vpop.f32.mrb[0].mxu0
    %5927 = vdwg.mxu0
    %5928 = vmatprep.subr.mxu0 0.0
    %v5929 = vand.u32 %v236, 4294901760
    %v5930 = vsub.f32 %v236, %v5929
    %v5931 = vand.u32 %v5930, 4294901760
    %5932 = vmatpush1.msra.mxu0 %v5931
    %5933 = vmatprep.subr.mxu0 0.0
    %v5934 = vand.u32 %v237, 4294901760
    %v5935 = vsub.f32 %v237, %v5934
    %v5936 = vand.u32 %v5935, 4294901760
    %5937 = vmatpush1.msra.mxu0 %v5936
    %5938 = vmatprep.subr.mxu0 0.0
    %v5939 = vand.u32 %v238, 4294901760
    %v5940 = vsub.f32 %v238, %v5939
    %v5941 = vand.u32 %v5940, 4294901760
    %5942 = vmatpush1.msra.mxu0 %v5941
    %5943 = vmatprep.subr.mxu0 0.0
    %v5944 = vand.u32 %v239, 4294901760
    %v5945 = vsub.f32 %v239, %v5944
    %v5946 = vand.u32 %v5945, 4294901760
    %5947 = vmatpush1.msra.mxu0 %v5946
    %5948 = vmatprep.subr.mxu0 0.0
    %v5949 = vand.u32 %v240, 4294901760
    %v5950 = vsub.f32 %v240, %v5949
    %v5951 = vand.u32 %v5950, 4294901760
    %5952 = vmatpush1.msra.mxu0 %v5951
    %5953 = vmatprep.subr.mxu0 0.0
    %v5954 = vand.u32 %v241, 4294901760
    %v5955 = vsub.f32 %v241, %v5954
    %v5956 = vand.u32 %v5955, 4294901760
    %5957 = vmatpush1.msra.mxu0 %v5956
    %5958 = vmatprep.subr.mxu0 0.0
    %v5959 = vand.u32 %v242, 4294901760
    %v5960 = vsub.f32 %v242, %v5959
    %v5961 = vand.u32 %v5960, 4294901760
    %5962 = vmatpush1.msra.mxu0 %v5961
    %5963 = vmatprep.subr.mxu0 0.0
    %v5964 = vand.u32 %v243, 4294901760
    %v5965 = vsub.f32 %v243, %v5964
    %v5966 = vand.u32 %v5965, 4294901760
    %5967 = vmatpush1.msra.mxu0 %v5966
    %5968 = vmatprep.subr.mxu0 0.0
    %v5969 = vand.u32 %v244, 4294901760
    %v5970 = vsub.f32 %v244, %v5969
    %v5971 = vand.u32 %v5970, 4294901760
    %5972 = vmatpush1.msra.mxu0 %v5971
    %5973 = vmatprep.subr.mxu0 0.0
    %v5974 = vand.u32 %v245, 4294901760
    %v5975 = vsub.f32 %v245, %v5974
    %v5976 = vand.u32 %v5975, 4294901760
    %5977 = vmatpush1.msra.mxu0 %v5976
    %5978 = vmatprep.subr.mxu0 0.0
    %v5979 = vand.u32 %v246, 4294901760
    %v5980 = vsub.f32 %v246, %v5979
    %v5981 = vand.u32 %v5980, 4294901760
    %5982 = vmatpush1.msra.mxu0 %v5981
    %5983 = vmatprep.subr.mxu0 0.0
    %v5984 = vand.u32 %v247, 4294901760
    %v5985 = vsub.f32 %v247, %v5984
    %v5986 = vand.u32 %v5985, 4294901760
    %5987 = vmatpush1.msra.mxu0 %v5986
    %5988 = vmatprep.subr.mxu0 0.0
    %v5989 = vand.u32 %v248, 4294901760
    %v5990 = vsub.f32 %v248, %v5989
    %v5991 = vand.u32 %v5990, 4294901760
    %5992 = vmatpush1.msra.mxu0 %v5991
    %5993 = vmatprep.subr.mxu0 0.0
    %v5994 = vand.u32 %v249, 4294901760
    %v5995 = vsub.f32 %v249, %v5994
    %v5996 = vand.u32 %v5995, 4294901760
    %5997 = vmatpush1.msra.mxu0 %v5996
    %5998 = vmatprep.subr.mxu0 0.0
    %v5999 = vand.u32 %v250, 4294901760
    %v6000 = vsub.f32 %v250, %v5999
    %v6001 = vand.u32 %v6000, 4294901760
    %6002 = vmatpush1.msra.mxu0 %v6001
    %6003 = vmatprep.subr.mxu0 0.0
    %v6004 = vand.u32 %v251, 4294901760
    %v6005 = vsub.f32 %v251, %v6004
    %v6006 = vand.u32 %v6005, 4294901760
    %6007 = vmatpush1.msra.mxu0 %v6006
    %6008 = vmatprep.subr.mxu0 0.0
    %6009 = vmatpush1.msra.mxu0 0.0
    %6010 = vmatprep.subr.mxu0 0.0
    %6011 = vmatpush1.msra.mxu0 0.0
    %6012 = vmatprep.subr.mxu0 0.0
    %6013 = vmatpush1.msra.mxu0 0.0
    %6014 = vmatprep.subr.mxu0 0.0
    %6015 = vmatpush1.msra.mxu0 0.0
    %6016 = vmatprep.subr.mxu0 0.0
    %6017 = vmatpush1.msra.mxu0 0.0
    %6018 = vmatprep.subr.mxu0 0.0
    %6019 = vmatpush1.msra.mxu0 0.0
    %6020 = vmatprep.subr.mxu0 0.0
    %6021 = vmatpush1.msra.mxu0 0.0
    %6022 = vmatprep.subr.mxu0 0.0
    %6023 = vmatpush1.msra.mxu0 0.0
    %6024 = vmatprep.subr.mxu0 0.0
    %6025 = vmatpush1.msra.mxu0 0.0
    %6026 = vmatprep.subr.mxu0 0.0
    %6027 = vmatpush1.msra.mxu0 0.0
    %6028 = vmatprep.subr.mxu0 0.0
    %6029 = vmatpush1.msra.mxu0 0.0
    %6030 = vmatprep.subr.mxu0 0.0
    %6031 = vmatpush1.msra.mxu0 0.0
    %6032 = vmatprep.subr.mxu0 0.0
    %6033 = vmatpush1.msra.mxu0 0.0
    %6034 = vmatprep.subr.mxu0 0.0
    %6035 = vmatpush1.msra.mxu0 0.0
    %6036 = vmatprep.subr.mxu0 0.0
    %6037 = vmatpush1.msra.mxu0 0.0
    %6038 = vmatprep.subr.mxu0 0.0
    %6039 = vmatpush1.msra.mxu0 0.0
    %6040 = vmatprep.mubr.f32.mxu0 0.0
    %v6041 = vand.u32 %v307, 4294901760
    %6042 = vmatmul.mubr.f32.gmra.mrb[0].mxu0 %v6041
    %v6043 = vpop.f32.mrb[0].mxu0
    %v6044 = vadd.f32 %v5925, %v6043
    %v6045 = vpop.f32.mrb[0].mxu0
    %6046 = vdwg.mxu0
    %6047 = vmatprep.subr.mxu0 0.0
    %v6048 = vand.u32 %v236, 4294901760
    %6049 = vmatpush1.msra.mxu0 %v6048
    %6050 = vmatprep.subr.mxu0 0.0
    %v6051 = vand.u32 %v237, 4294901760
    %6052 = vmatpush1.msra.mxu0 %v6051
    %6053 = vmatprep.subr.mxu0 0.0
    %v6054 = vand.u32 %v238, 4294901760
    %6055 = vmatpush1.msra.mxu0 %v6054
    %6056 = vmatprep.subr.mxu0 0.0
    %v6057 = vand.u32 %v239, 4294901760
    %6058 = vmatpush1.msra.mxu0 %v6057
    %6059 = vmatprep.subr.mxu0 0.0
    %v6060 = vand.u32 %v240, 4294901760
    %6061 = vmatpush1.msra.mxu0 %v6060
    %6062 = vmatprep.subr.mxu0 0.0
    %v6063 = vand.u32 %v241, 4294901760
    %6064 = vmatpush1.msra.mxu0 %v6063
    %6065 = vmatprep.subr.mxu0 0.0
    %v6066 = vand.u32 %v242, 4294901760
    %6067 = vmatpush1.msra.mxu0 %v6066
    %6068 = vmatprep.subr.mxu0 0.0
    %v6069 = vand.u32 %v243, 4294901760
    %6070 = vmatpush1.msra.mxu0 %v6069
    %6071 = vmatprep.subr.mxu0 0.0
    %v6072 = vand.u32 %v244, 4294901760
    %6073 = vmatpush1.msra.mxu0 %v6072
    %6074 = vmatprep.subr.mxu0 0.0
    %v6075 = vand.u32 %v245, 4294901760
    %6076 = vmatpush1.msra.mxu0 %v6075
    %6077 = vmatprep.subr.mxu0 0.0
    %v6078 = vand.u32 %v246, 4294901760
    %6079 = vmatpush1.msra.mxu0 %v6078
    %6080 = vmatprep.subr.mxu0 0.0
    %v6081 = vand.u32 %v247, 4294901760
    %6082 = vmatpush1.msra.mxu0 %v6081
    %6083 = vmatprep.subr.mxu0 0.0
    %v6084 = vand.u32 %v248, 4294901760
    %6085 = vmatpush1.msra.mxu0 %v6084
    %6086 = vmatprep.subr.mxu0 0.0
    %v6087 = vand.u32 %v249, 4294901760
    %6088 = vmatpush1.msra.mxu0 %v6087
    %6089 = vmatprep.subr.mxu0 0.0
    %v6090 = vand.u32 %v250, 4294901760
    %6091 = vmatpush1.msra.mxu0 %v6090
    %6092 = vmatprep.subr.mxu0 0.0
    %v6093 = vand.u32 %v251, 4294901760
    %6094 = vmatpush1.msra.mxu0 %v6093
    %6095 = vmatprep.subr.mxu0 0.0
    %6096 = vmatpush1.msra.mxu0 0.0
    %6097 = vmatprep.subr.mxu0 0.0
    %6098 = vmatpush1.msra.mxu0 0.0
    %6099 = vmatprep.subr.mxu0 0.0
    %6100 = vmatpush1.msra.mxu0 0.0
    %6101 = vmatprep.subr.mxu0 0.0
    %6102 = vmatpush1.msra.mxu0 0.0
    %6103 = vmatprep.subr.mxu0 0.0
    %6104 = vmatpush1.msra.mxu0 0.0
    %6105 = vmatprep.subr.mxu0 0.0
    %6106 = vmatpush1.msra.mxu0 0.0
    %6107 = vmatprep.subr.mxu0 0.0
    %6108 = vmatpush1.msra.mxu0 0.0
    %6109 = vmatprep.subr.mxu0 0.0
    %6110 = vmatpush1.msra.mxu0 0.0
    %6111 = vmatprep.subr.mxu0 0.0
    %6112 = vmatpush1.msra.mxu0 0.0
    %6113 = vmatprep.subr.mxu0 0.0
    %6114 = vmatpush1.msra.mxu0 0.0
    %6115 = vmatprep.subr.mxu0 0.0
    %6116 = vmatpush1.msra.mxu0 0.0
    %6117 = vmatprep.subr.mxu0 0.0
    %6118 = vmatpush1.msra.mxu0 0.0
    %6119 = vmatprep.subr.mxu0 0.0
    %6120 = vmatpush1.msra.mxu0 0.0
    %6121 = vmatprep.subr.mxu0 0.0
    %6122 = vmatpush1.msra.mxu0 0.0
    %6123 = vmatprep.subr.mxu0 0.0
    %6124 = vmatpush1.msra.mxu0 0.0
    %6125 = vmatprep.subr.mxu0 0.0
    %6126 = vmatpush1.msra.mxu0 0.0
    %6127 = vmatprep.mubr.f32.mxu0 0.0
    %v6128 = vand.u32 %v307, 4294901760
    %6129 = vmatmul.mubr.f32.gmra.mrb[0].mxu0 %v6128
    %v6130 = vpop.f32.mrb[0].mxu0
    %v6131 = vadd.f32 %v6044, %v6130
    %v6132 = vpop.f32.mrb[0].mxu0
    %6133 = vdwg.mxu0
    %v6134 = vxor.u32 %v6131, 2147483648
    %v6135 = vmul.f32 %v6134, 1.442695
    %v6136 = vpow.pop %v6135
    %v6137 = vadd.f32 %v6136, 1.0
    %v6138 = vrcp.pop %v6137
    %v6139 = vmul.f32 1.0, %v6138
    %6140 = vst [vmem:[#allocation8] sm:$0x1] %v6139
    // Predicated region
    $region22: #{tpu_custom_call.1} parent=1 // pred_check
      _
    $region23: #{tpu_custom_call.1} parent=1 // pred_check_branch
      %6142 = sbr.rel (0) target = $region25
    $region24: #{tpu_custom_call.1} parent=1 // pred_region
      %s6144 = ssub.s32 16, 16
      %6145 = vsyncadd [#allocation5], %s6144
      %s6147 = sshll.u32 [#allocation8], 4
      %s6148 = int_to_ptr.vmem [resolvable:$true] %s6147
      %6150 = dma.vmem_to_hbm [thread:$0]  %s6148, 16, %s3, [#allocation5]
    $region25: #{tpu_custom_call.1} parent=1 // pred_fallthru
      _
    // Predicated region
    $region26: #{tpu_custom_call.1} parent=1 // pred_check
      _
    $region27: #{tpu_custom_call.1} parent=1 // pred_check_branch
      %6152 = sbr.rel (0) target = $region29
    $region28: #{tpu_custom_call.1} parent=1 // pred_region
      %6153 = dma.done [#allocation5], 16
    $region29: #{tpu_custom_call.1} parent=1 // pred_fallthru
      _
    %6154 = vsyncpa [#allocation4], 1
    %6155 = vsyncpa [#allocation7], 1
    %6156 = vsyncpa [#allocation5], 1

</llo_original>
